<compile_context>
chip_gen: v7x
topology: tpu7x:2x2x1
jax: 0.10.0
libtpu: 0.0.40
codegen_flags: <defaults>
</compile_context>

<pallas_src>
import functools
import math

import jax
import jax.numpy as jnp
from jax import lax
from jax.experimental import pallas as pl
from jax.experimental.pallas import tpu as pltpu

_LN_EPS = 1e-5
_SQRT_2_OVER_PI = math.sqrt(2.0 / math.pi)


def _layernorm(x, g, b):
    mu = jnp.mean(x, axis=-1, keepdims=True)
    var = jnp.mean((x - mu) ** 2, axis=-1, keepdims=True)
    return (x - mu) * lax.rsqrt(var + _LN_EPS) * g + b


def _gelu(x):
    # tanh-approximate GELU (EUP-friendly on every TPU generation).
    # TODO(synk): torch.nn.GELU() defaults to the exact erf form; switch to
    # 0.5*x*(1+erf(x/sqrt(2))) if bit-level parity with upstream is required.
    return 0.5 * x * (1.0 + jnp.tanh(_SQRT_2_OVER_PI * (x + 0.044715 * x ** 3)))


def _bf16_dot(a, b):
    # bf16 operands on the MXU, f32 accumulation.
    return jnp.dot(a.astype(jnp.bfloat16), b.astype(jnp.bfloat16),
                   preferred_element_type=jnp.float32)


def _bf16_dot_tb(a, b):
    # a @ b.T (contract last dims of both), bf16 operands, f32 accumulation.
    return lax.dot_general(a.astype(jnp.bfloat16), b.astype(jnp.bfloat16),
                           (((1,), (1,)), ((), ())),
                           preferred_element_type=jnp.float32)


# --------------------------------------------------------------------------
# Pallas kernel: cross-attention block + MLP for `bt` batch elements.
# --------------------------------------------------------------------------
def _kernel(x_ref, we_ref, whw_ref, wff2_ref, vec_ref, wideb_ref, yq_ref,
            o_ref, attn_ref, *, num_heads, bt, S, T, H):
    dh = H // num_heads

    b_embed = vec_ref[0:1]
    g3, b3 = vec_ref[1:2], vec_ref[2:3]
    b_ca_o = vec_ref[3:4]
    b_ff2 = vec_ref[4:5]
    b_ca_kv = wideb_ref[:, 0:2 * H]
    b_ff1 = wideb_ref[:, 2 * H:6 * H]
    y1_rep = yq_ref[0:bt * T]            # (bt*T, H)  tiled self-attn output
    q_ca = yq_ref[bt * T:bt * T + T]     # (T, H)     pre-scaled by 1/sqrt(dh)

    # embed(x): batch flattened into the matmul M dimension -> (bt*S, H)
    x_emb = _bf16_dot(x_ref[...], we_ref[...]) + b_embed

    # fused K/V projection for cross-attention -> (bt*S, 2H)
    kv = _bf16_dot(x_emb, whw_ref[:, 0:2 * H]) + b_ca_kv

    # cross-attention core (inherently per-batch / per-head; tiny matmuls).
    # Head outputs are written straight into a VMEM scratch slab (no concat).
    for b in range(bt):
        kb = kv[b * S:(b + 1) * S, 0:H]
        vb = kv[b * S:(b + 1) * S, H:2 * H]
        for h in range(num_heads):
            lo, hi = h * dh, (h + 1) * dh
            s = _bf16_dot_tb(q_ca[:, lo:hi], kb[:, lo:hi])          # (T, S)
            e = jnp.exp(s - jnp.max(s, axis=-1, keepdims=True))
            p = e * pl.reciprocal(jnp.sum(e, axis=-1, keepdims=True),
                                  approx=True)
            attn_ref[b * T:(b + 1) * T, lo:hi] = _bf16_dot(p, vb[:, lo:hi])

    attn = attn_ref[...]                                            # (bt*T, H)

    # cross-attention output projection + residual (batch-flattened M)
    y = y1_rep + _bf16_dot(attn, whw_ref[:, 2 * H:3 * H]) + b_ca_o

    # MLP block (batch-flattened M)
    h3 = _layernorm(y, g3, b3)
    ff = _gelu(_bf16_dot(h3, whw_ref[:, 3 * H:7 * H]) + b_ff1)      # (bt*T,4H)
    y = y + _bf16_dot(ff, wff2_ref[...]) + b_ff2

    o_ref[...] = y.astype(o_ref.dtype)


# --------------------------------------------------------------------------
# Batch-invariant query side (self-attention block + cross-attn query).
# Depends only on mask_token, so it is computed exactly once here (plain JAX)
# instead of once per batch element inside the kernel.
# --------------------------------------------------------------------------
def _query_side(params, *, num_heads, out_context):
    H = params["w_embed"].shape[1]
    T = out_context
    dh = H // num_heads
    y0 = jnp.broadcast_to(params["mask_token"].reshape(1, H), (T, H))

    h = _layernorm(y0, params["ln1_g"][None], params["ln1_b"][None])
    qkv = _bf16_dot(h, params["w_sa_qkv"]) + params["b_sa_qkv"][None]
    q, k, v = qkv[:, :H], qkv[:, H:2 * H], qkv[:, 2 * H:]
    heads = []
    for hh in range(num_heads):
        sl = slice(hh * dh, (hh + 1) * dh)
        s = _bf16_dot_tb(q[:, sl], k[:, sl]) / math.sqrt(dh)
        heads.append(_bf16_dot(jax.nn.softmax(s, axis=-1), v[:, sl]))
    sa = jnp.concatenate(heads, axis=-1)
    y1 = y0 + _bf16_dot(sa, params["w_sa_o"]) + params["b_sa_o"][None]

    h2 = _layernorm(y1, params["ln2_g"][None], params["ln2_b"][None])
    q_ca = _bf16_dot(h2, params["w_ca_q"]) + params["b_ca_q"][None]
    q_ca = q_ca * (1.0 / math.sqrt(dh))   # fold attention scale into q once
    return y1, q_ca


def _pick_bt(batch):
    # Largest batch tile that still leaves >=2 grid steps (keeps both v7x
    # TensorCores busy) while amortizing the per-step pipeline overhead.
    for bt in (8, 4, 2):
        if batch % bt == 0 and batch // bt >= 2:
            return bt
    return 1


def cross_attention_embedder_forward(x, params, *, num_heads, out_context,
                                     bt=None):
    """x: (B, S, in_dim) f32.  Returns (B, hidden, out_context) f32."""
    B, S, Din = x.shape
    H = params["w_embed"].shape[1]
    T = out_context
    if bt is None:
        bt = _pick_bt(B)
    assert B % bt == 0

    y1, q_ca = _query_side(params, num_heads=num_heads, out_context=T)

    # Pack kernel operands into a handful of lane-dense slabs.
    w_hwide = jnp.concatenate(
        [params["w_ca_kv"], params["w_ca_o"], params["w_ff1"]], axis=1)  # (H,7H) bf16
    vec = jnp.stack([params["b_embed"], params["ln3_g"], params["ln3_b"],
                     params["b_ca_o"], params["b_ff2"]], axis=0)         # (5,H) f32
    wide_b = jnp.concatenate([params["b_ca_kv"], params["b_ff1"]],
                             axis=0)[None, :]                            # (1,6H) f32
    yq = jnp.concatenate([jnp.tile(y1, (bt, 1)), q_ca], axis=0)          # (bt*T+T,H)

    x2 = x.reshape(B * S, Din)   # batch flattened into the sublane / M dim

    def _full(a):
        nd = a.ndim
        return pl.BlockSpec(a.shape, lambda i, _nd=nd: (0,) * _nd)

    kernel = functools.partial(_kernel, num_heads=num_heads, bt=bt, S=S,
                               T=T, H=H)
    weights = (params["w_embed"], w_hwide, params["w_ff2"], vec, wide_b, yq)

    y = pl.pallas_call(
        kernel,
        out_shape=jax.ShapeDtypeStruct((B * T, H), jnp.float32),
        grid=(B // bt,),
        in_specs=[pl.BlockSpec((bt * S, Din), lambda i: (i, 0))]
                 + [_full(a) for a in weights],
        out_specs=pl.BlockSpec((bt * T, H), lambda i: (i, 0)),
        scratch_shapes=[pltpu.VMEM((bt * T, H), jnp.float32)],
        compiler_params=pltpu.CompilerParams(
            dimension_semantics=("parallel",)),
    )(x2, *weights)

    # PyTorch: return y_embed.transpose(1, 2) -> (B, hidden, out_context).
    # Kernel emits a lane-dense (B*T, H) slab; the transpose is wrapper
    # layout plumbing.
    return jnp.transpose(y.reshape(B, T, H), (0, 2, 1))


# --------------------------------------------------------------------------
# Pure-JAX reference (same math, exact softmax divide) for correctness.
# --------------------------------------------------------------------------
def _ref_forward(x, params, *, num_heads, out_context):
    B, S, Din = x.shape
    H = params["w_embed"].shape[1]
    dh = H // num_heads
    y1, q_ca = _query_side(params, num_heads=num_heads,
                           out_context=out_context)
    outs = []
    for b in range(B):
        x_emb = _bf16_dot(x[b], params["w_embed"]) + params["b_embed"][None]
        kv = _bf16_dot(x_emb, params["w_ca_kv"]) + params["b_ca_kv"][None]
        kb, vb = kv[:, :H], kv[:, H:]
        heads = []
        for hh in range(num_heads):
            sl = slice(hh * dh, (hh + 1) * dh)
            s = _bf16_dot_tb(q_ca[:, sl], kb[:, sl])   # q already scaled
            heads.append(_bf16_dot(jax.nn.softmax(s, axis=-1), vb[:, sl]))
        ca = jnp.concatenate(heads, axis=-1)
        y = y1 + _bf16_dot(ca, params["w_ca_o"]) + params["b_ca_o"][None]
        h3 = _layernorm(y, params["ln3_g"][None], params["ln3_b"][None])
        ff = _gelu(_bf16_dot(h3, params["w_ff1"]) + params["b_ff1"][None])
        y = y + _bf16_dot(ff, params["w_ff2"]) + params["b_ff2"][None]
        outs.append(y)
    return jnp.transpose(jnp.stack(outs, axis=0), (0, 2, 1))


def init_params(key, in_dim, hidden, *, dtype_w=jnp.bfloat16):
    H = hidden
    ks = jax.random.split(key, 17)

    def lin_w(k, din, dout):  # torch Linear weight, stored (in, out)
        bound = 1.0 / math.sqrt(din)
        return jax.random.uniform(k, (din, dout), jnp.float32, -bound, bound)

    def lin_b(k, din, dout):
        bound = 1.0 / math.sqrt(din)
        return jax.random.uniform(k, (dout,), jnp.float32, -bound, bound)

    ones = jnp.ones((H,), jnp.float32)
    zeros = jnp.zeros((H,), jnp.float32)
    return {
        "w_embed":  lin_w(ks[0], in_dim, H).astype(dtype_w),
        "b_embed":  lin_b(ks[1], in_dim, H),
        "mask_token": jax.random.normal(ks[2], (H,), jnp.float32),
        "w_sa_qkv": lin_w(ks[3], H, 3 * H).astype(dtype_w),
        "b_sa_qkv": lin_b(ks[4], H, 3 * H),
        "w_sa_o":   lin_w(ks[5], H, H).astype(dtype_w),
        "b_sa_o":   lin_b(ks[6], H, H),
        "w_ca_q":   lin_w(ks[7], H, H).astype(dtype_w),
        "b_ca_q":   lin_b(ks[8], H, H),
        "w_ca_kv":  lin_w(ks[9], H, 2 * H).astype(dtype_w),
        "b_ca_kv":  lin_b(ks[10], H, 2 * H),
        "w_ca_o":   lin_w(ks[11], H, H).astype(dtype_w),
        "b_ca_o":   lin_b(ks[12], H, H),
        "w_ff1":    lin_w(ks[13], H, 4 * H).astype(dtype_w),
        "b_ff1":    lin_b(ks[14], H, 4 * H),
        "w_ff2":    lin_w(ks[15], 4 * H, H).astype(dtype_w),
        "b_ff2":    lin_b(ks[16], 4 * H, H),
        "ln1_g": ones, "ln1_b": zeros,
        "ln2_g": ones, "ln2_b": zeros,
        "ln3_g": ones, "ln3_b": zeros,
    }


if __name__ == "__main__":
    key = jax.random.PRNGKey(0)
    k_x, k_p = jax.random.split(key)

    batch, in_context, in_dim = 8, 8, 16
    hidden_dim, num_heads, out_context = 128, 4, 2   # lane-dense hidden

    x = jax.random.normal(k_x, (batch, in_context, in_dim), jnp.float32)
    params = init_params(k_p, in_dim, hidden_dim)

    y = cross_attention_embedder_forward(
        x, params, num_heads=num_heads, out_context=out_context)
    y = jax.block_until_ready(y)
    assert y.shape == (batch, hidden_dim, out_context)

    y_ref = _ref_forward(x, params, num_heads=num_heads,
                         out_context=out_context)
    err = float(jnp.max(jnp.abs(y - y_ref)))
    assert jnp.allclose(y, y_ref, atol=2e-2, rtol=2e-2), (
        "max abs err = %g" % err)

    print("KERNEL_OK")
</pallas_src>

<mosaic_0001>
module attributes {stable_mosaic.version = 11 : i64} {
  func.func @_kernel(%arg0: i32, %arg1: memref<32x16xf32, #tpu.memory_space<vmem>>, %arg2: memref<16x128xbf16, #tpu.memory_space<vmem>>, %arg3: memref<128x896xbf16, #tpu.memory_space<vmem>>, %arg4: memref<512x128xbf16, #tpu.memory_space<vmem>>, %arg5: memref<5x128xf32, #tpu.memory_space<vmem>>, %arg6: memref<1x768xf32, #tpu.memory_space<vmem>>, %arg7: memref<10x128xf32, #tpu.memory_space<vmem>>, %arg8: memref<8x128xf32, #tpu.memory_space<vmem>>, %arg9: memref<8x128xf32, #tpu.memory_space<vmem>>) attributes {dimension_semantics = [#tpu.dimension_semantics<parallel>], iteration_bounds = array<i64: 2>, scalar_prefetch = 0 : i64, scratch_operands = 1 : i64, tpu.core_type = #tpu.core_type<tc>, window_params = [{transform_indices = @transform_0, window_bounds = array<i64: 32, 16>}, {pipeline_mode = #tpu.pipeline_mode<synchronous>, transform_indices = @transform_1, window_bounds = array<i64: 16, 128>}, {pipeline_mode = #tpu.pipeline_mode<synchronous>, transform_indices = @transform_2, window_bounds = array<i64: 128, 896>}, {pipeline_mode = #tpu.pipeline_mode<synchronous>, transform_indices = @transform_3, window_bounds = array<i64: 512, 128>}, {pipeline_mode = #tpu.pipeline_mode<synchronous>, transform_indices = @transform_4, window_bounds = array<i64: 5, 128>}, {pipeline_mode = #tpu.pipeline_mode<synchronous>, transform_indices = @transform_5, window_bounds = array<i64: 1, 768>}, {pipeline_mode = #tpu.pipeline_mode<synchronous>, transform_indices = @transform_6, window_bounds = array<i64: 10, 128>}, {transform_indices = @transform_7, window_bounds = array<i64: 8, 128>}]} {
    %c0 = arith.constant 0 : index
    %c0_0 = arith.constant 0 : index
    %0 = vector.load %arg5[%c0, %c0_0] : memref<5x128xf32, #tpu.memory_space<vmem>>, vector<1x128xf32>
    %c1 = arith.constant 1 : index
    %c0_1 = arith.constant 0 : index
    %1 = vector.load %arg5[%c1, %c0_1] : memref<5x128xf32, #tpu.memory_space<vmem>>, vector<1x128xf32>
    %c2 = arith.constant 2 : index
    %c0_2 = arith.constant 0 : index
    %2 = vector.load %arg5[%c2, %c0_2] : memref<5x128xf32, #tpu.memory_space<vmem>>, vector<1x128xf32>
    %c3 = arith.constant 3 : index
    %c0_3 = arith.constant 0 : index
    %3 = vector.load %arg5[%c3, %c0_3] : memref<5x128xf32, #tpu.memory_space<vmem>>, vector<1x128xf32>
    %c4 = arith.constant 4 : index
    %c0_4 = arith.constant 0 : index
    %4 = vector.load %arg5[%c4, %c0_4] : memref<5x128xf32, #tpu.memory_space<vmem>>, vector<1x128xf32>
    %c0_5 = arith.constant 0 : index
    %c0_6 = arith.constant 0 : index
    %5 = vector.load %arg6[%c0_5, %c0_6] : memref<1x768xf32, #tpu.memory_space<vmem>>, vector<1x256xf32>
    %c0_7 = arith.constant 0 : index
    %c256 = arith.constant 256 : index
    %6 = vector.load %arg6[%c0_7, %c256] : memref<1x768xf32, #tpu.memory_space<vmem>>, vector<1x512xf32>
    %c0_8 = arith.constant 0 : index
    %c0_9 = arith.constant 0 : index
    %7 = vector.load %arg7[%c0_8, %c0_9] : memref<10x128xf32, #tpu.memory_space<vmem>>, vector<8x128xf32>
    %c8 = arith.constant 8 : index
    %c0_10 = arith.constant 0 : index
    %8 = vector.load %arg7[%c8, %c0_10] : memref<10x128xf32, #tpu.memory_space<vmem>>, vector<2x128xf32>
    %c0_11 = arith.constant 0 : index
    %c0_12 = arith.constant 0 : index
    %9 = vector.load %arg1[%c0_11, %c0_12] : memref<32x16xf32, #tpu.memory_space<vmem>>, vector<32x16xf32>
    %c0_13 = arith.constant 0 : index
    %c0_14 = arith.constant 0 : index
    %10 = vector.load %arg2[%c0_13, %c0_14] : memref<16x128xbf16, #tpu.memory_space<vmem>>, vector<16x128xbf16>
    %11 = arith.truncf %9 : vector<32x16xf32> to vector<32x16xbf16>
    %cst = arith.constant dense<0.000000e+00> : vector<32x128xf32>
    %12 = tpu.matmul %11, %10, %cst {dimension_numbers = #tpu.dot_dimension_numbers<[1], [0], [0], [1], [0, 0, 1, 1], [], []>} : vector<32x16xbf16>, vector<16x128xbf16>, vector<32x128xf32> -> vector<32x128xf32>
    %13 = vector.broadcast %0 : vector<1x128xf32> to vector<32x128xf32>
    %14 = arith.addf %12, %13 : vector<32x128xf32>
    %c0_15 = arith.constant 0 : index
    %c0_16 = arith.constant 0 : index
    %15 = vector.load %arg3[%c0_15, %c0_16] : memref<128x896xbf16, #tpu.memory_space<vmem>>, vector<128x256xbf16>
    %16 = arith.truncf %14 : vector<32x128xf32> to vector<32x128xbf16>
    %cst_17 = arith.constant dense<0.000000e+00> : vector<32x256xf32>
    %17 = tpu.matmul %16, %15, %cst_17 {dimension_numbers = #tpu.dot_dimension_numbers<[1], [0], [0], [1], [0, 0, 1, 1], [], []>} : vector<32x128xbf16>, vector<128x256xbf16>, vector<32x256xf32> -> vector<32x256xf32>
    %18 = vector.broadcast %5 : vector<1x256xf32> to vector<32x256xf32>
    %19 = arith.addf %17, %18 : vector<32x256xf32>
    %20 = vector.extract_strided_slice %19 {offsets = [0, 0], sizes = [8, 128], strides = [1, 1]} : vector<32x256xf32> to vector<8x128xf32>
    %21 = vector.extract_strided_slice %19 {offsets = [0, 128], sizes = [8, 128], strides = [1, 1]} : vector<32x256xf32> to vector<8x128xf32>
    %22 = vector.extract_strided_slice %8 {offsets = [0, 0], sizes = [2, 32], strides = [1, 1]} : vector<2x128xf32> to vector<2x32xf32>
    %23 = vector.extract_strided_slice %20 {offsets = [0, 0], sizes = [8, 32], strides = [1, 1]} : vector<8x128xf32> to vector<8x32xf32>
    %24 = arith.truncf %22 : vector<2x32xf32> to vector<2x32xbf16>
    %25 = arith.truncf %23 : vector<8x32xf32> to vector<8x32xbf16>
    %cst_18 = arith.constant dense<0.000000e+00> : vector<2x8xf32>
    %26 = tpu.matmul %24, %25, %cst_18 {dimension_numbers = #tpu.dot_dimension_numbers<[1], [1], [0], [0], [0, 0, 1, 0], [], []>} : vector<2x32xbf16>, vector<8x32xbf16>, vector<2x8xf32> -> vector<2x8xf32>
    %cst_19 = arith.constant dense<0xFF800000> : vector<2xf32>
    %27 = vector.multi_reduction <maximumf>, %26, %cst_19 [1] : vector<2x8xf32> to vector<2xf32>
    %28 = vector.shape_cast %27 : vector<2xf32> to vector<2x1xf32>
    %29 = vector.broadcast %28 : vector<2x1xf32> to vector<2x8xf32>
    %30 = arith.subf %26, %29 : vector<2x8xf32>
    %31 = math.exp %30 : vector<2x8xf32>
    %cst_20 = arith.constant dense<0.000000e+00> : vector<2xf32>
    %32 = vector.multi_reduction <add>, %31, %cst_20 [1] : vector<2x8xf32> to vector<2xf32>
    %33 = vector.shape_cast %32 : vector<2xf32> to vector<2x1xf32>
    %34 = tpu.reciprocal %33 {approx = true} : vector<2x1xf32> -> vector<2x1xf32>
    %35 = vector.broadcast %34 : vector<2x1xf32> to vector<2x8xf32>
    %36 = arith.mulf %31, %35 : vector<2x8xf32>
    %37 = vector.extract_strided_slice %21 {offsets = [0, 0], sizes = [8, 32], strides = [1, 1]} : vector<8x128xf32> to vector<8x32xf32>
    %38 = arith.truncf %36 : vector<2x8xf32> to vector<2x8xbf16>
    %39 = arith.truncf %37 : vector<8x32xf32> to vector<8x32xbf16>
    %cst_21 = arith.constant dense<0.000000e+00> : vector<2x32xf32>
    %40 = tpu.matmul %38, %39, %cst_21 {dimension_numbers = #tpu.dot_dimension_numbers<[1], [0], [0], [1], [0, 0, 1, 1], [], []>} : vector<2x8xbf16>, vector<8x32xbf16>, vector<2x32xf32> -> vector<2x32xf32>
    %c0_22 = arith.constant 0 : index
    %c0_23 = arith.constant 0 : index
    %41 = vector.load %arg9[%c0_22, %c0_23] : memref<8x128xf32, #tpu.memory_space<vmem>>, vector<2x32xf32>
    tpu.vector_store %arg9[%c0_22, %c0_23], %40 {strides = array<i32>} : memref<8x128xf32, #tpu.memory_space<vmem>>, vector<2x32xf32>,
    %42 = vector.extract_strided_slice %8 {offsets = [0, 32], sizes = [2, 32], strides = [1, 1]} : vector<2x128xf32> to vector<2x32xf32>
    %43 = vector.extract_strided_slice %20 {offsets = [0, 32], sizes = [8, 32], strides = [1, 1]} : vector<8x128xf32> to vector<8x32xf32>
    %44 = arith.truncf %42 : vector<2x32xf32> to vector<2x32xbf16>
    %45 = arith.truncf %43 : vector<8x32xf32> to vector<8x32xbf16>
    %cst_24 = arith.constant dense<0.000000e+00> : vector<2x8xf32>
    %46 = tpu.matmul %44, %45, %cst_24 {dimension_numbers = #tpu.dot_dimension_numbers<[1], [1], [0], [0], [0, 0, 1, 0], [], []>} : vector<2x32xbf16>, vector<8x32xbf16>, vector<2x8xf32> -> vector<2x8xf32>
    %cst_25 = arith.constant dense<0xFF800000> : vector<2xf32>
    %47 = vector.multi_reduction <maximumf>, %46, %cst_25 [1] : vector<2x8xf32> to vector<2xf32>
    %48 = vector.shape_cast %47 : vector<2xf32> to vector<2x1xf32>
    %49 = vector.broadcast %48 : vector<2x1xf32> to vector<2x8xf32>
    %50 = arith.subf %46, %49 : vector<2x8xf32>
    %51 = math.exp %50 : vector<2x8xf32>
    %cst_26 = arith.constant dense<0.000000e+00> : vector<2xf32>
    %52 = vector.multi_reduction <add>, %51, %cst_26 [1] : vector<2x8xf32> to vector<2xf32>
    %53 = vector.shape_cast %52 : vector<2xf32> to vector<2x1xf32>
    %54 = tpu.reciprocal %53 {approx = true} : vector<2x1xf32> -> vector<2x1xf32>
    %55 = vector.broadcast %54 : vector<2x1xf32> to vector<2x8xf32>
    %56 = arith.mulf %51, %55 : vector<2x8xf32>
    %57 = vector.extract_strided_slice %21 {offsets = [0, 32], sizes = [8, 32], strides = [1, 1]} : vector<8x128xf32> to vector<8x32xf32>
    %58 = arith.truncf %56 : vector<2x8xf32> to vector<2x8xbf16>
    %59 = arith.truncf %57 : vector<8x32xf32> to vector<8x32xbf16>
    %cst_27 = arith.constant dense<0.000000e+00> : vector<2x32xf32>
    %60 = tpu.matmul %58, %59, %cst_27 {dimension_numbers = #tpu.dot_dimension_numbers<[1], [0], [0], [1], [0, 0, 1, 1], [], []>} : vector<2x8xbf16>, vector<8x32xbf16>, vector<2x32xf32> -> vector<2x32xf32>
    %c0_28 = arith.constant 0 : index
    %c32 = arith.constant 32 : index
    %61 = vector.load %arg9[%c0_28, %c32] : memref<8x128xf32, #tpu.memory_space<vmem>>, vector<2x32xf32>
    tpu.vector_store %arg9[%c0_28, %c32], %60 {strides = array<i32>} : memref<8x128xf32, #tpu.memory_space<vmem>>, vector<2x32xf32>,
    %62 = vector.extract_strided_slice %8 {offsets = [0, 64], sizes = [2, 32], strides = [1, 1]} : vector<2x128xf32> to vector<2x32xf32>
    %63 = vector.extract_strided_slice %20 {offsets = [0, 64], sizes = [8, 32], strides = [1, 1]} : vector<8x128xf32> to vector<8x32xf32>
    %64 = arith.truncf %62 : vector<2x32xf32> to vector<2x32xbf16>
    %65 = arith.truncf %63 : vector<8x32xf32> to vector<8x32xbf16>
    %cst_29 = arith.constant dense<0.000000e+00> : vector<2x8xf32>
    %66 = tpu.matmul %64, %65, %cst_29 {dimension_numbers = #tpu.dot_dimension_numbers<[1], [1], [0], [0], [0, 0, 1, 0], [], []>} : vector<2x32xbf16>, vector<8x32xbf16>, vector<2x8xf32> -> vector<2x8xf32>
    %cst_30 = arith.constant dense<0xFF800000> : vector<2xf32>
    %67 = vector.multi_reduction <maximumf>, %66, %cst_30 [1] : vector<2x8xf32> to vector<2xf32>
    %68 = vector.shape_cast %67 : vector<2xf32> to vector<2x1xf32>
    %69 = vector.broadcast %68 : vector<2x1xf32> to vector<2x8xf32>
    %70 = arith.subf %66, %69 : vector<2x8xf32>
    %71 = math.exp %70 : vector<2x8xf32>
    %cst_31 = arith.constant dense<0.000000e+00> : vector<2xf32>
    %72 = vector.multi_reduction <add>, %71, %cst_31 [1] : vector<2x8xf32> to vector<2xf32>
    %73 = vector.shape_cast %72 : vector<2xf32> to vector<2x1xf32>
    %74 = tpu.reciprocal %73 {approx = true} : vector<2x1xf32> -> vector<2x1xf32>
    %75 = vector.broadcast %74 : vector<2x1xf32> to vector<2x8xf32>
    %76 = arith.mulf %71, %75 : vector<2x8xf32>
    %77 = vector.extract_strided_slice %21 {offsets = [0, 64], sizes = [8, 32], strides = [1, 1]} : vector<8x128xf32> to vector<8x32xf32>
    %78 = arith.truncf %76 : vector<2x8xf32> to vector<2x8xbf16>
    %79 = arith.truncf %77 : vector<8x32xf32> to vector<8x32xbf16>
    %cst_32 = arith.constant dense<0.000000e+00> : vector<2x32xf32>
    %80 = tpu.matmul %78, %79, %cst_32 {dimension_numbers = #tpu.dot_dimension_numbers<[1], [0], [0], [1], [0, 0, 1, 1], [], []>} : vector<2x8xbf16>, vector<8x32xbf16>, vector<2x32xf32> -> vector<2x32xf32>
    %c0_33 = arith.constant 0 : index
    %c64 = arith.constant 64 : index
    %81 = vector.load %arg9[%c0_33, %c64] : memref<8x128xf32, #tpu.memory_space<vmem>>, vector<2x32xf32>
    tpu.vector_store %arg9[%c0_33, %c64], %80 {strides = array<i32>} : memref<8x128xf32, #tpu.memory_space<vmem>>, vector<2x32xf32>,
    %82 = vector.extract_strided_slice %8 {offsets = [0, 96], sizes = [2, 32], strides = [1, 1]} : vector<2x128xf32> to vector<2x32xf32>
    %83 = vector.extract_strided_slice %20 {offsets = [0, 96], sizes = [8, 32], strides = [1, 1]} : vector<8x128xf32> to vector<8x32xf32>
    %84 = arith.truncf %82 : vector<2x32xf32> to vector<2x32xbf16>
    %85 = arith.truncf %83 : vector<8x32xf32> to vector<8x32xbf16>
    %cst_34 = arith.constant dense<0.000000e+00> : vector<2x8xf32>
    %86 = tpu.matmul %84, %85, %cst_34 {dimension_numbers = #tpu.dot_dimension_numbers<[1], [1], [0], [0], [0, 0, 1, 0], [], []>} : vector<2x32xbf16>, vector<8x32xbf16>, vector<2x8xf32> -> vector<2x8xf32>
    %cst_35 = arith.constant dense<0xFF800000> : vector<2xf32>
    %87 = vector.multi_reduction <maximumf>, %86, %cst_35 [1] : vector<2x8xf32> to vector<2xf32>
    %88 = vector.shape_cast %87 : vector<2xf32> to vector<2x1xf32>
    %89 = vector.broadcast %88 : vector<2x1xf32> to vector<2x8xf32>
    %90 = arith.subf %86, %89 : vector<2x8xf32>
    %91 = math.exp %90 : vector<2x8xf32>
    %cst_36 = arith.constant dense<0.000000e+00> : vector<2xf32>
    %92 = vector.multi_reduction <add>, %91, %cst_36 [1] : vector<2x8xf32> to vector<2xf32>
    %93 = vector.shape_cast %92 : vector<2xf32> to vector<2x1xf32>
    %94 = tpu.reciprocal %93 {approx = true} : vector<2x1xf32> -> vector<2x1xf32>
    %95 = vector.broadcast %94 : vector<2x1xf32> to vector<2x8xf32>
    %96 = arith.mulf %91, %95 : vector<2x8xf32>
    %97 = vector.extract_strided_slice %21 {offsets = [0, 96], sizes = [8, 32], strides = [1, 1]} : vector<8x128xf32> to vector<8x32xf32>
    %98 = arith.truncf %96 : vector<2x8xf32> to vector<2x8xbf16>
    %99 = arith.truncf %97 : vector<8x32xf32> to vector<8x32xbf16>
    %cst_37 = arith.constant dense<0.000000e+00> : vector<2x32xf32>
    %100 = tpu.matmul %98, %99, %cst_37 {dimension_numbers = #tpu.dot_dimension_numbers<[1], [0], [0], [1], [0, 0, 1, 1], [], []>} : vector<2x8xbf16>, vector<8x32xbf16>, vector<2x32xf32> -> vector<2x32xf32>
    %c0_38 = arith.constant 0 : index
    %c96 = arith.constant 96 : index
    %101 = vector.load %arg9[%c0_38, %c96] : memref<8x128xf32, #tpu.memory_space<vmem>>, vector<2x32xf32>
    tpu.vector_store %arg9[%c0_38, %c96], %100 {strides = array<i32>} : memref<8x128xf32, #tpu.memory_space<vmem>>, vector<2x32xf32>,
    %102 = vector.extract_strided_slice %19 {offsets = [8, 0], sizes = [8, 128], strides = [1, 1]} : vector<32x256xf32> to vector<8x128xf32>
    %103 = vector.extract_strided_slice %19 {offsets = [8, 128], sizes = [8, 128], strides = [1, 1]} : vector<32x256xf32> to vector<8x128xf32>
    %104 = vector.extract_strided_slice %8 {offsets = [0, 0], sizes = [2, 32], strides = [1, 1]} : vector<2x128xf32> to vector<2x32xf32>
    %105 = vector.extract_strided_slice %102 {offsets = [0, 0], sizes = [8, 32], strides = [1, 1]} : vector<8x128xf32> to vector<8x32xf32>
    %106 = arith.truncf %104 : vector<2x32xf32> to vector<2x32xbf16>
    %107 = arith.truncf %105 : vector<8x32xf32> to vector<8x32xbf16>
    %cst_39 = arith.constant dense<0.000000e+00> : vector<2x8xf32>
    %108 = tpu.matmul %106, %107, %cst_39 {dimension_numbers = #tpu.dot_dimension_numbers<[1], [1], [0], [0], [0, 0, 1, 0], [], []>} : vector<2x32xbf16>, vector<8x32xbf16>, vector<2x8xf32> -> vector<2x8xf32>
    %cst_40 = arith.constant dense<0xFF800000> : vector<2xf32>
    %109 = vector.multi_reduction <maximumf>, %108, %cst_40 [1] : vector<2x8xf32> to vector<2xf32>
    %110 = vector.shape_cast %109 : vector<2xf32> to vector<2x1xf32>
    %111 = vector.broadcast %110 : vector<2x1xf32> to vector<2x8xf32>
    %112 = arith.subf %108, %111 : vector<2x8xf32>
    %113 = math.exp %112 : vector<2x8xf32>
    %cst_41 = arith.constant dense<0.000000e+00> : vector<2xf32>
    %114 = vector.multi_reduction <add>, %113, %cst_41 [1] : vector<2x8xf32> to vector<2xf32>
    %115 = vector.shape_cast %114 : vector<2xf32> to vector<2x1xf32>
    %116 = tpu.reciprocal %115 {approx = true} : vector<2x1xf32> -> vector<2x1xf32>
    %117 = vector.broadcast %116 : vector<2x1xf32> to vector<2x8xf32>
    %118 = arith.mulf %113, %117 : vector<2x8xf32>
    %119 = vector.extract_strided_slice %103 {offsets = [0, 0], sizes = [8, 32], strides = [1, 1]} : vector<8x128xf32> to vector<8x32xf32>
    %120 = arith.truncf %118 : vector<2x8xf32> to vector<2x8xbf16>
    %121 = arith.truncf %119 : vector<8x32xf32> to vector<8x32xbf16>
    %cst_42 = arith.constant dense<0.000000e+00> : vector<2x32xf32>
    %122 = tpu.matmul %120, %121, %cst_42 {dimension_numbers = #tpu.dot_dimension_numbers<[1], [0], [0], [1], [0, 0, 1, 1], [], []>} : vector<2x8xbf16>, vector<8x32xbf16>, vector<2x32xf32> -> vector<2x32xf32>
    %c2_43 = arith.constant 2 : index
    %c0_44 = arith.constant 0 : index
    %123 = vector.load %arg9[%c2_43, %c0_44] : memref<8x128xf32, #tpu.memory_space<vmem>>, vector<2x32xf32>
    tpu.vector_store %arg9[%c2_43, %c0_44], %122 {strides = array<i32>} : memref<8x128xf32, #tpu.memory_space<vmem>>, vector<2x32xf32>,
    %124 = vector.extract_strided_slice %8 {offsets = [0, 32], sizes = [2, 32], strides = [1, 1]} : vector<2x128xf32> to vector<2x32xf32>
    %125 = vector.extract_strided_slice %102 {offsets = [0, 32], sizes = [8, 32], strides = [1, 1]} : vector<8x128xf32> to vector<8x32xf32>
    %126 = arith.truncf %124 : vector<2x32xf32> to vector<2x32xbf16>
    %127 = arith.truncf %125 : vector<8x32xf32> to vector<8x32xbf16>
    %cst_45 = arith.constant dense<0.000000e+00> : vector<2x8xf32>
    %128 = tpu.matmul %126, %127, %cst_45 {dimension_numbers = #tpu.dot_dimension_numbers<[1], [1], [0], [0], [0, 0, 1, 0], [], []>} : vector<2x32xbf16>, vector<8x32xbf16>, vector<2x8xf32> -> vector<2x8xf32>
    %cst_46 = arith.constant dense<0xFF800000> : vector<2xf32>
    %129 = vector.multi_reduction <maximumf>, %128, %cst_46 [1] : vector<2x8xf32> to vector<2xf32>
    %130 = vector.shape_cast %129 : vector<2xf32> to vector<2x1xf32>
    %131 = vector.broadcast %130 : vector<2x1xf32> to vector<2x8xf32>
    %132 = arith.subf %128, %131 : vector<2x8xf32>
    %133 = math.exp %132 : vector<2x8xf32>
    %cst_47 = arith.constant dense<0.000000e+00> : vector<2xf32>
    %134 = vector.multi_reduction <add>, %133, %cst_47 [1] : vector<2x8xf32> to vector<2xf32>
    %135 = vector.shape_cast %134 : vector<2xf32> to vector<2x1xf32>
    %136 = tpu.reciprocal %135 {approx = true} : vector<2x1xf32> -> vector<2x1xf32>
    %137 = vector.broadcast %136 : vector<2x1xf32> to vector<2x8xf32>
    %138 = arith.mulf %133, %137 : vector<2x8xf32>
    %139 = vector.extract_strided_slice %103 {offsets = [0, 32], sizes = [8, 32], strides = [1, 1]} : vector<8x128xf32> to vector<8x32xf32>
    %140 = arith.truncf %138 : vector<2x8xf32> to vector<2x8xbf16>
    %141 = arith.truncf %139 : vector<8x32xf32> to vector<8x32xbf16>
    %cst_48 = arith.constant dense<0.000000e+00> : vector<2x32xf32>
    %142 = tpu.matmul %140, %141, %cst_48 {dimension_numbers = #tpu.dot_dimension_numbers<[1], [0], [0], [1], [0, 0, 1, 1], [], []>} : vector<2x8xbf16>, vector<8x32xbf16>, vector<2x32xf32> -> vector<2x32xf32>
    %c2_49 = arith.constant 2 : index
    %c32_50 = arith.constant 32 : index
    %143 = vector.load %arg9[%c2_49, %c32_50] : memref<8x128xf32, #tpu.memory_space<vmem>>, vector<2x32xf32>
    tpu.vector_store %arg9[%c2_49, %c32_50], %142 {strides = array<i32>} : memref<8x128xf32, #tpu.memory_space<vmem>>, vector<2x32xf32>,
    %144 = vector.extract_strided_slice %8 {offsets = [0, 64], sizes = [2, 32], strides = [1, 1]} : vector<2x128xf32> to vector<2x32xf32>
    %145 = vector.extract_strided_slice %102 {offsets = [0, 64], sizes = [8, 32], strides = [1, 1]} : vector<8x128xf32> to vector<8x32xf32>
    %146 = arith.truncf %144 : vector<2x32xf32> to vector<2x32xbf16>
    %147 = arith.truncf %145 : vector<8x32xf32> to vector<8x32xbf16>
    %cst_51 = arith.constant dense<0.000000e+00> : vector<2x8xf32>
    %148 = tpu.matmul %146, %147, %cst_51 {dimension_numbers = #tpu.dot_dimension_numbers<[1], [1], [0], [0], [0, 0, 1, 0], [], []>} : vector<2x32xbf16>, vector<8x32xbf16>, vector<2x8xf32> -> vector<2x8xf32>
    %cst_52 = arith.constant dense<0xFF800000> : vector<2xf32>
    %149 = vector.multi_reduction <maximumf>, %148, %cst_52 [1] : vector<2x8xf32> to vector<2xf32>
    %150 = vector.shape_cast %149 : vector<2xf32> to vector<2x1xf32>
    %151 = vector.broadcast %150 : vector<2x1xf32> to vector<2x8xf32>
    %152 = arith.subf %148, %151 : vector<2x8xf32>
    %153 = math.exp %152 : vector<2x8xf32>
    %cst_53 = arith.constant dense<0.000000e+00> : vector<2xf32>
    %154 = vector.multi_reduction <add>, %153, %cst_53 [1] : vector<2x8xf32> to vector<2xf32>
    %155 = vector.shape_cast %154 : vector<2xf32> to vector<2x1xf32>
    %156 = tpu.reciprocal %155 {approx = true} : vector<2x1xf32> -> vector<2x1xf32>
    %157 = vector.broadcast %156 : vector<2x1xf32> to vector<2x8xf32>
    %158 = arith.mulf %153, %157 : vector<2x8xf32>
    %159 = vector.extract_strided_slice %103 {offsets = [0, 64], sizes = [8, 32], strides = [1, 1]} : vector<8x128xf32> to vector<8x32xf32>
    %160 = arith.truncf %158 : vector<2x8xf32> to vector<2x8xbf16>
    %161 = arith.truncf %159 : vector<8x32xf32> to vector<8x32xbf16>
    %cst_54 = arith.constant dense<0.000000e+00> : vector<2x32xf32>
    %162 = tpu.matmul %160, %161, %cst_54 {dimension_numbers = #tpu.dot_dimension_numbers<[1], [0], [0], [1], [0, 0, 1, 1], [], []>} : vector<2x8xbf16>, vector<8x32xbf16>, vector<2x32xf32> -> vector<2x32xf32>
    %c2_55 = arith.constant 2 : index
    %c64_56 = arith.constant 64 : index
    %163 = vector.load %arg9[%c2_55, %c64_56] : memref<8x128xf32, #tpu.memory_space<vmem>>, vector<2x32xf32>
    tpu.vector_store %arg9[%c2_55, %c64_56], %162 {strides = array<i32>} : memref<8x128xf32, #tpu.memory_space<vmem>>, vector<2x32xf32>,
    %164 = vector.extract_strided_slice %8 {offsets = [0, 96], sizes = [2, 32], strides = [1, 1]} : vector<2x128xf32> to vector<2x32xf32>
    %165 = vector.extract_strided_slice %102 {offsets = [0, 96], sizes = [8, 32], strides = [1, 1]} : vector<8x128xf32> to vector<8x32xf32>
    %166 = arith.truncf %164 : vector<2x32xf32> to vector<2x32xbf16>
    %167 = arith.truncf %165 : vector<8x32xf32> to vector<8x32xbf16>
    %cst_57 = arith.constant dense<0.000000e+00> : vector<2x8xf32>
    %168 = tpu.matmul %166, %167, %cst_57 {dimension_numbers = #tpu.dot_dimension_numbers<[1], [1], [0], [0], [0, 0, 1, 0], [], []>} : vector<2x32xbf16>, vector<8x32xbf16>, vector<2x8xf32> -> vector<2x8xf32>
    %cst_58 = arith.constant dense<0xFF800000> : vector<2xf32>
    %169 = vector.multi_reduction <maximumf>, %168, %cst_58 [1] : vector<2x8xf32> to vector<2xf32>
    %170 = vector.shape_cast %169 : vector<2xf32> to vector<2x1xf32>
    %171 = vector.broadcast %170 : vector<2x1xf32> to vector<2x8xf32>
    %172 = arith.subf %168, %171 : vector<2x8xf32>
    %173 = math.exp %172 : vector<2x8xf32>
    %cst_59 = arith.constant dense<0.000000e+00> : vector<2xf32>
    %174 = vector.multi_reduction <add>, %173, %cst_59 [1] : vector<2x8xf32> to vector<2xf32>
    %175 = vector.shape_cast %174 : vector<2xf32> to vector<2x1xf32>
    %176 = tpu.reciprocal %175 {approx = true} : vector<2x1xf32> -> vector<2x1xf32>
    %177 = vector.broadcast %176 : vector<2x1xf32> to vector<2x8xf32>
    %178 = arith.mulf %173, %177 : vector<2x8xf32>
    %179 = vector.extract_strided_slice %103 {offsets = [0, 96], sizes = [8, 32], strides = [1, 1]} : vector<8x128xf32> to vector<8x32xf32>
    %180 = arith.truncf %178 : vector<2x8xf32> to vector<2x8xbf16>
    %181 = arith.truncf %179 : vector<8x32xf32> to vector<8x32xbf16>
    %cst_60 = arith.constant dense<0.000000e+00> : vector<2x32xf32>
    %182 = tpu.matmul %180, %181, %cst_60 {dimension_numbers = #tpu.dot_dimension_numbers<[1], [0], [0], [1], [0, 0, 1, 1], [], []>} : vector<2x8xbf16>, vector<8x32xbf16>, vector<2x32xf32> -> vector<2x32xf32>
    %c2_61 = arith.constant 2 : index
    %c96_62 = arith.constant 96 : index
    %183 = vector.load %arg9[%c2_61, %c96_62] : memref<8x128xf32, #tpu.memory_space<vmem>>, vector<2x32xf32>
    tpu.vector_store %arg9[%c2_61, %c96_62], %182 {strides = array<i32>} : memref<8x128xf32, #tpu.memory_space<vmem>>, vector<2x32xf32>,
    %184 = vector.extract_strided_slice %19 {offsets = [16, 0], sizes = [8, 128], strides = [1, 1]} : vector<32x256xf32> to vector<8x128xf32>
    %185 = vector.extract_strided_slice %19 {offsets = [16, 128], sizes = [8, 128], strides = [1, 1]} : vector<32x256xf32> to vector<8x128xf32>
    %186 = vector.extract_strided_slice %8 {offsets = [0, 0], sizes = [2, 32], strides = [1, 1]} : vector<2x128xf32> to vector<2x32xf32>
    %187 = vector.extract_strided_slice %184 {offsets = [0, 0], sizes = [8, 32], strides = [1, 1]} : vector<8x128xf32> to vector<8x32xf32>
    %188 = arith.truncf %186 : vector<2x32xf32> to vector<2x32xbf16>
    %189 = arith.truncf %187 : vector<8x32xf32> to vector<8x32xbf16>
    %cst_63 = arith.constant dense<0.000000e+00> : vector<2x8xf32>
    %190 = tpu.matmul %188, %189, %cst_63 {dimension_numbers = #tpu.dot_dimension_numbers<[1], [1], [0], [0], [0, 0, 1, 0], [], []>} : vector<2x32xbf16>, vector<8x32xbf16>, vector<2x8xf32> -> vector<2x8xf32>
    %cst_64 = arith.constant dense<0xFF800000> : vector<2xf32>
    %191 = vector.multi_reduction <maximumf>, %190, %cst_64 [1] : vector<2x8xf32> to vector<2xf32>
    %192 = vector.shape_cast %191 : vector<2xf32> to vector<2x1xf32>
    %193 = vector.broadcast %192 : vector<2x1xf32> to vector<2x8xf32>
    %194 = arith.subf %190, %193 : vector<2x8xf32>
    %195 = math.exp %194 : vector<2x8xf32>
    %cst_65 = arith.constant dense<0.000000e+00> : vector<2xf32>
    %196 = vector.multi_reduction <add>, %195, %cst_65 [1] : vector<2x8xf32> to vector<2xf32>
    %197 = vector.shape_cast %196 : vector<2xf32> to vector<2x1xf32>
    %198 = tpu.reciprocal %197 {approx = true} : vector<2x1xf32> -> vector<2x1xf32>
    %199 = vector.broadcast %198 : vector<2x1xf32> to vector<2x8xf32>
    %200 = arith.mulf %195, %199 : vector<2x8xf32>
    %201 = vector.extract_strided_slice %185 {offsets = [0, 0], sizes = [8, 32], strides = [1, 1]} : vector<8x128xf32> to vector<8x32xf32>
    %202 = arith.truncf %200 : vector<2x8xf32> to vector<2x8xbf16>
    %203 = arith.truncf %201 : vector<8x32xf32> to vector<8x32xbf16>
    %cst_66 = arith.constant dense<0.000000e+00> : vector<2x32xf32>
    %204 = tpu.matmul %202, %203, %cst_66 {dimension_numbers = #tpu.dot_dimension_numbers<[1], [0], [0], [1], [0, 0, 1, 1], [], []>} : vector<2x8xbf16>, vector<8x32xbf16>, vector<2x32xf32> -> vector<2x32xf32>
    %c4_67 = arith.constant 4 : index
    %c0_68 = arith.constant 0 : index
    %205 = vector.load %arg9[%c4_67, %c0_68] : memref<8x128xf32, #tpu.memory_space<vmem>>, vector<2x32xf32>
    tpu.vector_store %arg9[%c4_67, %c0_68], %204 {strides = array<i32>} : memref<8x128xf32, #tpu.memory_space<vmem>>, vector<2x32xf32>,
    %206 = vector.extract_strided_slice %8 {offsets = [0, 32], sizes = [2, 32], strides = [1, 1]} : vector<2x128xf32> to vector<2x32xf32>
    %207 = vector.extract_strided_slice %184 {offsets = [0, 32], sizes = [8, 32], strides = [1, 1]} : vector<8x128xf32> to vector<8x32xf32>
    %208 = arith.truncf %206 : vector<2x32xf32> to vector<2x32xbf16>
    %209 = arith.truncf %207 : vector<8x32xf32> to vector<8x32xbf16>
    %cst_69 = arith.constant dense<0.000000e+00> : vector<2x8xf32>
    %210 = tpu.matmul %208, %209, %cst_69 {dimension_numbers = #tpu.dot_dimension_numbers<[1], [1], [0], [0], [0, 0, 1, 0], [], []>} : vector<2x32xbf16>, vector<8x32xbf16>, vector<2x8xf32> -> vector<2x8xf32>
    %cst_70 = arith.constant dense<0xFF800000> : vector<2xf32>
    %211 = vector.multi_reduction <maximumf>, %210, %cst_70 [1] : vector<2x8xf32> to vector<2xf32>
    %212 = vector.shape_cast %211 : vector<2xf32> to vector<2x1xf32>
    %213 = vector.broadcast %212 : vector<2x1xf32> to vector<2x8xf32>
    %214 = arith.subf %210, %213 : vector<2x8xf32>
    %215 = math.exp %214 : vector<2x8xf32>
    %cst_71 = arith.constant dense<0.000000e+00> : vector<2xf32>
    %216 = vector.multi_reduction <add>, %215, %cst_71 [1] : vector<2x8xf32> to vector<2xf32>
    %217 = vector.shape_cast %216 : vector<2xf32> to vector<2x1xf32>
    %218 = tpu.reciprocal %217 {approx = true} : vector<2x1xf32> -> vector<2x1xf32>
    %219 = vector.broadcast %218 : vector<2x1xf32> to vector<2x8xf32>
    %220 = arith.mulf %215, %219 : vector<2x8xf32>
    %221 = vector.extract_strided_slice %185 {offsets = [0, 32], sizes = [8, 32], strides = [1, 1]} : vector<8x128xf32> to vector<8x32xf32>
    %222 = arith.truncf %220 : vector<2x8xf32> to vector<2x8xbf16>
    %223 = arith.truncf %221 : vector<8x32xf32> to vector<8x32xbf16>
    %cst_72 = arith.constant dense<0.000000e+00> : vector<2x32xf32>
    %224 = tpu.matmul %222, %223, %cst_72 {dimension_numbers = #tpu.dot_dimension_numbers<[1], [0], [0], [1], [0, 0, 1, 1], [], []>} : vector<2x8xbf16>, vector<8x32xbf16>, vector<2x32xf32> -> vector<2x32xf32>
    %c4_73 = arith.constant 4 : index
    %c32_74 = arith.constant 32 : index
    %225 = vector.load %arg9[%c4_73, %c32_74] : memref<8x128xf32, #tpu.memory_space<vmem>>, vector<2x32xf32>
    tpu.vector_store %arg9[%c4_73, %c32_74], %224 {strides = array<i32>} : memref<8x128xf32, #tpu.memory_space<vmem>>, vector<2x32xf32>,
    %226 = vector.extract_strided_slice %8 {offsets = [0, 64], sizes = [2, 32], strides = [1, 1]} : vector<2x128xf32> to vector<2x32xf32>
    %227 = vector.extract_strided_slice %184 {offsets = [0, 64], sizes = [8, 32], strides = [1, 1]} : vector<8x128xf32> to vector<8x32xf32>
    %228 = arith.truncf %226 : vector<2x32xf32> to vector<2x32xbf16>
    %229 = arith.truncf %227 : vector<8x32xf32> to vector<8x32xbf16>
    %cst_75 = arith.constant dense<0.000000e+00> : vector<2x8xf32>
    %230 = tpu.matmul %228, %229, %cst_75 {dimension_numbers = #tpu.dot_dimension_numbers<[1], [1], [0], [0], [0, 0, 1, 0], [], []>} : vector<2x32xbf16>, vector<8x32xbf16>, vector<2x8xf32> -> vector<2x8xf32>
    %cst_76 = arith.constant dense<0xFF800000> : vector<2xf32>
    %231 = vector.multi_reduction <maximumf>, %230, %cst_76 [1] : vector<2x8xf32> to vector<2xf32>
    %232 = vector.shape_cast %231 : vector<2xf32> to vector<2x1xf32>
    %233 = vector.broadcast %232 : vector<2x1xf32> to vector<2x8xf32>
    %234 = arith.subf %230, %233 : vector<2x8xf32>
    %235 = math.exp %234 : vector<2x8xf32>
    %cst_77 = arith.constant dense<0.000000e+00> : vector<2xf32>
    %236 = vector.multi_reduction <add>, %235, %cst_77 [1] : vector<2x8xf32> to vector<2xf32>
    %237 = vector.shape_cast %236 : vector<2xf32> to vector<2x1xf32>
    %238 = tpu.reciprocal %237 {approx = true} : vector<2x1xf32> -> vector<2x1xf32>
    %239 = vector.broadcast %238 : vector<2x1xf32> to vector<2x8xf32>
    %240 = arith.mulf %235, %239 : vector<2x8xf32>
    %241 = vector.extract_strided_slice %185 {offsets = [0, 64], sizes = [8, 32], strides = [1, 1]} : vector<8x128xf32> to vector<8x32xf32>
    %242 = arith.truncf %240 : vector<2x8xf32> to vector<2x8xbf16>
    %243 = arith.truncf %241 : vector<8x32xf32> to vector<8x32xbf16>
    %cst_78 = arith.constant dense<0.000000e+00> : vector<2x32xf32>
    %244 = tpu.matmul %242, %243, %cst_78 {dimension_numbers = #tpu.dot_dimension_numbers<[1], [0], [0], [1], [0, 0, 1, 1], [], []>} : vector<2x8xbf16>, vector<8x32xbf16>, vector<2x32xf32> -> vector<2x32xf32>
    %c4_79 = arith.constant 4 : index
    %c64_80 = arith.constant 64 : index
    %245 = vector.load %arg9[%c4_79, %c64_80] : memref<8x128xf32, #tpu.memory_space<vmem>>, vector<2x32xf32>
    tpu.vector_store %arg9[%c4_79, %c64_80], %244 {strides = array<i32>} : memref<8x128xf32, #tpu.memory_space<vmem>>, vector<2x32xf32>,
    %246 = vector.extract_strided_slice %8 {offsets = [0, 96], sizes = [2, 32], strides = [1, 1]} : vector<2x128xf32> to vector<2x32xf32>
    %247 = vector.extract_strided_slice %184 {offsets = [0, 96], sizes = [8, 32], strides = [1, 1]} : vector<8x128xf32> to vector<8x32xf32>
    %248 = arith.truncf %246 : vector<2x32xf32> to vector<2x32xbf16>
    %249 = arith.truncf %247 : vector<8x32xf32> to vector<8x32xbf16>
    %cst_81 = arith.constant dense<0.000000e+00> : vector<2x8xf32>
    %250 = tpu.matmul %248, %249, %cst_81 {dimension_numbers = #tpu.dot_dimension_numbers<[1], [1], [0], [0], [0, 0, 1, 0], [], []>} : vector<2x32xbf16>, vector<8x32xbf16>, vector<2x8xf32> -> vector<2x8xf32>
    %cst_82 = arith.constant dense<0xFF800000> : vector<2xf32>
    %251 = vector.multi_reduction <maximumf>, %250, %cst_82 [1] : vector<2x8xf32> to vector<2xf32>
    %252 = vector.shape_cast %251 : vector<2xf32> to vector<2x1xf32>
    %253 = vector.broadcast %252 : vector<2x1xf32> to vector<2x8xf32>
    %254 = arith.subf %250, %253 : vector<2x8xf32>
    %255 = math.exp %254 : vector<2x8xf32>
    %cst_83 = arith.constant dense<0.000000e+00> : vector<2xf32>
    %256 = vector.multi_reduction <add>, %255, %cst_83 [1] : vector<2x8xf32> to vector<2xf32>
    %257 = vector.shape_cast %256 : vector<2xf32> to vector<2x1xf32>
    %258 = tpu.reciprocal %257 {approx = true} : vector<2x1xf32> -> vector<2x1xf32>
    %259 = vector.broadcast %258 : vector<2x1xf32> to vector<2x8xf32>
    %260 = arith.mulf %255, %259 : vector<2x8xf32>
    %261 = vector.extract_strided_slice %185 {offsets = [0, 96], sizes = [8, 32], strides = [1, 1]} : vector<8x128xf32> to vector<8x32xf32>
    %262 = arith.truncf %260 : vector<2x8xf32> to vector<2x8xbf16>
    %263 = arith.truncf %261 : vector<8x32xf32> to vector<8x32xbf16>
    %cst_84 = arith.constant dense<0.000000e+00> : vector<2x32xf32>
    %264 = tpu.matmul %262, %263, %cst_84 {dimension_numbers = #tpu.dot_dimension_numbers<[1], [0], [0], [1], [0, 0, 1, 1], [], []>} : vector<2x8xbf16>, vector<8x32xbf16>, vector<2x32xf32> -> vector<2x32xf32>
    %c4_85 = arith.constant 4 : index
    %c96_86 = arith.constant 96 : index
    %265 = vector.load %arg9[%c4_85, %c96_86] : memref<8x128xf32, #tpu.memory_space<vmem>>, vector<2x32xf32>
    tpu.vector_store %arg9[%c4_85, %c96_86], %264 {strides = array<i32>} : memref<8x128xf32, #tpu.memory_space<vmem>>, vector<2x32xf32>,
    %266 = vector.extract_strided_slice %19 {offsets = [24, 0], sizes = [8, 128], strides = [1, 1]} : vector<32x256xf32> to vector<8x128xf32>
    %267 = vector.extract_strided_slice %19 {offsets = [24, 128], sizes = [8, 128], strides = [1, 1]} : vector<32x256xf32> to vector<8x128xf32>
    %268 = vector.extract_strided_slice %8 {offsets = [0, 0], sizes = [2, 32], strides = [1, 1]} : vector<2x128xf32> to vector<2x32xf32>
    %269 = vector.extract_strided_slice %266 {offsets = [0, 0], sizes = [8, 32], strides = [1, 1]} : vector<8x128xf32> to vector<8x32xf32>
    %270 = arith.truncf %268 : vector<2x32xf32> to vector<2x32xbf16>
    %271 = arith.truncf %269 : vector<8x32xf32> to vector<8x32xbf16>
    %cst_87 = arith.constant dense<0.000000e+00> : vector<2x8xf32>
    %272 = tpu.matmul %270, %271, %cst_87 {dimension_numbers = #tpu.dot_dimension_numbers<[1], [1], [0], [0], [0, 0, 1, 0], [], []>} : vector<2x32xbf16>, vector<8x32xbf16>, vector<2x8xf32> -> vector<2x8xf32>
    %cst_88 = arith.constant dense<0xFF800000> : vector<2xf32>
    %273 = vector.multi_reduction <maximumf>, %272, %cst_88 [1] : vector<2x8xf32> to vector<2xf32>
    %274 = vector.shape_cast %273 : vector<2xf32> to vector<2x1xf32>
    %275 = vector.broadcast %274 : vector<2x1xf32> to vector<2x8xf32>
    %276 = arith.subf %272, %275 : vector<2x8xf32>
    %277 = math.exp %276 : vector<2x8xf32>
    %cst_89 = arith.constant dense<0.000000e+00> : vector<2xf32>
    %278 = vector.multi_reduction <add>, %277, %cst_89 [1] : vector<2x8xf32> to vector<2xf32>
    %279 = vector.shape_cast %278 : vector<2xf32> to vector<2x1xf32>
    %280 = tpu.reciprocal %279 {approx = true} : vector<2x1xf32> -> vector<2x1xf32>
    %281 = vector.broadcast %280 : vector<2x1xf32> to vector<2x8xf32>
    %282 = arith.mulf %277, %281 : vector<2x8xf32>
    %283 = vector.extract_strided_slice %267 {offsets = [0, 0], sizes = [8, 32], strides = [1, 1]} : vector<8x128xf32> to vector<8x32xf32>
    %284 = arith.truncf %282 : vector<2x8xf32> to vector<2x8xbf16>
    %285 = arith.truncf %283 : vector<8x32xf32> to vector<8x32xbf16>
    %cst_90 = arith.constant dense<0.000000e+00> : vector<2x32xf32>
    %286 = tpu.matmul %284, %285, %cst_90 {dimension_numbers = #tpu.dot_dimension_numbers<[1], [0], [0], [1], [0, 0, 1, 1], [], []>} : vector<2x8xbf16>, vector<8x32xbf16>, vector<2x32xf32> -> vector<2x32xf32>
    %c6 = arith.constant 6 : index
    %c0_91 = arith.constant 0 : index
    %287 = vector.load %arg9[%c6, %c0_91] : memref<8x128xf32, #tpu.memory_space<vmem>>, vector<2x32xf32>
    tpu.vector_store %arg9[%c6, %c0_91], %286 {strides = array<i32>} : memref<8x128xf32, #tpu.memory_space<vmem>>, vector<2x32xf32>,
    %288 = vector.extract_strided_slice %8 {offsets = [0, 32], sizes = [2, 32], strides = [1, 1]} : vector<2x128xf32> to vector<2x32xf32>
    %289 = vector.extract_strided_slice %266 {offsets = [0, 32], sizes = [8, 32], strides = [1, 1]} : vector<8x128xf32> to vector<8x32xf32>
    %290 = arith.truncf %288 : vector<2x32xf32> to vector<2x32xbf16>
    %291 = arith.truncf %289 : vector<8x32xf32> to vector<8x32xbf16>
    %cst_92 = arith.constant dense<0.000000e+00> : vector<2x8xf32>
    %292 = tpu.matmul %290, %291, %cst_92 {dimension_numbers = #tpu.dot_dimension_numbers<[1], [1], [0], [0], [0, 0, 1, 0], [], []>} : vector<2x32xbf16>, vector<8x32xbf16>, vector<2x8xf32> -> vector<2x8xf32>
    %cst_93 = arith.constant dense<0xFF800000> : vector<2xf32>
    %293 = vector.multi_reduction <maximumf>, %292, %cst_93 [1] : vector<2x8xf32> to vector<2xf32>
    %294 = vector.shape_cast %293 : vector<2xf32> to vector<2x1xf32>
    %295 = vector.broadcast %294 : vector<2x1xf32> to vector<2x8xf32>
    %296 = arith.subf %292, %295 : vector<2x8xf32>
    %297 = math.exp %296 : vector<2x8xf32>
    %cst_94 = arith.constant dense<0.000000e+00> : vector<2xf32>
    %298 = vector.multi_reduction <add>, %297, %cst_94 [1] : vector<2x8xf32> to vector<2xf32>
    %299 = vector.shape_cast %298 : vector<2xf32> to vector<2x1xf32>
    %300 = tpu.reciprocal %299 {approx = true} : vector<2x1xf32> -> vector<2x1xf32>
    %301 = vector.broadcast %300 : vector<2x1xf32> to vector<2x8xf32>
    %302 = arith.mulf %297, %301 : vector<2x8xf32>
    %303 = vector.extract_strided_slice %267 {offsets = [0, 32], sizes = [8, 32], strides = [1, 1]} : vector<8x128xf32> to vector<8x32xf32>
    %304 = arith.truncf %302 : vector<2x8xf32> to vector<2x8xbf16>
    %305 = arith.truncf %303 : vector<8x32xf32> to vector<8x32xbf16>
    %cst_95 = arith.constant dense<0.000000e+00> : vector<2x32xf32>
    %306 = tpu.matmul %304, %305, %cst_95 {dimension_numbers = #tpu.dot_dimension_numbers<[1], [0], [0], [1], [0, 0, 1, 1], [], []>} : vector<2x8xbf16>, vector<8x32xbf16>, vector<2x32xf32> -> vector<2x32xf32>
    %c6_96 = arith.constant 6 : index
    %c32_97 = arith.constant 32 : index
    %307 = vector.load %arg9[%c6_96, %c32_97] : memref<8x128xf32, #tpu.memory_space<vmem>>, vector<2x32xf32>
    tpu.vector_store %arg9[%c6_96, %c32_97], %306 {strides = array<i32>} : memref<8x128xf32, #tpu.memory_space<vmem>>, vector<2x32xf32>,
    %308 = vector.extract_strided_slice %8 {offsets = [0, 64], sizes = [2, 32], strides = [1, 1]} : vector<2x128xf32> to vector<2x32xf32>
    %309 = vector.extract_strided_slice %266 {offsets = [0, 64], sizes = [8, 32], strides = [1, 1]} : vector<8x128xf32> to vector<8x32xf32>
    %310 = arith.truncf %308 : vector<2x32xf32> to vector<2x32xbf16>
    %311 = arith.truncf %309 : vector<8x32xf32> to vector<8x32xbf16>
    %cst_98 = arith.constant dense<0.000000e+00> : vector<2x8xf32>
    %312 = tpu.matmul %310, %311, %cst_98 {dimension_numbers = #tpu.dot_dimension_numbers<[1], [1], [0], [0], [0, 0, 1, 0], [], []>} : vector<2x32xbf16>, vector<8x32xbf16>, vector<2x8xf32> -> vector<2x8xf32>
    %cst_99 = arith.constant dense<0xFF800000> : vector<2xf32>
    %313 = vector.multi_reduction <maximumf>, %312, %cst_99 [1] : vector<2x8xf32> to vector<2xf32>
    %314 = vector.shape_cast %313 : vector<2xf32> to vector<2x1xf32>
    %315 = vector.broadcast %314 : vector<2x1xf32> to vector<2x8xf32>
    %316 = arith.subf %312, %315 : vector<2x8xf32>
    %317 = math.exp %316 : vector<2x8xf32>
    %cst_100 = arith.constant dense<0.000000e+00> : vector<2xf32>
    %318 = vector.multi_reduction <add>, %317, %cst_100 [1] : vector<2x8xf32> to vector<2xf32>
    %319 = vector.shape_cast %318 : vector<2xf32> to vector<2x1xf32>
    %320 = tpu.reciprocal %319 {approx = true} : vector<2x1xf32> -> vector<2x1xf32>
    %321 = vector.broadcast %320 : vector<2x1xf32> to vector<2x8xf32>
    %322 = arith.mulf %317, %321 : vector<2x8xf32>
    %323 = vector.extract_strided_slice %267 {offsets = [0, 64], sizes = [8, 32], strides = [1, 1]} : vector<8x128xf32> to vector<8x32xf32>
    %324 = arith.truncf %322 : vector<2x8xf32> to vector<2x8xbf16>
    %325 = arith.truncf %323 : vector<8x32xf32> to vector<8x32xbf16>
    %cst_101 = arith.constant dense<0.000000e+00> : vector<2x32xf32>
    %326 = tpu.matmul %324, %325, %cst_101 {dimension_numbers = #tpu.dot_dimension_numbers<[1], [0], [0], [1], [0, 0, 1, 1], [], []>} : vector<2x8xbf16>, vector<8x32xbf16>, vector<2x32xf32> -> vector<2x32xf32>
    %c6_102 = arith.constant 6 : index
    %c64_103 = arith.constant 64 : index
    %327 = vector.load %arg9[%c6_102, %c64_103] : memref<8x128xf32, #tpu.memory_space<vmem>>, vector<2x32xf32>
    tpu.vector_store %arg9[%c6_102, %c64_103], %326 {strides = array<i32>} : memref<8x128xf32, #tpu.memory_space<vmem>>, vector<2x32xf32>,
    %328 = vector.extract_strided_slice %8 {offsets = [0, 96], sizes = [2, 32], strides = [1, 1]} : vector<2x128xf32> to vector<2x32xf32>
    %329 = vector.extract_strided_slice %266 {offsets = [0, 96], sizes = [8, 32], strides = [1, 1]} : vector<8x128xf32> to vector<8x32xf32>
    %330 = arith.truncf %328 : vector<2x32xf32> to vector<2x32xbf16>
    %331 = arith.truncf %329 : vector<8x32xf32> to vector<8x32xbf16>
    %cst_104 = arith.constant dense<0.000000e+00> : vector<2x8xf32>
    %332 = tpu.matmul %330, %331, %cst_104 {dimension_numbers = #tpu.dot_dimension_numbers<[1], [1], [0], [0], [0, 0, 1, 0], [], []>} : vector<2x32xbf16>, vector<8x32xbf16>, vector<2x8xf32> -> vector<2x8xf32>
    %cst_105 = arith.constant dense<0xFF800000> : vector<2xf32>
    %333 = vector.multi_reduction <maximumf>, %332, %cst_105 [1] : vector<2x8xf32> to vector<2xf32>
    %334 = vector.shape_cast %333 : vector<2xf32> to vector<2x1xf32>
    %335 = vector.broadcast %334 : vector<2x1xf32> to vector<2x8xf32>
    %336 = arith.subf %332, %335 : vector<2x8xf32>
    %337 = math.exp %336 : vector<2x8xf32>
    %cst_106 = arith.constant dense<0.000000e+00> : vector<2xf32>
    %338 = vector.multi_reduction <add>, %337, %cst_106 [1] : vector<2x8xf32> to vector<2xf32>
    %339 = vector.shape_cast %338 : vector<2xf32> to vector<2x1xf32>
    %340 = tpu.reciprocal %339 {approx = true} : vector<2x1xf32> -> vector<2x1xf32>
    %341 = vector.broadcast %340 : vector<2x1xf32> to vector<2x8xf32>
    %342 = arith.mulf %337, %341 : vector<2x8xf32>
    %343 = vector.extract_strided_slice %267 {offsets = [0, 96], sizes = [8, 32], strides = [1, 1]} : vector<8x128xf32> to vector<8x32xf32>
    %344 = arith.truncf %342 : vector<2x8xf32> to vector<2x8xbf16>
    %345 = arith.truncf %343 : vector<8x32xf32> to vector<8x32xbf16>
    %cst_107 = arith.constant dense<0.000000e+00> : vector<2x32xf32>
    %346 = tpu.matmul %344, %345, %cst_107 {dimension_numbers = #tpu.dot_dimension_numbers<[1], [0], [0], [1], [0, 0, 1, 1], [], []>} : vector<2x8xbf16>, vector<8x32xbf16>, vector<2x32xf32> -> vector<2x32xf32>
    %c6_108 = arith.constant 6 : index
    %c96_109 = arith.constant 96 : index
    %347 = vector.load %arg9[%c6_108, %c96_109] : memref<8x128xf32, #tpu.memory_space<vmem>>, vector<2x32xf32>
    tpu.vector_store %arg9[%c6_108, %c96_109], %346 {strides = array<i32>} : memref<8x128xf32, #tpu.memory_space<vmem>>, vector<2x32xf32>,
    %c0_110 = arith.constant 0 : index
    %c0_111 = arith.constant 0 : index
    %348 = vector.load %arg9[%c0_110, %c0_111] : memref<8x128xf32, #tpu.memory_space<vmem>>, vector<8x128xf32>
    %c0_112 = arith.constant 0 : index
    %c256_113 = arith.constant 256 : index
    %349 = vector.load %arg3[%c0_112, %c256_113] : memref<128x896xbf16, #tpu.memory_space<vmem>>, vector<128x128xbf16>
    %350 = arith.truncf %348 : vector<8x128xf32> to vector<8x128xbf16>
    %cst_114 = arith.constant dense<0.000000e+00> : vector<8x128xf32>
    %351 = tpu.matmul %350, %349, %cst_114 {dimension_numbers = #tpu.dot_dimension_numbers<[1], [0], [0], [1], [0, 0, 1, 1], [], []>} : vector<8x128xbf16>, vector<128x128xbf16>, vector<8x128xf32> -> vector<8x128xf32>
    %352 = arith.addf %7, %351 : vector<8x128xf32>
    %353 = vector.broadcast %3 : vector<1x128xf32> to vector<8x128xf32>
    %354 = arith.addf %352, %353 : vector<8x128xf32>
    %cst_115 = arith.constant dense<0.000000e+00> : vector<8xf32>
    %355 = vector.multi_reduction <add>, %354, %cst_115 [1] : vector<8x128xf32> to vector<8xf32>
    %356 = vector.shape_cast %355 : vector<8xf32> to vector<8x1xf32>
    %cst_116 = arith.constant 1.280000e+02 : f32
    %357 = vector.broadcast %cst_116 : f32 to vector<8x1xf32>
    %358 = arith.divf %356, %357 : vector<8x1xf32>
    %359 = vector.broadcast %358 : vector<8x1xf32> to vector<8x128xf32>
    %360 = arith.subf %354, %359 : vector<8x128xf32>
    %361 = arith.mulf %360, %360 : vector<8x128xf32>
    %cst_117 = arith.constant dense<0.000000e+00> : vector<8xf32>
    %362 = vector.multi_reduction <add>, %361, %cst_117 [1] : vector<8x128xf32> to vector<8xf32>
    %363 = vector.shape_cast %362 : vector<8xf32> to vector<8x1xf32>
    %cst_118 = arith.constant 1.280000e+02 : f32
    %364 = vector.broadcast %cst_118 : f32 to vector<8x1xf32>
    %365 = arith.divf %363, %364 : vector<8x1xf32>
    %366 = vector.broadcast %358 : vector<8x1xf32> to vector<8x128xf32>
    %367 = arith.subf %354, %366 : vector<8x128xf32>
    %cst_119 = arith.constant 9.99999974E-6 : f32
    %368 = vector.broadcast %cst_119 : f32 to vector<8x1xf32>
    %369 = arith.addf %365, %368 : vector<8x1xf32>
    %370 = math.rsqrt %369 : vector<8x1xf32>
    %371 = vector.broadcast %370 : vector<8x1xf32> to vector<8x128xf32>
    %372 = arith.mulf %367, %371 : vector<8x128xf32>
    %373 = vector.broadcast %1 : vector<1x128xf32> to vector<8x128xf32>
    %374 = arith.mulf %372, %373 : vector<8x128xf32>
    %375 = vector.broadcast %2 : vector<1x128xf32> to vector<8x128xf32>
    %376 = arith.addf %374, %375 : vector<8x128xf32>
    %c0_120 = arith.constant 0 : index
    %c384 = arith.constant 384 : index
    %377 = vector.load %arg3[%c0_120, %c384] : memref<128x896xbf16, #tpu.memory_space<vmem>>, vector<128x512xbf16>
    %378 = arith.truncf %376 : vector<8x128xf32> to vector<8x128xbf16>
    %cst_121 = arith.constant dense<0.000000e+00> : vector<8x512xf32>
    %379 = tpu.matmul %378, %377, %cst_121 {dimension_numbers = #tpu.dot_dimension_numbers<[1], [0], [0], [1], [0, 0, 1, 1], [], []>} : vector<8x128xbf16>, vector<128x512xbf16>, vector<8x512xf32> -> vector<8x512xf32>
    %380 = vector.broadcast %6 : vector<1x512xf32> to vector<8x512xf32>
    %381 = arith.addf %379, %380 : vector<8x512xf32>
    %cst_122 = arith.constant 5.000000e-01 : f32
    %382 = vector.broadcast %cst_122 : f32 to vector<8x512xf32>
    %383 = arith.mulf %382, %381 : vector<8x512xf32>
    %384 = arith.mulf %381, %381 : vector<8x512xf32>
    %385 = arith.mulf %381, %384 : vector<8x512xf32>
    %cst_123 = arith.constant 4.471500e-02 : f32
    %386 = vector.broadcast %cst_123 : f32 to vector<8x512xf32>
    %387 = arith.mulf %386, %385 : vector<8x512xf32>
    %388 = arith.addf %381, %387 : vector<8x512xf32>
    %cst_124 = arith.constant 0.797884583 : f32
    %389 = vector.broadcast %cst_124 : f32 to vector<8x512xf32>
    %390 = arith.mulf %389, %388 : vector<8x512xf32>
    %391 = math.tanh %390 : vector<8x512xf32>
    %cst_125 = arith.constant 1.000000e+00 : f32
    %392 = vector.broadcast %cst_125 : f32 to vector<8x512xf32>
    %393 = arith.addf %392, %391 : vector<8x512xf32>
    %394 = arith.mulf %383, %393 : vector<8x512xf32>
    %c0_126 = arith.constant 0 : index
    %c0_127 = arith.constant 0 : index
    %395 = vector.load %arg4[%c0_126, %c0_127] : memref<512x128xbf16, #tpu.memory_space<vmem>>, vector<512x128xbf16>
    %396 = arith.truncf %394 : vector<8x512xf32> to vector<8x512xbf16>
    %cst_128 = arith.constant dense<0.000000e+00> : vector<8x128xf32>
    %397 = tpu.matmul %396, %395, %cst_128 {dimension_numbers = #tpu.dot_dimension_numbers<[1], [0], [0], [1], [0, 0, 1, 1], [], []>} : vector<8x512xbf16>, vector<512x128xbf16>, vector<8x128xf32> -> vector<8x128xf32>
    %398 = arith.addf %354, %397 : vector<8x128xf32>
    %399 = vector.broadcast %4 : vector<1x128xf32> to vector<8x128xf32>
    %400 = arith.addf %398, %399 : vector<8x128xf32>
    %c0_129 = arith.constant 0 : index
    %c0_130 = arith.constant 0 : index
    %401 = vector.load %arg8[%c0_129, %c0_130] : memref<8x128xf32, #tpu.memory_space<vmem>>, vector<8x128xf32>
    tpu.vector_store %arg8[%c0_129, %c0_130], %400 {strides = array<i32>} : memref<8x128xf32, #tpu.memory_space<vmem>>, vector<8x128xf32>,
    return
  }
  func.func @transform_0(%arg0: i32) -> (i32, i32) {
    %c0_i32 = arith.constant 0 : i32
    %c0_i32_0 = arith.constant 0 : i32
    return %arg0, %c0_i32 : i32, i32
  }
  func.func @transform_1(%arg0: i32) -> (i32, i32) {
    %c0_i32 = arith.constant 0 : i32
    %c0_i32_0 = arith.constant 0 : i32
    %c0_i32_1 = arith.constant 0 : i32
    return %c0_i32, %c0_i32_0 : i32, i32
  }
  func.func @transform_2(%arg0: i32) -> (i32, i32) {
    %c0_i32 = arith.constant 0 : i32
    %c0_i32_0 = arith.constant 0 : i32
    %c0_i32_1 = arith.constant 0 : i32
    return %c0_i32, %c0_i32_0 : i32, i32
  }
  func.func @transform_3(%arg0: i32) -> (i32, i32) {
    %c0_i32 = arith.constant 0 : i32
    %c0_i32_0 = arith.constant 0 : i32
    %c0_i32_1 = arith.constant 0 : i32
    return %c0_i32, %c0_i32_0 : i32, i32
  }
  func.func @transform_4(%arg0: i32) -> (i32, i32) {
    %c0_i32 = arith.constant 0 : i32
    %c0_i32_0 = arith.constant 0 : i32
    %c0_i32_1 = arith.constant 0 : i32
    return %c0_i32, %c0_i32_0 : i32, i32
  }
  func.func @transform_5(%arg0: i32) -> (i32, i32) {
    %c0_i32 = arith.constant 0 : i32
    %c0_i32_0 = arith.constant 0 : i32
    %c0_i32_1 = arith.constant 0 : i32
    return %c0_i32, %c0_i32_0 : i32, i32
  }
  func.func @transform_6(%arg0: i32) -> (i32, i32) {
    %c0_i32 = arith.constant 0 : i32
    %c0_i32_0 = arith.constant 0 : i32
    %c0_i32_1 = arith.constant 0 : i32
    return %c0_i32, %c0_i32_0 : i32, i32
  }
  func.func @transform_7(%arg0: i32) -> (i32, i32) {
    %c0_i32 = arith.constant 0 : i32
    %c0_i32_0 = arith.constant 0 : i32
    return %arg0, %c0_i32 : i32, i32
  }
}

</mosaic_0001>

<llo_original>
// kernel: tpu_custom_call.1
$region0: #{tpu_custom_call.1}
  #allocation0 [shape = 'u32[]', space=smem, size = 0x4, offset = 0x4, fixed_abs, tag = 'smem constant byte address 0x4 - core index']
  #allocation1 [shape = 'u32[144,128]{1,0:T(1,128)}', space=vmem, size = 0x12000, scoped, tag = 'internal scratch']
  #allocation2 [shape = 'f32[8,128]{1,0:T(8,128)}', space=vmem, size = 0x1000, scoped, tag = 'scratch operand']
  %s0 = inlined_call_operand.vmem [shape: f32[64,16], index: 0, kind: input, shape index: {}]
  %s1 = inlined_call_operand.vmem [shape: bf16[16,128], index: 1, kind: input, shape index: {}]
  %s2 = inlined_call_operand.hbm [shape: bf16[128,896], index: 2, kind: input, shape index: {}]
  %s3 = inlined_call_operand.hbm [shape: bf16[512,128], index: 3, kind: input, shape index: {}]
  %s4 = inlined_call_operand.vmem [shape: f32[5,128], index: 4, kind: input, shape index: {}]
  %s5 = inlined_call_operand.vmem [shape: f32[1,768], index: 5, kind: input, shape index: {}]
  %s6 = inlined_call_operand.vmem [shape: f32[10,128], index: 6, kind: input, shape index: {}]
  %s7 = inlined_call_operand.hbm [shape: f32[16,128], index: 7, kind: output, shape index: {}]
  %s8 = sld [smem:[#allocation0]]
  $region69: #{tpu_custom_call.1} parent=0
    _
  %s10 = ssub.s32 1, %s8
  %s11 = scalar_select 0, %s10, %s8
  $region1: #{tpu_custom_call.1} parent=0
    #allocation3 [shape = 'u8[229376]{0}', space=vmem, size = 0x38000, scoped, tag = 'input window, operand 2, single buffered']
    #allocation4 [shape = 's32[2]{0}', space=sflag, size = 0x8, scoped, tag = 'scoped memory for tpu_custom_call.1']
    #allocation5 [shape = 's32[2]{0}', space=sflag, size = 0x8, scoped, tag = 'scoped memory for tpu_custom_call.1']
    #allocation6 [shape = 'u8[131072]{0}', space=vmem, size = 0x20000, scoped, tag = 'input window, operand 3, single buffered']
    #allocation7 [shape = 's32[1]{0}', space=sflag, size = 0x4, scoped, tag = 'scoped memory for tpu_custom_call.1']
    #allocation8 [shape = 'u8[8192]{0}', space=vmem, size = 0x2000, scoped, tag = 'output window, operand 0']
    %12 = vsyncpa [#allocation4], 0
    %13 = vsyncpa [#allocation7], 0
    %14 = vsyncpa [#allocation5], 0
    %s15 = scalar_lea.sflag [#allocation5], 1
    %16 = vsyncpa %s15, 0
    loop: start=0, step=1, limit=4
    $region2: #{tpu_custom_call.1} parent=1 // loop_pre_header
      _
    $region3: #{tpu_custom_call.1} parent=1 // loop_header
      %s18 = sphi 0, %s22
      %p19 = scmp.ge.s32.totalorder %s18, 4
      %s28 = sphi 0, %s30
      %s31 = sphi 0, %s28
      %s32 = sphi 0, %s31
      %s48 = sphi 0, %s32
      %s52 = sphi 0, %s52
      %s54 = sphi 0, %s52
      %s55 = sphi 0, %s54
      %s69 = sphi 0, %s55
      %s73 = sphi 0, %s73
      %s75 = sphi 0, %s73
      %s76 = sphi 0, %s75
      %s90 = sphi 0, %s76
      %s94 = sphi 0, %s94
      %s96 = sphi 0, %s94
      %s97 = sphi 0, %s96
      %s111 = sphi 0, %s97
      %s115 = sphi 0, %s115
      %s117 = sphi 0, %s115
      %s118 = sphi 0, %s117
      %s132 = sphi 0, %s118
      %s136 = sphi 0, %s136
      %s138 = sphi 0, %s136
      %s139 = sphi 0, %s138
      %s153 = sphi 0, %s139
      %s157 = sphi 0, %s157
      %s159 = sphi 0, %s157
      %s160 = sphi 0, %s159
      %s174 = sphi 0, %s160
      %s180 = sphi 0, %s182
      %s183 = sphi 0, %s180
      %s184 = sphi 0, %s183
      %s200 = sphi 0, %s184
    $region4: #{tpu_custom_call.1} parent=1 // loop_header_branch
      %21 = sbr.rel (%p19) target = $region8
    $region5: #{tpu_custom_call.1} parent=1 // loop_body
      %s23 = ssub.s32 %s18, 1
      %s24 = ssub.s32 %s18, 2
      %s25 = sadd.s32 %s18, 1
      %s26 = ssub.s32 %s18, %s25
      %p27 = scmp.eq.s32.totalorder %s26, 0
      %s29 = sadd.s32 %s28, 1
      %s30 = scalar_select %p27, %s28, %s29
      %p33 = pneg %p27
      %p34 = scmp.eq.s32.totalorder %s18, 1
      %p35 = por %p33, %p34
      %p36 = scmp.ne.s32.totalorder %s28, %s31
      %p37 = scmp.eq.s32.totalorder %s18, 0
      %p38 = por %p36, %p37
      %p39 = scmp.ne.s32.totalorder %s28, %s31
      %p40 = scmp.eq.s32.totalorder %s23, 1
      %p41 = por %p39, %p40
      %p42 = scmp.ne.s32.totalorder %s31, %s32
      %p43 = scmp.eq.s32.totalorder %s23, 0
      %p44 = por %p42, %p43
      %p45 = scmp.ne.s32.totalorder %s31, %s32
      %p46 = scmp.eq.s32.totalorder %s24, 1
      %p47 = por %p45, %p46
      %p49 = scmp.ne.s32.totalorder %s32, %s48
      %p50 = scmp.eq.s32.totalorder %s24, 0
      %p51 = por %p49, %p50
      %s53 = sadd.s32 %s52, 1
      %p56 = scmp.eq.s32.totalorder %s18, 1
      %p57 = scmp.ne.s32.totalorder %s52, %s54
      %p58 = scmp.eq.s32.totalorder %s18, 0
      %p59 = por %p57, %p58
      %p60 = scmp.ne.s32.totalorder %s52, %s54
      %p61 = scmp.eq.s32.totalorder %s23, 1
      %p62 = por %p60, %p61
      %p63 = scmp.ne.s32.totalorder %s54, %s55
      %p64 = scmp.eq.s32.totalorder %s23, 0
      %p65 = por %p63, %p64
      %p66 = scmp.ne.s32.totalorder %s54, %s55
      %p67 = scmp.eq.s32.totalorder %s24, 1
      %p68 = por %p66, %p67
      %p70 = scmp.ne.s32.totalorder %s55, %s69
      %p71 = scmp.eq.s32.totalorder %s24, 0
      %p72 = por %p70, %p71
      %s74 = sadd.s32 %s73, 1
      %p77 = scmp.eq.s32.totalorder %s18, 1
      %p78 = scmp.ne.s32.totalorder %s73, %s75
      %p79 = scmp.eq.s32.totalorder %s18, 0
      %p80 = por %p78, %p79
      %p81 = scmp.ne.s32.totalorder %s73, %s75
      %p82 = scmp.eq.s32.totalorder %s23, 1
      %p83 = por %p81, %p82
      %p84 = scmp.ne.s32.totalorder %s75, %s76
      %p85 = scmp.eq.s32.totalorder %s23, 0
      %p86 = por %p84, %p85
      %p87 = scmp.ne.s32.totalorder %s75, %s76
      %p88 = scmp.eq.s32.totalorder %s24, 1
      %p89 = por %p87, %p88
      %p91 = scmp.ne.s32.totalorder %s76, %s90
      %p92 = scmp.eq.s32.totalorder %s24, 0
      %p93 = por %p91, %p92
      %s95 = sadd.s32 %s94, 1
      %p98 = scmp.eq.s32.totalorder %s18, 1
      %p99 = scmp.ne.s32.totalorder %s94, %s96
      %p100 = scmp.eq.s32.totalorder %s18, 0
      %p101 = por %p99, %p100
      %p102 = scmp.ne.s32.totalorder %s94, %s96
      %p103 = scmp.eq.s32.totalorder %s23, 1
      %p104 = por %p102, %p103
      %p105 = scmp.ne.s32.totalorder %s96, %s97
      %p106 = scmp.eq.s32.totalorder %s23, 0
      %p107 = por %p105, %p106
      %p108 = scmp.ne.s32.totalorder %s96, %s97
      %p109 = scmp.eq.s32.totalorder %s24, 1
      %p110 = por %p108, %p109
      %p112 = scmp.ne.s32.totalorder %s97, %s111
      %p113 = scmp.eq.s32.totalorder %s24, 0
      %p114 = por %p112, %p113
      %s116 = sadd.s32 %s115, 1
      %p119 = scmp.eq.s32.totalorder %s18, 1
      %p120 = scmp.ne.s32.totalorder %s115, %s117
      %p121 = scmp.eq.s32.totalorder %s18, 0
      %p122 = por %p120, %p121
      %p123 = scmp.ne.s32.totalorder %s115, %s117
      %p124 = scmp.eq.s32.totalorder %s23, 1
      %p125 = por %p123, %p124
      %p126 = scmp.ne.s32.totalorder %s117, %s118
      %p127 = scmp.eq.s32.totalorder %s23, 0
      %p128 = por %p126, %p127
      %p129 = scmp.ne.s32.totalorder %s117, %s118
      %p130 = scmp.eq.s32.totalorder %s24, 1
      %p131 = por %p129, %p130
      %p133 = scmp.ne.s32.totalorder %s118, %s132
      %p134 = scmp.eq.s32.totalorder %s24, 0
      %p135 = por %p133, %p134
      %s137 = sadd.s32 %s136, 1
      %p140 = scmp.eq.s32.totalorder %s18, 1
      %p141 = scmp.ne.s32.totalorder %s136, %s138
      %p142 = scmp.eq.s32.totalorder %s18, 0
      %p143 = por %p141, %p142
      %p144 = scmp.ne.s32.totalorder %s136, %s138
      %p145 = scmp.eq.s32.totalorder %s23, 1
      %p146 = por %p144, %p145
      %p147 = scmp.ne.s32.totalorder %s138, %s139
      %p148 = scmp.eq.s32.totalorder %s23, 0
      %p149 = por %p147, %p148
      %p150 = scmp.ne.s32.totalorder %s138, %s139
      %p151 = scmp.eq.s32.totalorder %s24, 1
      %p152 = por %p150, %p151
      %p154 = scmp.ne.s32.totalorder %s139, %s153
      %p155 = scmp.eq.s32.totalorder %s24, 0
      %p156 = por %p154, %p155
      %s158 = sadd.s32 %s157, 1
      %p161 = scmp.eq.s32.totalorder %s18, 1
      %p162 = scmp.ne.s32.totalorder %s157, %s159
      %p163 = scmp.eq.s32.totalorder %s18, 0
      %p164 = por %p162, %p163
      %p165 = scmp.ne.s32.totalorder %s157, %s159
      %p166 = scmp.eq.s32.totalorder %s23, 1
      %p167 = por %p165, %p166
      %p168 = scmp.ne.s32.totalorder %s159, %s160
      %p169 = scmp.eq.s32.totalorder %s23, 0
      %p170 = por %p168, %p169
      %p171 = scmp.ne.s32.totalorder %s159, %s160
      %p172 = scmp.eq.s32.totalorder %s24, 1
      %p173 = por %p171, %p172
      %p175 = scmp.ne.s32.totalorder %s160, %s174
      %p176 = scmp.eq.s32.totalorder %s24, 0
      %p177 = por %p175, %p176
      %s178 = ssub.s32 %s18, %s25
      %p179 = scmp.eq.s32.totalorder %s178, 0
      %s181 = sadd.s32 %s180, 1
      %s182 = scalar_select %p179, %s180, %s181
      %p185 = pneg %p179
      %p186 = scmp.eq.s32.totalorder %s18, 1
      %p187 = por %p185, %p186
      %p188 = scmp.ne.s32.totalorder %s180, %s183
      %p189 = scmp.eq.s32.totalorder %s18, 0
      %p190 = por %p188, %p189
      %p191 = scmp.ne.s32.totalorder %s180, %s183
      %p192 = scmp.eq.s32.totalorder %s23, 1
      %p193 = por %p191, %p192
      %p194 = scmp.ne.s32.totalorder %s183, %s184
      %p195 = scmp.eq.s32.totalorder %s23, 0
      %p196 = por %p194, %p195
      %p197 = scmp.ne.s32.totalorder %s183, %s184
      %p198 = scmp.eq.s32.totalorder %s24, 1
      %p199 = por %p197, %p198
      %p201 = scmp.ne.s32.totalorder %s184, %s200
      %p202 = scmp.eq.s32.totalorder %s24, 0
      %p203 = por %p201, %p202
      %p204 = scmp.le.s32.totalorder 1, %s18
      %p205 = scmp.lt.s32.totalorder %s18, 3
      %p206 = pnand %p204, %p205
      %p207 = pneg %p206
      // Predicated region
      $region9: #{tpu_custom_call.1} parent=5 // pred_check
        _
      $region10: #{tpu_custom_call.1} parent=5 // pred_check_branch
        %209 = sbr.rel (%p206) target = $region12
      $region11: #{tpu_custom_call.1} parent=5 // pred_region
        %s210 = ssub.s32 %s18, 1
        // Predicated region
        $region13: #{tpu_custom_call.1} parent=11 // pred_check
          %p211 = pneg %p65
        $region14: #{tpu_custom_call.1} parent=11 // pred_check_branch
          %213 = sbr.rel (%p211) target = $region16
        $region15: #{tpu_custom_call.1} parent=11 // pred_region
          _
        $region16: #{tpu_custom_call.1} parent=11 // pred_fallthru
          _
        // Predicated region
        $region17: #{tpu_custom_call.1} parent=11 // pred_check
          %p214 = pneg %p86
        $region18: #{tpu_custom_call.1} parent=11 // pred_check_branch
          %216 = sbr.rel (%p214) target = $region20
        $region19: #{tpu_custom_call.1} parent=11 // pred_region
          %s218 = ssub.s32 7168, 7168
          %219 = vsyncadd [#allocation4], %s218
          %s220 = sshll.u32 [#allocation3], 4
          %s221 = int_to_ptr.vmem [resolvable:$true] %s220
          %226 = dma.hbm_to_vmem [thread:$0]  %s2, 7168, %s221, [#allocation4], 448, 448, 28
        $region20: #{tpu_custom_call.1} parent=11 // pred_fallthru
          _
        // Predicated region
        $region21: #{tpu_custom_call.1} parent=11 // pred_check
          %p227 = pneg %p107
        $region22: #{tpu_custom_call.1} parent=11 // pred_check_branch
          %229 = sbr.rel (%p227) target = $region24
        $region23: #{tpu_custom_call.1} parent=11 // pred_region
          %s231 = ssub.s32 4096, 4096
          %232 = vsyncadd [#allocation7], %s231
          %s233 = sshll.u32 [#allocation6], 4
          %s234 = int_to_ptr.vmem [resolvable:$true] %s233
          %239 = dma.hbm_to_vmem [thread:$0]  %s3, 4096, %s234, [#allocation7], 64, 64, 4
        $region24: #{tpu_custom_call.1} parent=11 // pred_fallthru
          _
        // Predicated region
        $region25: #{tpu_custom_call.1} parent=11 // pred_check
          %p240 = pneg %p128
        $region26: #{tpu_custom_call.1} parent=11 // pred_check_branch
          %242 = sbr.rel (%p240) target = $region28
        $region27: #{tpu_custom_call.1} parent=11 // pred_region
          _
        $region28: #{tpu_custom_call.1} parent=11 // pred_fallthru
          _
        // Predicated region
        $region29: #{tpu_custom_call.1} parent=11 // pred_check
          %p243 = pneg %p149
        $region30: #{tpu_custom_call.1} parent=11 // pred_check_branch
          %245 = sbr.rel (%p243) target = $region32
        $region31: #{tpu_custom_call.1} parent=11 // pred_region
          _
        $region32: #{tpu_custom_call.1} parent=11 // pred_fallthru
          _
        // Predicated region
        $region33: #{tpu_custom_call.1} parent=11 // pred_check
          %p246 = pneg %p170
        $region34: #{tpu_custom_call.1} parent=11 // pred_check_branch
          %248 = sbr.rel (%p246) target = $region36
        $region35: #{tpu_custom_call.1} parent=11 // pred_region
          _
        $region36: #{tpu_custom_call.1} parent=11 // pred_fallthru
          _
      $region12: #{tpu_custom_call.1} parent=5 // pred_fallthru
        _
      %p249 = scmp.lt.s32.totalorder %s18, 2
      // Predicated region
      $region37: #{tpu_custom_call.1} parent=5 // pred_check
        %p250 = pneg %p249
      $region38: #{tpu_custom_call.1} parent=5 // pred_check_branch
        %252 = sbr.rel (%p250) target = $region40
      $region39: #{tpu_custom_call.1} parent=5 // pred_region
        // Predicated region
        $region41: #{tpu_custom_call.1} parent=39 // pred_check
          %p253 = pneg %p38
        $region42: #{tpu_custom_call.1} parent=39 // pred_check_branch
          %255 = sbr.rel (%p253) target = $region44
        $region43: #{tpu_custom_call.1} parent=39 // pred_region
          %s256 = smul.u32 4, %s18
          %p257 = scmp.lt.s32.totalorder %s256, 7
          %s258 = scalar_select %p257, %s256, 7
          %s259 = smul.addr %s258, 8
          %s260 = scalar_lea.vmem %s0, %s259
          %s261 = smul.u32 4, %s18
        $region44: #{tpu_custom_call.1} parent=39 // pred_fallthru
          _
      $region40: #{tpu_custom_call.1} parent=5 // pred_fallthru
        _
      %p262 = scmp.le.s32.totalorder 1, %s18
      %p263 = scmp.lt.s32.totalorder %s18, 3
      %p264 = pnand %p262, %p263
      %p265 = pneg %p264
      // Predicated region
      $region45: #{tpu_custom_call.1} parent=5 // pred_check
        _
      $region46: #{tpu_custom_call.1} parent=5 // pred_check_branch
        %267 = sbr.rel (%p264) target = $region48
      $region47: #{tpu_custom_call.1} parent=5 // pred_region
        %s268 = ssub.s32 %s18, 1
        // Predicated region
        $region49: #{tpu_custom_call.1} parent=47 // pred_check
          %p269 = pneg %p86
        $region50: #{tpu_custom_call.1} parent=47 // pred_check_branch
          %271 = sbr.rel (%p269) target = $region52
        $region51: #{tpu_custom_call.1} parent=47 // pred_region
          %272 = dma.done [#allocation4], 7168
        $region52: #{tpu_custom_call.1} parent=47 // pred_fallthru
          _
        // Predicated region
        $region53: #{tpu_custom_call.1} parent=47 // pred_check
          %p273 = pneg %p107
        $region54: #{tpu_custom_call.1} parent=47 // pred_check_branch
          %275 = sbr.rel (%p273) target = $region56
        $region55: #{tpu_custom_call.1} parent=47 // pred_region
          %276 = dma.done [#allocation7], 4096
        $region56: #{tpu_custom_call.1} parent=47 // pred_fallthru
          _
        %s277 = smul.u32 4, %s23
        %p278 = scmp.lt.s32.totalorder %s277, 7
        %s279 = scalar_select %p278, %s277, 7
        %s280 = smul.addr %s279, 8
        %s281 = scalar_lea.vmem %s0, %s280
        %p282 = pneg %p44
        %p283 = pneg %p41
        %p284 = pneg %p65
        %p285 = pneg %p62
        %p286 = pneg %p86
        %p287 = pneg %p83
        %p288 = pneg %p107
        %p289 = pneg %p104
        %p290 = pneg %p128
        %p291 = pneg %p125
        %p292 = pneg %p149
        %p293 = pneg %p146
        %p294 = pneg %p170
        %p295 = pneg %p167
        %p296 = pneg %p196
        %p297 = pneg %p193
        %s298 = sand.u32 %s183, 1
        %s299 = scalar_lea.sflag [#allocation5], %s298
        %s300 = sand.u32 %s183, 1
        %s301 = smul.addr %s300, 8
        %s302 = scalar_lea.vmem [#allocation8], %s301
        %s303 = smul.u32 4, %s23
        %p304 = scmp.lt.s32.totalorder %s303, 7
        %s305 = scalar_select %p304, %s303, 7
        %s306 = smul.addr %s305, 8
        %s307 = scalar_lea.vmem %s0, %s306
        %s308 = smul.u32 4, %s23
        %v310 = vld [vmem:[%s4] sm:$0x1]
        %v311 = vld [vmem:[%s4 + $0x1] sm:$0x1]
        %v312 = vld [vmem:[%s4 + $0x2] sm:$0x1]
        %v313 = vld [vmem:[%s4 + $0x3] sm:$0x1]
        %v314 = vld [vmem:[%s4 + $0x4] sm:$0x1]
        %v315 = vld [vmem:[%s5] sm:$0x3]
        %v316 = vld [vmem:[%s5 + $0x2] sm:$0xf]
        %v317 = vld [vmem:[%s6] sm:$0xff]
        %v318 = vld [vmem:[%s6 + $0x8] sm:$0x3]
        %v319 = vld [vmem:[%s307] sm:$0xff]
        %v320 = vld [vmem:[%s307 + $0x8] sm:$0xff]
        %v321 = vld [vmem:[%s307 + $0x10] sm:$0xff]
        %v322 = vld [vmem:[%s307 + $0x18] sm:$0xff]
        %v323 = vld [vmem:[%s1] sm:$0xf]
        %v324 = vld [vmem:[%s1 + $0x4] sm:$0xf]
        %v325 = vpack.c.bf16 %v320, %v319
        %v326 = vpack.c.bf16 %v322, %v321
        %v327 = vlaneseq
        %v328 = vshrl.u32 %v327, 7
        %v329 = vsub.s32 0, %v328
        %v330 = vrot.slane %v310, %v329
        %v333 = vunpack.c.l.b16 %v323
        %v334 = vunpack.c.l.b16 %v324
        %v335 = vpack.c.b16 %v334, %v333
        %vm337 = vcmask 130048
        %v339 = vsel %vm337, %v325, 0
        %v342 = vsel %vm337, %v326, 0
        %344 = vmatprep.subr.bf16.mxu0 0
        %345 = vmatpush1.bf16.msra.mxu0 %v335
        %346 = vmatprep.subr.bf16.mxu0 0
        %347 = vmatpush1.bf16.msra.mxu0 0
        %348 = vmatprep.subr.bf16.mxu0 0
        %349 = vmatpush1.bf16.msra.mxu0 0
        %350 = vmatprep.subr.bf16.mxu0 0
        %351 = vmatpush1.bf16.msra.mxu0 0
        %352 = vmatprep.subr.bf16.mxu0 0
        %353 = vmatpush1.bf16.msra.mxu0 0
        %354 = vmatprep.subr.bf16.mxu0 0
        %355 = vmatpush1.bf16.msra.mxu0 0
        %356 = vmatprep.subr.bf16.mxu0 0
        %357 = vmatpush1.bf16.msra.mxu0 0
        %358 = vmatprep.subr.bf16.mxu0 0
        %359 = vmatpush1.bf16.msra.mxu0 0
        %360 = vmatprep.subr.bf16.mxu0 0
        %361 = vmatpush1.bf16.msra.mxu0 0
        %362 = vmatprep.subr.bf16.mxu0 0
        %363 = vmatpush1.bf16.msra.mxu0 0
        %364 = vmatprep.subr.bf16.mxu0 0
        %365 = vmatpush1.bf16.msra.mxu0 0
        %366 = vmatprep.subr.bf16.mxu0 0
        %367 = vmatpush1.bf16.msra.mxu0 0
        %368 = vmatprep.subr.bf16.mxu0 0
        %369 = vmatpush1.bf16.msra.mxu0 0
        %370 = vmatprep.subr.bf16.mxu0 0
        %371 = vmatpush1.bf16.msra.mxu0 0
        %372 = vmatprep.subr.bf16.mxu0 0
        %373 = vmatpush1.bf16.msra.mxu0 0
        %374 = vmatprep.subr.bf16.mxu0 0
        %375 = vmatpush1.bf16.msra.mxu0 0
        %376 = vmatprep.mubr.bf16.mxu0 0
        %377 = vmatmul.mubr.bf16.gmra.mrb[0].mxu0 %v339
        %v378 = vpop.f32.mrb[0].mxu0
        %v379 = vadd.f32 %v330, %v378
        %v380 = vpop.f32.mrb[0].mxu0
        %v381 = vpop.f32.mrb[0].mxu0
        %v382 = vadd.f32 %v330, %v381
        %v383 = vpop.f32.mrb[0].mxu0
        %384 = vmatprep.mubr.bf16.mxu0 0
        %385 = vmatmul.mubr.bf16.gmra.mrb[0].mxu0 %v342
        %v386 = vpop.f32.mrb[0].mxu0
        %v387 = vadd.f32 %v330, %v386
        %v388 = vpop.f32.mrb[0].mxu0
        %v389 = vpop.f32.mrb[0].mxu0
        %v390 = vadd.f32 %v330, %v389
        %v391 = vpop.f32.mrb[0].mxu0
        %392 = vdwg.mxu0
        %v393 = vld [vmem:[#allocation3] sm:$0xff]
        %v394 = vld [vmem:[#allocation3 + $0x1c] sm:$0xff]
        %v395 = vld [vmem:[#allocation3 + $0x38] sm:$0xff]
        %v396 = vld [vmem:[#allocation3 + $0x54] sm:$0xff]
        %v397 = vld [vmem:[#allocation3 + $0x70] sm:$0xff]
        %v398 = vld [vmem:[#allocation3 + $0x8c] sm:$0xff]
        %v399 = vld [vmem:[#allocation3 + $0xa8] sm:$0xff]
        %v400 = vld [vmem:[#allocation3 + $0xc4] sm:$0xff]
        %v401 = vld [vmem:[#allocation3 + $0xe0] sm:$0xff]
        %v402 = vld [vmem:[#allocation3 + $0xfc] sm:$0xff]
        %v403 = vld [vmem:[#allocation3 + $0x118] sm:$0xff]
        %v404 = vld [vmem:[#allocation3 + $0x134] sm:$0xff]
        %v405 = vld [vmem:[#allocation3 + $0x150] sm:$0xff]
        %v406 = vld [vmem:[#allocation3 + $0x16c] sm:$0xff]
        %v407 = vld [vmem:[#allocation3 + $0x188] sm:$0xff]
        %v408 = vld [vmem:[#allocation3 + $0x1a4] sm:$0xff]
        %v409 = vpack.c.bf16 %v382, %v379
        %v410 = vpack.c.bf16 %v390, %v387
        %v412 = vlaneseq
        %v413 = vshrl.u32 %v412, 7
        %v414 = vsub.s32 0, %v413
        %v415 = vrot.slane %v315, %v414
        %v416 = vlaneseq
        %v417 = vshrl.u32 %v416, 7
        %v418 = vsub.s32 1, %v417
        %v419 = vrot.slane %v315, %v418
        %v438 = vunpack.c.l.b16 %v393
        %v439 = vunpack.c.h.b16 %v393
        %v440 = vunpack.c.l.b16 %v394
        %v441 = vunpack.c.h.b16 %v394
        %v442 = vunpack.c.l.b16 %v395
        %v443 = vunpack.c.h.b16 %v395
        %v444 = vunpack.c.l.b16 %v396
        %v445 = vunpack.c.h.b16 %v396
        %v446 = vunpack.c.l.b16 %v397
        %v447 = vunpack.c.h.b16 %v397
        %v448 = vunpack.c.l.b16 %v398
        %v449 = vunpack.c.h.b16 %v398
        %v450 = vunpack.c.l.b16 %v399
        %v451 = vunpack.c.h.b16 %v399
        %v452 = vunpack.c.l.b16 %v400
        %v453 = vunpack.c.h.b16 %v400
        %v454 = vunpack.c.l.b16 %v401
        %v455 = vunpack.c.h.b16 %v401
        %v456 = vunpack.c.l.b16 %v402
        %v457 = vunpack.c.h.b16 %v402
        %v458 = vunpack.c.l.b16 %v403
        %v459 = vunpack.c.h.b16 %v403
        %v460 = vunpack.c.l.b16 %v404
        %v461 = vunpack.c.h.b16 %v404
        %v462 = vunpack.c.l.b16 %v405
        %v463 = vunpack.c.h.b16 %v405
        %v464 = vunpack.c.l.b16 %v406
        %v465 = vunpack.c.h.b16 %v406
        %v466 = vunpack.c.l.b16 %v407
        %v467 = vunpack.c.h.b16 %v407
        %v468 = vunpack.c.l.b16 %v408
        %v469 = vunpack.c.h.b16 %v408
        %v470 = vpack.c.b16 %v440, %v438
        %v471 = vpack.c.b16 %v441, %v439
        %v472 = vpack.c.b16 %v444, %v442
        %v473 = vpack.c.b16 %v445, %v443
        %v474 = vpack.c.b16 %v448, %v446
        %v475 = vpack.c.b16 %v449, %v447
        %v476 = vpack.c.b16 %v452, %v450
        %v477 = vpack.c.b16 %v453, %v451
        %v478 = vpack.c.b16 %v456, %v454
        %v479 = vpack.c.b16 %v457, %v455
        %v480 = vpack.c.b16 %v460, %v458
        %v481 = vpack.c.b16 %v461, %v459
        %v482 = vpack.c.b16 %v464, %v462
        %v483 = vpack.c.b16 %v465, %v463
        %v484 = vpack.c.b16 %v468, %v466
        %v485 = vpack.c.b16 %v469, %v467
        %502 = vmatprep.subr.bf16.mxu0 %v471
        %503 = vmatpush1.bf16.msra.mxu0 %v470
        %504 = vmatprep.subr.bf16.mxu0 %v473
        %505 = vmatpush1.bf16.msra.mxu0 %v472
        %506 = vmatprep.subr.bf16.mxu0 %v475
        %507 = vmatpush1.bf16.msra.mxu0 %v474
        %508 = vmatprep.subr.bf16.mxu0 %v477
        %509 = vmatpush1.bf16.msra.mxu0 %v476
        %510 = vmatprep.subr.bf16.mxu0 %v479
        %511 = vmatpush1.bf16.msra.mxu0 %v478
        %512 = vmatprep.subr.bf16.mxu0 %v481
        %513 = vmatpush1.bf16.msra.mxu0 %v480
        %514 = vmatprep.subr.bf16.mxu0 %v483
        %515 = vmatpush1.bf16.msra.mxu0 %v482
        %516 = vmatprep.subr.bf16.mxu0 %v485
        %517 = vmatpush1.bf16.msra.mxu0 %v484
        %518 = vmatprep.subr.bf16.mxu0 0
        %519 = vmatpush1.bf16.msra.mxu0 0
        %520 = vmatprep.subr.bf16.mxu0 0
        %521 = vmatpush1.bf16.msra.mxu0 0
        %522 = vmatprep.subr.bf16.mxu0 0
        %523 = vmatpush1.bf16.msra.mxu0 0
        %524 = vmatprep.subr.bf16.mxu0 0
        %525 = vmatpush1.bf16.msra.mxu0 0
        %526 = vmatprep.subr.bf16.mxu0 0
        %527 = vmatpush1.bf16.msra.mxu0 0
        %528 = vmatprep.subr.bf16.mxu0 0
        %529 = vmatpush1.bf16.msra.mxu0 0
        %530 = vmatprep.subr.bf16.mxu0 0
        %531 = vmatpush1.bf16.msra.mxu0 0
        %532 = vmatprep.subr.bf16.mxu0 0
        %533 = vmatpush1.bf16.msra.mxu0 0
        %534 = vmatprep.mubr.bf16.mxu0 0
        %535 = vmatmul.mubr.bf16.gmra.mrb[0].mxu0 %v409
        %v536 = vpop.f32.mrb[0].mxu0
        %v537 = vadd.f32 %v415, %v536
        %v538 = vpop.f32.mrb[0].mxu0
        %v539 = vadd.f32 %v419, %v538
        %v540 = vpop.f32.mrb[0].mxu0
        %v541 = vadd.f32 %v415, %v540
        %v542 = vpop.f32.mrb[0].mxu0
        %v543 = vadd.f32 %v419, %v542
        %544 = vmatprep.mubr.bf16.mxu0 0
        %545 = vmatmul.mubr.bf16.gmra.mrb[0].mxu0 %v410
        %v546 = vpop.f32.mrb[0].mxu0
        %v547 = vadd.f32 %v415, %v546
        %v548 = vpop.f32.mrb[0].mxu0
        %v549 = vadd.f32 %v419, %v548
        %v550 = vpop.f32.mrb[0].mxu0
        %v551 = vadd.f32 %v415, %v550
        %v552 = vpop.f32.mrb[0].mxu0
        %v553 = vadd.f32 %v419, %v552
        %554 = vdwg.mxu0
        %v555 = vpack.c.bf16 %v318, %v318
        %v556 = vpack.c.bf16 %v537, %v537
        %vm557 = vcmask 261120
        %v559 = vsel %vm557, %v555, 0
        %v562 = vsel %vm557, %v556, 0
        %564 = vmatprep.subr.bf16.mxu0 0
        %565 = vmatpush1.bf16.xpose.msra.mxu0 %v562
        %566 = vmatprep.subr.bf16.mxu0 0
        %567 = vmatpush1.bf16.xpose.msra.mxu0 0
        %568 = vmatprep.subr.bf16.mxu0 0
        %569 = vmatpush1.bf16.xpose.msra.mxu0 0
        %570 = vmatprep.subr.bf16.mxu0 0
        %571 = vmatpush1.bf16.xpose.msra.mxu0 0
        %572 = vmatprep.subr.bf16.mxu0 0
        %573 = vmatpush1.bf16.xpose.msra.mxu0 0
        %574 = vmatprep.subr.bf16.mxu0 0
        %575 = vmatpush1.bf16.xpose.msra.mxu0 0
        %576 = vmatprep.subr.bf16.mxu0 0
        %577 = vmatpush1.bf16.xpose.msra.mxu0 0
        %578 = vmatprep.subr.bf16.mxu0 0
        %579 = vmatpush1.bf16.xpose.msra.mxu0 0
        %580 = vmatprep.subr.bf16.mxu0 0
        %581 = vmatpush1.bf16.xpose.msra.mxu0 0
        %582 = vmatprep.subr.bf16.mxu0 0
        %583 = vmatpush1.bf16.xpose.msra.mxu0 0
        %584 = vmatprep.subr.bf16.mxu0 0
        %585 = vmatpush1.bf16.xpose.msra.mxu0 0
        %586 = vmatprep.subr.bf16.mxu0 0
        %587 = vmatpush1.bf16.xpose.msra.mxu0 0
        %588 = vmatprep.subr.bf16.mxu0 0
        %589 = vmatpush1.bf16.xpose.msra.mxu0 0
        %590 = vmatprep.subr.bf16.mxu0 0
        %591 = vmatpush1.bf16.xpose.msra.mxu0 0
        %592 = vmatprep.subr.bf16.mxu0 0
        %593 = vmatpush1.bf16.xpose.msra.mxu0 0
        %594 = vmatprep.subr.bf16.mxu0 0
        %595 = vmatpush1.bf16.xpose.msra.mxu0 0
        %596 = vmatprep.mubr.bf16.mxu0 0
        %597 = vmatmul.mubr.bf16.gmra.mrb[0].mxu0 %v559
        %v598 = vpop.f32.mrb[0].mxu0
        %v599 = vadd.f32 0.0, %v598
        %v600 = vpop.f32.mrb[0].mxu0
        %v601 = vpop.f32.mrb[0].mxu0
        %v602 = vpop.f32.mrb[0].mxu0
        %603 = vdwg.mxu0
        %vm604 = vcmask 58368
        %v605 = vsel %vm604, %v599, -inf
        %606 = vmax.xlane.f32.xlu0 %v605
        %v607 = vpop.xlane.xlu0 %606
        %v608 = vsub.f32 %v599, %v607
        %v609 = vmul.f32 %v608, 1.442695
        %v610 = vpow.pop %v609
        %v611 = vsel %vm604, %v610, 0.0
        %612 = vadd.xlane.f32.xlu0 %v611
        %v613 = vpop.xlane.xlu0 %612
        %v614 = vrcp.pop %v613
        %v615 = vmul.f32 %v610, %v614
        %v616 = vpack.c.bf16 %v615, %v615
        %v617 = vpack.c.bf16 %v539, %v539
        %vm618 = vcmask 64512
        %v620 = vsel %vm618, %v616, 0
        %vm622 = vcmask 1043456
        %v624 = vsel %vm622, %v617, 0
        %626 = vmatprep.subr.bf16.mxu0 0
        %627 = vmatpush1.bf16.msra.mxu0 %v624
        %628 = vmatprep.subr.bf16.mxu0 0
        %629 = vmatpush1.bf16.msra.mxu0 0
        %630 = vmatprep.subr.bf16.mxu0 0
        %631 = vmatpush1.bf16.msra.mxu0 0
        %632 = vmatprep.subr.bf16.mxu0 0
        %633 = vmatpush1.bf16.msra.mxu0 0
        %634 = vmatprep.subr.bf16.mxu0 0
        %635 = vmatpush1.bf16.msra.mxu0 0
        %636 = vmatprep.subr.bf16.mxu0 0
        %637 = vmatpush1.bf16.msra.mxu0 0
        %638 = vmatprep.subr.bf16.mxu0 0
        %639 = vmatpush1.bf16.msra.mxu0 0
        %640 = vmatprep.subr.bf16.mxu0 0
        %641 = vmatpush1.bf16.msra.mxu0 0
        %642 = vmatprep.subr.bf16.mxu0 0
        %643 = vmatpush1.bf16.msra.mxu0 0
        %644 = vmatprep.subr.bf16.mxu0 0
        %645 = vmatpush1.bf16.msra.mxu0 0
        %646 = vmatprep.subr.bf16.mxu0 0
        %647 = vmatpush1.bf16.msra.mxu0 0
        %648 = vmatprep.subr.bf16.mxu0 0
        %649 = vmatpush1.bf16.msra.mxu0 0
        %650 = vmatprep.subr.bf16.mxu0 0
        %651 = vmatpush1.bf16.msra.mxu0 0
        %652 = vmatprep.subr.bf16.mxu0 0
        %653 = vmatpush1.bf16.msra.mxu0 0
        %654 = vmatprep.subr.bf16.mxu0 0
        %655 = vmatpush1.bf16.msra.mxu0 0
        %656 = vmatprep.subr.bf16.mxu0 0
        %657 = vmatpush1.bf16.msra.mxu0 0
        %658 = vmatprep.mubr.bf16.mxu0 0
        %659 = vmatmul.mubr.bf16.gmra.mrb[0].mxu0 %v620
        %v660 = vpop.f32.mrb[0].mxu0
        %v661 = vadd.f32 0.0, %v660
        %v662 = vpop.f32.mrb[0].mxu0
        %v663 = vpop.f32.mrb[0].mxu0
        %v664 = vpop.f32.mrb[0].mxu0
        %665 = vdwg.mxu0
        %vm666 = vcmask 254976
        %667 = vst.msk [vmem:[#allocation2] sm:$0x3] %vm666, %v661
        %669 = vrot.lane.b32.xlu0 %v555, 96
        %v670 = vpop.permute.xlu0 %669
        %672 = vrot.lane.b32.xlu0 %v556, 96
        %v673 = vpop.permute.xlu0 %672
        %v675 = vsel %vm557, %v670, 0
        %v678 = vsel %vm557, %v673, 0
        %680 = vmatprep.subr.bf16.mxu0 0
        %681 = vmatpush1.bf16.xpose.msra.mxu0 %v678
        %682 = vmatprep.subr.bf16.mxu0 0
        %683 = vmatpush1.bf16.xpose.msra.mxu0 0
        %684 = vmatprep.subr.bf16.mxu0 0
        %685 = vmatpush1.bf16.xpose.msra.mxu0 0
        %686 = vmatprep.subr.bf16.mxu0 0
        %687 = vmatpush1.bf16.xpose.msra.mxu0 0
        %688 = vmatprep.subr.bf16.mxu0 0
        %689 = vmatpush1.bf16.xpose.msra.mxu0 0
        %690 = vmatprep.subr.bf16.mxu0 0
        %691 = vmatpush1.bf16.xpose.msra.mxu0 0
        %692 = vmatprep.subr.bf16.mxu0 0
        %693 = vmatpush1.bf16.xpose.msra.mxu0 0
        %694 = vmatprep.subr.bf16.mxu0 0
        %695 = vmatpush1.bf16.xpose.msra.mxu0 0
        %696 = vmatprep.subr.bf16.mxu0 0
        %697 = vmatpush1.bf16.xpose.msra.mxu0 0
        %698 = vmatprep.subr.bf16.mxu0 0
        %699 = vmatpush1.bf16.xpose.msra.mxu0 0
        %700 = vmatprep.subr.bf16.mxu0 0
        %701 = vmatpush1.bf16.xpose.msra.mxu0 0
        %702 = vmatprep.subr.bf16.mxu0 0
        %703 = vmatpush1.bf16.xpose.msra.mxu0 0
        %704 = vmatprep.subr.bf16.mxu0 0
        %705 = vmatpush1.bf16.xpose.msra.mxu0 0
        %706 = vmatprep.subr.bf16.mxu0 0
        %707 = vmatpush1.bf16.xpose.msra.mxu0 0
        %708 = vmatprep.subr.bf16.mxu0 0
        %709 = vmatpush1.bf16.xpose.msra.mxu0 0
        %710 = vmatprep.subr.bf16.mxu0 0
        %711 = vmatpush1.bf16.xpose.msra.mxu0 0
        %712 = vmatprep.mubr.bf16.mxu0 0
        %713 = vmatmul.mubr.bf16.gmra.mrb[0].mxu0 %v675
        %v714 = vpop.f32.mrb[0].mxu0
        %v715 = vadd.f32 0.0, %v714
        %v716 = vpop.f32.mrb[0].mxu0
        %v717 = vpop.f32.mrb[0].mxu0
        %v718 = vpop.f32.mrb[0].mxu0
        %719 = vdwg.mxu0
        %v720 = vsel %vm604, %v715, -inf
        %721 = vmax.xlane.f32.xlu0 %v720
        %v722 = vpop.xlane.xlu0 %721
        %v723 = vsub.f32 %v715, %v722
        %v724 = vmul.f32 %v723, 1.442695
        %v725 = vpow.pop %v724
        %v726 = vsel %vm604, %v725, 0.0
        %727 = vadd.xlane.f32.xlu0 %v726
        %v728 = vpop.xlane.xlu0 %727
        %v729 = vrcp.pop %v728
        %v730 = vmul.f32 %v725, %v729
        %v731 = vpack.c.bf16 %v730, %v730
        %733 = vrot.lane.b32.xlu0 %v617, 96
        %v734 = vpop.permute.xlu0 %733
        %v736 = vsel %vm618, %v731, 0
        %v739 = vsel %vm622, %v734, 0
        %741 = vmatprep.subr.bf16.mxu0 0
        %742 = vmatpush1.bf16.msra.mxu0 %v739
        %743 = vmatprep.subr.bf16.mxu0 0
        %744 = vmatpush1.bf16.msra.mxu0 0
        %745 = vmatprep.subr.bf16.mxu0 0
        %746 = vmatpush1.bf16.msra.mxu0 0
        %747 = vmatprep.subr.bf16.mxu0 0
        %748 = vmatpush1.bf16.msra.mxu0 0
        %749 = vmatprep.subr.bf16.mxu0 0
        %750 = vmatpush1.bf16.msra.mxu0 0
        %751 = vmatprep.subr.bf16.mxu0 0
        %752 = vmatpush1.bf16.msra.mxu0 0
        %753 = vmatprep.subr.bf16.mxu0 0
        %754 = vmatpush1.bf16.msra.mxu0 0
        %755 = vmatprep.subr.bf16.mxu0 0
        %756 = vmatpush1.bf16.msra.mxu0 0
        %757 = vmatprep.subr.bf16.mxu0 0
        %758 = vmatpush1.bf16.msra.mxu0 0
        %759 = vmatprep.subr.bf16.mxu0 0
        %760 = vmatpush1.bf16.msra.mxu0 0
        %761 = vmatprep.subr.bf16.mxu0 0
        %762 = vmatpush1.bf16.msra.mxu0 0
        %763 = vmatprep.subr.bf16.mxu0 0
        %764 = vmatpush1.bf16.msra.mxu0 0
        %765 = vmatprep.subr.bf16.mxu0 0
        %766 = vmatpush1.bf16.msra.mxu0 0
        %767 = vmatprep.subr.bf16.mxu0 0
        %768 = vmatpush1.bf16.msra.mxu0 0
        %769 = vmatprep.subr.bf16.mxu0 0
        %770 = vmatpush1.bf16.msra.mxu0 0
        %771 = vmatprep.subr.bf16.mxu0 0
        %772 = vmatpush1.bf16.msra.mxu0 0
        %773 = vmatprep.mubr.bf16.mxu0 0
        %774 = vmatmul.mubr.bf16.gmra.mrb[0].mxu0 %v736
        %v775 = vpop.f32.mrb[0].mxu0
        %v776 = vadd.f32 0.0, %v775
        %v777 = vpop.f32.mrb[0].mxu0
        %v778 = vpop.f32.mrb[0].mxu0
        %v779 = vpop.f32.mrb[0].mxu0
        %780 = vdwg.mxu0
        %782 = vrot.lane.b32.xlu0 %v776, 32
        %v783 = vpop.permute.xlu0 %782
        %vm785 = vcmask 517376
        %786 = vst.msk [vmem:[#allocation2] sm:$0x3] %vm785, %v783
        %787 = vrot.lane.b32.xlu0 %v555, 64
        %v788 = vpop.permute.xlu0 %787
        %789 = vrot.lane.b32.xlu0 %v556, 64
        %v790 = vpop.permute.xlu0 %789
        %v792 = vsel %vm557, %v788, 0
        %v795 = vsel %vm557, %v790, 0
        %797 = vmatprep.subr.bf16.mxu0 0
        %798 = vmatpush1.bf16.xpose.msra.mxu0 %v795
        %799 = vmatprep.subr.bf16.mxu0 0
        %800 = vmatpush1.bf16.xpose.msra.mxu0 0
        %801 = vmatprep.subr.bf16.mxu0 0
        %802 = vmatpush1.bf16.xpose.msra.mxu0 0
        %803 = vmatprep.subr.bf16.mxu0 0
        %804 = vmatpush1.bf16.xpose.msra.mxu0 0
        %805 = vmatprep.subr.bf16.mxu0 0
        %806 = vmatpush1.bf16.xpose.msra.mxu0 0
        %807 = vmatprep.subr.bf16.mxu0 0
        %808 = vmatpush1.bf16.xpose.msra.mxu0 0
        %809 = vmatprep.subr.bf16.mxu0 0
        %810 = vmatpush1.bf16.xpose.msra.mxu0 0
        %811 = vmatprep.subr.bf16.mxu0 0
        %812 = vmatpush1.bf16.xpose.msra.mxu0 0
        %813 = vmatprep.subr.bf16.mxu0 0
        %814 = vmatpush1.bf16.xpose.msra.mxu0 0
        %815 = vmatprep.subr.bf16.mxu0 0
        %816 = vmatpush1.bf16.xpose.msra.mxu0 0
        %817 = vmatprep.subr.bf16.mxu0 0
        %818 = vmatpush1.bf16.xpose.msra.mxu0 0
        %819 = vmatprep.subr.bf16.mxu0 0
        %820 = vmatpush1.bf16.xpose.msra.mxu0 0
        %821 = vmatprep.subr.bf16.mxu0 0
        %822 = vmatpush1.bf16.xpose.msra.mxu0 0
        %823 = vmatprep.subr.bf16.mxu0 0
        %824 = vmatpush1.bf16.xpose.msra.mxu0 0
        %825 = vmatprep.subr.bf16.mxu0 0
        %826 = vmatpush1.bf16.xpose.msra.mxu0 0
        %827 = vmatprep.subr.bf16.mxu0 0
        %828 = vmatpush1.bf16.xpose.msra.mxu0 0
        %829 = vmatprep.mubr.bf16.mxu0 0
        %830 = vmatmul.mubr.bf16.gmra.mrb[0].mxu0 %v792
        %v831 = vpop.f32.mrb[0].mxu0
        %v832 = vadd.f32 0.0, %v831
        %v833 = vpop.f32.mrb[0].mxu0
        %v834 = vpop.f32.mrb[0].mxu0
        %v835 = vpop.f32.mrb[0].mxu0
        %836 = vdwg.mxu0
        %v837 = vsel %vm604, %v832, -inf
        %838 = vmax.xlane.f32.xlu0 %v837
        %v839 = vpop.xlane.xlu0 %838
        %v840 = vsub.f32 %v832, %v839
        %v841 = vmul.f32 %v840, 1.442695
        %v842 = vpow.pop %v841
        %v843 = vsel %vm604, %v842, 0.0
        %844 = vadd.xlane.f32.xlu0 %v843
        %v845 = vpop.xlane.xlu0 %844
        %v846 = vrcp.pop %v845
        %v847 = vmul.f32 %v842, %v846
        %v848 = vpack.c.bf16 %v847, %v847
        %849 = vrot.lane.b32.xlu0 %v617, 64
        %v850 = vpop.permute.xlu0 %849
        %v852 = vsel %vm618, %v848, 0
        %v855 = vsel %vm622, %v850, 0
        %857 = vmatprep.subr.bf16.mxu0 0
        %858 = vmatpush1.bf16.msra.mxu0 %v855
        %859 = vmatprep.subr.bf16.mxu0 0
        %860 = vmatpush1.bf16.msra.mxu0 0
        %861 = vmatprep.subr.bf16.mxu0 0
        %862 = vmatpush1.bf16.msra.mxu0 0
        %863 = vmatprep.subr.bf16.mxu0 0
        %864 = vmatpush1.bf16.msra.mxu0 0
        %865 = vmatprep.subr.bf16.mxu0 0
        %866 = vmatpush1.bf16.msra.mxu0 0
        %867 = vmatprep.subr.bf16.mxu0 0
        %868 = vmatpush1.bf16.msra.mxu0 0
        %869 = vmatprep.subr.bf16.mxu0 0
        %870 = vmatpush1.bf16.msra.mxu0 0
        %871 = vmatprep.subr.bf16.mxu0 0
        %872 = vmatpush1.bf16.msra.mxu0 0
        %873 = vmatprep.subr.bf16.mxu0 0
        %874 = vmatpush1.bf16.msra.mxu0 0
        %875 = vmatprep.subr.bf16.mxu0 0
        %876 = vmatpush1.bf16.msra.mxu0 0
        %877 = vmatprep.subr.bf16.mxu0 0
        %878 = vmatpush1.bf16.msra.mxu0 0
        %879 = vmatprep.subr.bf16.mxu0 0
        %880 = vmatpush1.bf16.msra.mxu0 0
        %881 = vmatprep.subr.bf16.mxu0 0
        %882 = vmatpush1.bf16.msra.mxu0 0
        %883 = vmatprep.subr.bf16.mxu0 0
        %884 = vmatpush1.bf16.msra.mxu0 0
        %885 = vmatprep.subr.bf16.mxu0 0
        %886 = vmatpush1.bf16.msra.mxu0 0
        %887 = vmatprep.subr.bf16.mxu0 0
        %888 = vmatpush1.bf16.msra.mxu0 0
        %889 = vmatprep.mubr.bf16.mxu0 0
        %890 = vmatmul.mubr.bf16.gmra.mrb[0].mxu0 %v852
        %v891 = vpop.f32.mrb[0].mxu0
        %v892 = vadd.f32 0.0, %v891
        %v893 = vpop.f32.mrb[0].mxu0
        %v894 = vpop.f32.mrb[0].mxu0
        %v895 = vpop.f32.mrb[0].mxu0
        %896 = vdwg.mxu0
        %898 = vrot.lane.b32.xlu0 %v892, 64
        %v899 = vpop.permute.xlu0 %898
        %vm901 = vcmask 779776
        %902 = vst.msk [vmem:[#allocation2] sm:$0x3] %vm901, %v899
        %903 = vrot.lane.b32.xlu0 %v555, 32
        %v904 = vpop.permute.xlu0 %903
        %905 = vrot.lane.b32.xlu0 %v556, 32
        %v906 = vpop.permute.xlu0 %905
        %v908 = vsel %vm557, %v904, 0
        %v911 = vsel %vm557, %v906, 0
        %913 = vmatprep.subr.bf16.mxu0 0
        %914 = vmatpush1.bf16.xpose.msra.mxu0 %v911
        %915 = vmatprep.subr.bf16.mxu0 0
        %916 = vmatpush1.bf16.xpose.msra.mxu0 0
        %917 = vmatprep.subr.bf16.mxu0 0
        %918 = vmatpush1.bf16.xpose.msra.mxu0 0
        %919 = vmatprep.subr.bf16.mxu0 0
        %920 = vmatpush1.bf16.xpose.msra.mxu0 0
        %921 = vmatprep.subr.bf16.mxu0 0
        %922 = vmatpush1.bf16.xpose.msra.mxu0 0
        %923 = vmatprep.subr.bf16.mxu0 0
        %924 = vmatpush1.bf16.xpose.msra.mxu0 0
        %925 = vmatprep.subr.bf16.mxu0 0
        %926 = vmatpush1.bf16.xpose.msra.mxu0 0
        %927 = vmatprep.subr.bf16.mxu0 0
        %928 = vmatpush1.bf16.xpose.msra.mxu0 0
        %929 = vmatprep.subr.bf16.mxu0 0
        %930 = vmatpush1.bf16.xpose.msra.mxu0 0
        %931 = vmatprep.subr.bf16.mxu0 0
        %932 = vmatpush1.bf16.xpose.msra.mxu0 0
        %933 = vmatprep.subr.bf16.mxu0 0
        %934 = vmatpush1.bf16.xpose.msra.mxu0 0
        %935 = vmatprep.subr.bf16.mxu0 0
        %936 = vmatpush1.bf16.xpose.msra.mxu0 0
        %937 = vmatprep.subr.bf16.mxu0 0
        %938 = vmatpush1.bf16.xpose.msra.mxu0 0
        %939 = vmatprep.subr.bf16.mxu0 0
        %940 = vmatpush1.bf16.xpose.msra.mxu0 0
        %941 = vmatprep.subr.bf16.mxu0 0
        %942 = vmatpush1.bf16.xpose.msra.mxu0 0
        %943 = vmatprep.subr.bf16.mxu0 0
        %944 = vmatpush1.bf16.xpose.msra.mxu0 0
        %945 = vmatprep.mubr.bf16.mxu0 0
        %946 = vmatmul.mubr.bf16.gmra.mrb[0].mxu0 %v908
        %v947 = vpop.f32.mrb[0].mxu0
        %v948 = vadd.f32 0.0, %v947
        %v949 = vpop.f32.mrb[0].mxu0
        %v950 = vpop.f32.mrb[0].mxu0
        %v951 = vpop.f32.mrb[0].mxu0
        %952 = vdwg.mxu0
        %v953 = vsel %vm604, %v948, -inf
        %954 = vmax.xlane.f32.xlu0 %v953
        %v955 = vpop.xlane.xlu0 %954
        %v956 = vsub.f32 %v948, %v955
        %v957 = vmul.f32 %v956, 1.442695
        %v958 = vpow.pop %v957
        %v959 = vsel %vm604, %v958, 0.0
        %960 = vadd.xlane.f32.xlu0 %v959
        %v961 = vpop.xlane.xlu0 %960
        %v962 = vrcp.pop %v961
        %v963 = vmul.f32 %v958, %v962
        %v964 = vpack.c.bf16 %v963, %v963
        %965 = vrot.lane.b32.xlu0 %v617, 32
        %v966 = vpop.permute.xlu0 %965
        %v968 = vsel %vm618, %v964, 0
        %v971 = vsel %vm622, %v966, 0
        %973 = vmatprep.subr.bf16.mxu0 0
        %974 = vmatpush1.bf16.msra.mxu0 %v971
        %975 = vmatprep.subr.bf16.mxu0 0
        %976 = vmatpush1.bf16.msra.mxu0 0
        %977 = vmatprep.subr.bf16.mxu0 0
        %978 = vmatpush1.bf16.msra.mxu0 0
        %979 = vmatprep.subr.bf16.mxu0 0
        %980 = vmatpush1.bf16.msra.mxu0 0
        %981 = vmatprep.subr.bf16.mxu0 0
        %982 = vmatpush1.bf16.msra.mxu0 0
        %983 = vmatprep.subr.bf16.mxu0 0
        %984 = vmatpush1.bf16.msra.mxu0 0
        %985 = vmatprep.subr.bf16.mxu0 0
        %986 = vmatpush1.bf16.msra.mxu0 0
        %987 = vmatprep.subr.bf16.mxu0 0
        %988 = vmatpush1.bf16.msra.mxu0 0
        %989 = vmatprep.subr.bf16.mxu0 0
        %990 = vmatpush1.bf16.msra.mxu0 0
        %991 = vmatprep.subr.bf16.mxu0 0
        %992 = vmatpush1.bf16.msra.mxu0 0
        %993 = vmatprep.subr.bf16.mxu0 0
        %994 = vmatpush1.bf16.msra.mxu0 0
        %995 = vmatprep.subr.bf16.mxu0 0
        %996 = vmatpush1.bf16.msra.mxu0 0
        %997 = vmatprep.subr.bf16.mxu0 0
        %998 = vmatpush1.bf16.msra.mxu0 0
        %999 = vmatprep.subr.bf16.mxu0 0
        %1000 = vmatpush1.bf16.msra.mxu0 0
        %1001 = vmatprep.subr.bf16.mxu0 0
        %1002 = vmatpush1.bf16.msra.mxu0 0
        %1003 = vmatprep.subr.bf16.mxu0 0
        %1004 = vmatpush1.bf16.msra.mxu0 0
        %1005 = vmatprep.mubr.bf16.mxu0 0
        %1006 = vmatmul.mubr.bf16.gmra.mrb[0].mxu0 %v968
        %v1007 = vpop.f32.mrb[0].mxu0
        %v1008 = vadd.f32 0.0, %v1007
        %v1009 = vpop.f32.mrb[0].mxu0
        %v1010 = vpop.f32.mrb[0].mxu0
        %v1011 = vpop.f32.mrb[0].mxu0
        %1012 = vdwg.mxu0
        %1014 = vrot.lane.b32.xlu0 %v1008, 96
        %v1015 = vpop.permute.xlu0 %1014
        %vm1017 = vcmask 1042176
        %1018 = vst.msk [vmem:[#allocation2] sm:$0x3] %vm1017, %v1015
        %v1019 = vpack.c.bf16 %v541, %v541
        %v1021 = vsel %vm557, %v1019, 0
        %1023 = vmatprep.subr.bf16.mxu0 0
        %1024 = vmatpush1.bf16.xpose.msra.mxu0 %v1021
        %1025 = vmatprep.subr.bf16.mxu0 0
        %1026 = vmatpush1.bf16.xpose.msra.mxu0 0
        %1027 = vmatprep.subr.bf16.mxu0 0
        %1028 = vmatpush1.bf16.xpose.msra.mxu0 0
        %1029 = vmatprep.subr.bf16.mxu0 0
        %1030 = vmatpush1.bf16.xpose.msra.mxu0 0
        %1031 = vmatprep.subr.bf16.mxu0 0
        %1032 = vmatpush1.bf16.xpose.msra.mxu0 0
        %1033 = vmatprep.subr.bf16.mxu0 0
        %1034 = vmatpush1.bf16.xpose.msra.mxu0 0
        %1035 = vmatprep.subr.bf16.mxu0 0
        %1036 = vmatpush1.bf16.xpose.msra.mxu0 0
        %1037 = vmatprep.subr.bf16.mxu0 0
        %1038 = vmatpush1.bf16.xpose.msra.mxu0 0
        %1039 = vmatprep.subr.bf16.mxu0 0
        %1040 = vmatpush1.bf16.xpose.msra.mxu0 0
        %1041 = vmatprep.subr.bf16.mxu0 0
        %1042 = vmatpush1.bf16.xpose.msra.mxu0 0
        %1043 = vmatprep.subr.bf16.mxu0 0
        %1044 = vmatpush1.bf16.xpose.msra.mxu0 0
        %1045 = vmatprep.subr.bf16.mxu0 0
        %1046 = vmatpush1.bf16.xpose.msra.mxu0 0
        %1047 = vmatprep.subr.bf16.mxu0 0
        %1048 = vmatpush1.bf16.xpose.msra.mxu0 0
        %1049 = vmatprep.subr.bf16.mxu0 0
        %1050 = vmatpush1.bf16.xpose.msra.mxu0 0
        %1051 = vmatprep.subr.bf16.mxu0 0
        %1052 = vmatpush1.bf16.xpose.msra.mxu0 0
        %1053 = vmatprep.subr.bf16.mxu0 0
        %1054 = vmatpush1.bf16.xpose.msra.mxu0 0
        %1055 = vmatprep.mubr.bf16.mxu0 0
        %1056 = vmatmul.mubr.bf16.gmra.mrb[0].mxu0 %v559
        %v1057 = vpop.f32.mrb[0].mxu0
        %v1058 = vadd.f32 0.0, %v1057
        %v1059 = vpop.f32.mrb[0].mxu0
        %v1060 = vpop.f32.mrb[0].mxu0
        %v1061 = vpop.f32.mrb[0].mxu0
        %1062 = vdwg.mxu0
        %v1063 = vsel %vm604, %v1058, -inf
        %1064 = vmax.xlane.f32.xlu0 %v1063
        %v1065 = vpop.xlane.xlu0 %1064
        %v1066 = vsub.f32 %v1058, %v1065
        %v1067 = vmul.f32 %v1066, 1.442695
        %v1068 = vpow.pop %v1067
        %v1069 = vsel %vm604, %v1068, 0.0
        %1070 = vadd.xlane.f32.xlu0 %v1069
        %v1071 = vpop.xlane.xlu0 %1070
        %v1072 = vrcp.pop %v1071
        %v1073 = vmul.f32 %v1068, %v1072
        %v1074 = vpack.c.bf16 %v1073, %v1073
        %v1075 = vpack.c.bf16 %v543, %v543
        %v1077 = vsel %vm618, %v1074, 0
        %v1080 = vsel %vm622, %v1075, 0
        %1082 = vmatprep.subr.bf16.mxu0 0
        %1083 = vmatpush1.bf16.msra.mxu0 %v1080
        %1084 = vmatprep.subr.bf16.mxu0 0
        %1085 = vmatpush1.bf16.msra.mxu0 0
        %1086 = vmatprep.subr.bf16.mxu0 0
        %1087 = vmatpush1.bf16.msra.mxu0 0
        %1088 = vmatprep.subr.bf16.mxu0 0
        %1089 = vmatpush1.bf16.msra.mxu0 0
        %1090 = vmatprep.subr.bf16.mxu0 0
        %1091 = vmatpush1.bf16.msra.mxu0 0
        %1092 = vmatprep.subr.bf16.mxu0 0
        %1093 = vmatpush1.bf16.msra.mxu0 0
        %1094 = vmatprep.subr.bf16.mxu0 0
        %1095 = vmatpush1.bf16.msra.mxu0 0
        %1096 = vmatprep.subr.bf16.mxu0 0
        %1097 = vmatpush1.bf16.msra.mxu0 0
        %1098 = vmatprep.subr.bf16.mxu0 0
        %1099 = vmatpush1.bf16.msra.mxu0 0
        %1100 = vmatprep.subr.bf16.mxu0 0
        %1101 = vmatpush1.bf16.msra.mxu0 0
        %1102 = vmatprep.subr.bf16.mxu0 0
        %1103 = vmatpush1.bf16.msra.mxu0 0
        %1104 = vmatprep.subr.bf16.mxu0 0
        %1105 = vmatpush1.bf16.msra.mxu0 0
        %1106 = vmatprep.subr.bf16.mxu0 0
        %1107 = vmatpush1.bf16.msra.mxu0 0
        %1108 = vmatprep.subr.bf16.mxu0 0
        %1109 = vmatpush1.bf16.msra.mxu0 0
        %1110 = vmatprep.subr.bf16.mxu0 0
        %1111 = vmatpush1.bf16.msra.mxu0 0
        %1112 = vmatprep.subr.bf16.mxu0 0
        %1113 = vmatpush1.bf16.msra.mxu0 0
        %1114 = vmatprep.mubr.bf16.mxu0 0
        %1115 = vmatmul.mubr.bf16.gmra.mrb[0].mxu0 %v1077
        %v1116 = vpop.f32.mrb[0].mxu0
        %v1117 = vadd.f32 0.0, %v1116
        %v1118 = vpop.f32.mrb[0].mxu0
        %v1119 = vpop.f32.mrb[0].mxu0
        %v1120 = vpop.f32.mrb[0].mxu0
        %1121 = vdwg.mxu0
        %1122 = vst.msk [vmem:[#allocation2 + $0x2] sm:$0x3] %vm666, %v1117
        %1124 = vrot.lane.b32.xlu0 %v1019, 96
        %v1125 = vpop.permute.xlu0 %1124
        %v1127 = vsel %vm557, %v1125, 0
        %1129 = vmatprep.subr.bf16.mxu0 0
        %1130 = vmatpush1.bf16.xpose.msra.mxu0 %v1127
        %1131 = vmatprep.subr.bf16.mxu0 0
        %1132 = vmatpush1.bf16.xpose.msra.mxu0 0
        %1133 = vmatprep.subr.bf16.mxu0 0
        %1134 = vmatpush1.bf16.xpose.msra.mxu0 0
        %1135 = vmatprep.subr.bf16.mxu0 0
        %1136 = vmatpush1.bf16.xpose.msra.mxu0 0
        %1137 = vmatprep.subr.bf16.mxu0 0
        %1138 = vmatpush1.bf16.xpose.msra.mxu0 0
        %1139 = vmatprep.subr.bf16.mxu0 0
        %1140 = vmatpush1.bf16.xpose.msra.mxu0 0
        %1141 = vmatprep.subr.bf16.mxu0 0
        %1142 = vmatpush1.bf16.xpose.msra.mxu0 0
        %1143 = vmatprep.subr.bf16.mxu0 0
        %1144 = vmatpush1.bf16.xpose.msra.mxu0 0
        %1145 = vmatprep.subr.bf16.mxu0 0
        %1146 = vmatpush1.bf16.xpose.msra.mxu0 0
        %1147 = vmatprep.subr.bf16.mxu0 0
        %1148 = vmatpush1.bf16.xpose.msra.mxu0 0
        %1149 = vmatprep.subr.bf16.mxu0 0
        %1150 = vmatpush1.bf16.xpose.msra.mxu0 0
        %1151 = vmatprep.subr.bf16.mxu0 0
        %1152 = vmatpush1.bf16.xpose.msra.mxu0 0
        %1153 = vmatprep.subr.bf16.mxu0 0
        %1154 = vmatpush1.bf16.xpose.msra.mxu0 0
        %1155 = vmatprep.subr.bf16.mxu0 0
        %1156 = vmatpush1.bf16.xpose.msra.mxu0 0
        %1157 = vmatprep.subr.bf16.mxu0 0
        %1158 = vmatpush1.bf16.xpose.msra.mxu0 0
        %1159 = vmatprep.subr.bf16.mxu0 0
        %1160 = vmatpush1.bf16.xpose.msra.mxu0 0
        %1161 = vmatprep.mubr.bf16.mxu0 0
        %1162 = vmatmul.mubr.bf16.gmra.mrb[0].mxu0 %v675
        %v1163 = vpop.f32.mrb[0].mxu0
        %v1164 = vadd.f32 0.0, %v1163
        %v1165 = vpop.f32.mrb[0].mxu0
        %v1166 = vpop.f32.mrb[0].mxu0
        %v1167 = vpop.f32.mrb[0].mxu0
        %1168 = vdwg.mxu0
        %v1169 = vsel %vm604, %v1164, -inf
        %1170 = vmax.xlane.f32.xlu0 %v1169
        %v1171 = vpop.xlane.xlu0 %1170
        %v1172 = vsub.f32 %v1164, %v1171
        %v1173 = vmul.f32 %v1172, 1.442695
        %v1174 = vpow.pop %v1173
        %v1175 = vsel %vm604, %v1174, 0.0
        %1176 = vadd.xlane.f32.xlu0 %v1175
        %v1177 = vpop.xlane.xlu0 %1176
        %v1178 = vrcp.pop %v1177
        %v1179 = vmul.f32 %v1174, %v1178
        %v1180 = vpack.c.bf16 %v1179, %v1179
        %1182 = vrot.lane.b32.xlu0 %v1075, 96
        %v1183 = vpop.permute.xlu0 %1182
        %v1185 = vsel %vm618, %v1180, 0
        %v1188 = vsel %vm622, %v1183, 0
        %1190 = vmatprep.subr.bf16.mxu0 0
        %1191 = vmatpush1.bf16.msra.mxu0 %v1188
        %1192 = vmatprep.subr.bf16.mxu0 0
        %1193 = vmatpush1.bf16.msra.mxu0 0
        %1194 = vmatprep.subr.bf16.mxu0 0
        %1195 = vmatpush1.bf16.msra.mxu0 0
        %1196 = vmatprep.subr.bf16.mxu0 0
        %1197 = vmatpush1.bf16.msra.mxu0 0
        %1198 = vmatprep.subr.bf16.mxu0 0
        %1199 = vmatpush1.bf16.msra.mxu0 0
        %1200 = vmatprep.subr.bf16.mxu0 0
        %1201 = vmatpush1.bf16.msra.mxu0 0
        %1202 = vmatprep.subr.bf16.mxu0 0
        %1203 = vmatpush1.bf16.msra.mxu0 0
        %1204 = vmatprep.subr.bf16.mxu0 0
        %1205 = vmatpush1.bf16.msra.mxu0 0
        %1206 = vmatprep.subr.bf16.mxu0 0
        %1207 = vmatpush1.bf16.msra.mxu0 0
        %1208 = vmatprep.subr.bf16.mxu0 0
        %1209 = vmatpush1.bf16.msra.mxu0 0
        %1210 = vmatprep.subr.bf16.mxu0 0
        %1211 = vmatpush1.bf16.msra.mxu0 0
        %1212 = vmatprep.subr.bf16.mxu0 0
        %1213 = vmatpush1.bf16.msra.mxu0 0
        %1214 = vmatprep.subr.bf16.mxu0 0
        %1215 = vmatpush1.bf16.msra.mxu0 0
        %1216 = vmatprep.subr.bf16.mxu0 0
        %1217 = vmatpush1.bf16.msra.mxu0 0
        %1218 = vmatprep.subr.bf16.mxu0 0
        %1219 = vmatpush1.bf16.msra.mxu0 0
        %1220 = vmatprep.subr.bf16.mxu0 0
        %1221 = vmatpush1.bf16.msra.mxu0 0
        %1222 = vmatprep.mubr.bf16.mxu0 0
        %1223 = vmatmul.mubr.bf16.gmra.mrb[0].mxu0 %v1185
        %v1224 = vpop.f32.mrb[0].mxu0
        %v1225 = vadd.f32 0.0, %v1224
        %v1226 = vpop.f32.mrb[0].mxu0
        %v1227 = vpop.f32.mrb[0].mxu0
        %v1228 = vpop.f32.mrb[0].mxu0
        %1229 = vdwg.mxu0
        %1231 = vrot.lane.b32.xlu0 %v1225, 32
        %v1232 = vpop.permute.xlu0 %1231
        %1234 = vst.msk [vmem:[#allocation2 + $0x2] sm:$0x3] %vm785, %v1232
        %1235 = vrot.lane.b32.xlu0 %v1019, 64
        %v1236 = vpop.permute.xlu0 %1235
        %v1238 = vsel %vm557, %v1236, 0
        %1240 = vmatprep.subr.bf16.mxu0 0
        %1241 = vmatpush1.bf16.xpose.msra.mxu0 %v1238
        %1242 = vmatprep.subr.bf16.mxu0 0
        %1243 = vmatpush1.bf16.xpose.msra.mxu0 0
        %1244 = vmatprep.subr.bf16.mxu0 0
        %1245 = vmatpush1.bf16.xpose.msra.mxu0 0
        %1246 = vmatprep.subr.bf16.mxu0 0
        %1247 = vmatpush1.bf16.xpose.msra.mxu0 0
        %1248 = vmatprep.subr.bf16.mxu0 0
        %1249 = vmatpush1.bf16.xpose.msra.mxu0 0
        %1250 = vmatprep.subr.bf16.mxu0 0
        %1251 = vmatpush1.bf16.xpose.msra.mxu0 0
        %1252 = vmatprep.subr.bf16.mxu0 0
        %1253 = vmatpush1.bf16.xpose.msra.mxu0 0
        %1254 = vmatprep.subr.bf16.mxu0 0
        %1255 = vmatpush1.bf16.xpose.msra.mxu0 0
        %1256 = vmatprep.subr.bf16.mxu0 0
        %1257 = vmatpush1.bf16.xpose.msra.mxu0 0
        %1258 = vmatprep.subr.bf16.mxu0 0
        %1259 = vmatpush1.bf16.xpose.msra.mxu0 0
        %1260 = vmatprep.subr.bf16.mxu0 0
        %1261 = vmatpush1.bf16.xpose.msra.mxu0 0
        %1262 = vmatprep.subr.bf16.mxu0 0
        %1263 = vmatpush1.bf16.xpose.msra.mxu0 0
        %1264 = vmatprep.subr.bf16.mxu0 0
        %1265 = vmatpush1.bf16.xpose.msra.mxu0 0
        %1266 = vmatprep.subr.bf16.mxu0 0
        %1267 = vmatpush1.bf16.xpose.msra.mxu0 0
        %1268 = vmatprep.subr.bf16.mxu0 0
        %1269 = vmatpush1.bf16.xpose.msra.mxu0 0
        %1270 = vmatprep.subr.bf16.mxu0 0
        %1271 = vmatpush1.bf16.xpose.msra.mxu0 0
        %1272 = vmatprep.mubr.bf16.mxu0 0
        %1273 = vmatmul.mubr.bf16.gmra.mrb[0].mxu0 %v792
        %v1274 = vpop.f32.mrb[0].mxu0
        %v1275 = vadd.f32 0.0, %v1274
        %v1276 = vpop.f32.mrb[0].mxu0
        %v1277 = vpop.f32.mrb[0].mxu0
        %v1278 = vpop.f32.mrb[0].mxu0
        %1279 = vdwg.mxu0
        %v1280 = vsel %vm604, %v1275, -inf
        %1281 = vmax.xlane.f32.xlu0 %v1280
        %v1282 = vpop.xlane.xlu0 %1281
        %v1283 = vsub.f32 %v1275, %v1282
        %v1284 = vmul.f32 %v1283, 1.442695
        %v1285 = vpow.pop %v1284
        %v1286 = vsel %vm604, %v1285, 0.0
        %1287 = vadd.xlane.f32.xlu0 %v1286
        %v1288 = vpop.xlane.xlu0 %1287
        %v1289 = vrcp.pop %v1288
        %v1290 = vmul.f32 %v1285, %v1289
        %v1291 = vpack.c.bf16 %v1290, %v1290
        %1292 = vrot.lane.b32.xlu0 %v1075, 64
        %v1293 = vpop.permute.xlu0 %1292
        %v1295 = vsel %vm618, %v1291, 0
        %v1298 = vsel %vm622, %v1293, 0
        %1300 = vmatprep.subr.bf16.mxu0 0
        %1301 = vmatpush1.bf16.msra.mxu0 %v1298
        %1302 = vmatprep.subr.bf16.mxu0 0
        %1303 = vmatpush1.bf16.msra.mxu0 0
        %1304 = vmatprep.subr.bf16.mxu0 0
        %1305 = vmatpush1.bf16.msra.mxu0 0
        %1306 = vmatprep.subr.bf16.mxu0 0
        %1307 = vmatpush1.bf16.msra.mxu0 0
        %1308 = vmatprep.subr.bf16.mxu0 0
        %1309 = vmatpush1.bf16.msra.mxu0 0
        %1310 = vmatprep.subr.bf16.mxu0 0
        %1311 = vmatpush1.bf16.msra.mxu0 0
        %1312 = vmatprep.subr.bf16.mxu0 0
        %1313 = vmatpush1.bf16.msra.mxu0 0
        %1314 = vmatprep.subr.bf16.mxu0 0
        %1315 = vmatpush1.bf16.msra.mxu0 0
        %1316 = vmatprep.subr.bf16.mxu0 0
        %1317 = vmatpush1.bf16.msra.mxu0 0
        %1318 = vmatprep.subr.bf16.mxu0 0
        %1319 = vmatpush1.bf16.msra.mxu0 0
        %1320 = vmatprep.subr.bf16.mxu0 0
        %1321 = vmatpush1.bf16.msra.mxu0 0
        %1322 = vmatprep.subr.bf16.mxu0 0
        %1323 = vmatpush1.bf16.msra.mxu0 0
        %1324 = vmatprep.subr.bf16.mxu0 0
        %1325 = vmatpush1.bf16.msra.mxu0 0
        %1326 = vmatprep.subr.bf16.mxu0 0
        %1327 = vmatpush1.bf16.msra.mxu0 0
        %1328 = vmatprep.subr.bf16.mxu0 0
        %1329 = vmatpush1.bf16.msra.mxu0 0
        %1330 = vmatprep.subr.bf16.mxu0 0
        %1331 = vmatpush1.bf16.msra.mxu0 0
        %1332 = vmatprep.mubr.bf16.mxu0 0
        %1333 = vmatmul.mubr.bf16.gmra.mrb[0].mxu0 %v1295
        %v1334 = vpop.f32.mrb[0].mxu0
        %v1335 = vadd.f32 0.0, %v1334
        %v1336 = vpop.f32.mrb[0].mxu0
        %v1337 = vpop.f32.mrb[0].mxu0
        %v1338 = vpop.f32.mrb[0].mxu0
        %1339 = vdwg.mxu0
        %1341 = vrot.lane.b32.xlu0 %v1335, 64
        %v1342 = vpop.permute.xlu0 %1341
        %1344 = vst.msk [vmem:[#allocation2 + $0x2] sm:$0x3] %vm901, %v1342
        %1345 = vrot.lane.b32.xlu0 %v1019, 32
        %v1346 = vpop.permute.xlu0 %1345
        %v1348 = vsel %vm557, %v1346, 0
        %1350 = vmatprep.subr.bf16.mxu0 0
        %1351 = vmatpush1.bf16.xpose.msra.mxu0 %v1348
        %1352 = vmatprep.subr.bf16.mxu0 0
        %1353 = vmatpush1.bf16.xpose.msra.mxu0 0
        %1354 = vmatprep.subr.bf16.mxu0 0
        %1355 = vmatpush1.bf16.xpose.msra.mxu0 0
        %1356 = vmatprep.subr.bf16.mxu0 0
        %1357 = vmatpush1.bf16.xpose.msra.mxu0 0
        %1358 = vmatprep.subr.bf16.mxu0 0
        %1359 = vmatpush1.bf16.xpose.msra.mxu0 0
        %1360 = vmatprep.subr.bf16.mxu0 0
        %1361 = vmatpush1.bf16.xpose.msra.mxu0 0
        %1362 = vmatprep.subr.bf16.mxu0 0
        %1363 = vmatpush1.bf16.xpose.msra.mxu0 0
        %1364 = vmatprep.subr.bf16.mxu0 0
        %1365 = vmatpush1.bf16.xpose.msra.mxu0 0
        %1366 = vmatprep.subr.bf16.mxu0 0
        %1367 = vmatpush1.bf16.xpose.msra.mxu0 0
        %1368 = vmatprep.subr.bf16.mxu0 0
        %1369 = vmatpush1.bf16.xpose.msra.mxu0 0
        %1370 = vmatprep.subr.bf16.mxu0 0
        %1371 = vmatpush1.bf16.xpose.msra.mxu0 0
        %1372 = vmatprep.subr.bf16.mxu0 0
        %1373 = vmatpush1.bf16.xpose.msra.mxu0 0
        %1374 = vmatprep.subr.bf16.mxu0 0
        %1375 = vmatpush1.bf16.xpose.msra.mxu0 0
        %1376 = vmatprep.subr.bf16.mxu0 0
        %1377 = vmatpush1.bf16.xpose.msra.mxu0 0
        %1378 = vmatprep.subr.bf16.mxu0 0
        %1379 = vmatpush1.bf16.xpose.msra.mxu0 0
        %1380 = vmatprep.subr.bf16.mxu0 0
        %1381 = vmatpush1.bf16.xpose.msra.mxu0 0
        %1382 = vmatprep.mubr.bf16.mxu0 0
        %1383 = vmatmul.mubr.bf16.gmra.mrb[0].mxu0 %v908
        %v1384 = vpop.f32.mrb[0].mxu0
        %v1385 = vadd.f32 0.0, %v1384
        %v1386 = vpop.f32.mrb[0].mxu0
        %v1387 = vpop.f32.mrb[0].mxu0
        %v1388 = vpop.f32.mrb[0].mxu0
        %1389 = vdwg.mxu0
        %v1390 = vsel %vm604, %v1385, -inf
        %1391 = vmax.xlane.f32.xlu0 %v1390
        %v1392 = vpop.xlane.xlu0 %1391
        %v1393 = vsub.f32 %v1385, %v1392
        %v1394 = vmul.f32 %v1393, 1.442695
        %v1395 = vpow.pop %v1394
        %v1396 = vsel %vm604, %v1395, 0.0
        %1397 = vadd.xlane.f32.xlu0 %v1396
        %v1398 = vpop.xlane.xlu0 %1397
        %v1399 = vrcp.pop %v1398
        %v1400 = vmul.f32 %v1395, %v1399
        %v1401 = vpack.c.bf16 %v1400, %v1400
        %1402 = vrot.lane.b32.xlu0 %v1075, 32
        %v1403 = vpop.permute.xlu0 %1402
        %v1405 = vsel %vm618, %v1401, 0
        %v1408 = vsel %vm622, %v1403, 0
        %1410 = vmatprep.subr.bf16.mxu0 0
        %1411 = vmatpush1.bf16.msra.mxu0 %v1408
        %1412 = vmatprep.subr.bf16.mxu0 0
        %1413 = vmatpush1.bf16.msra.mxu0 0
        %1414 = vmatprep.subr.bf16.mxu0 0
        %1415 = vmatpush1.bf16.msra.mxu0 0
        %1416 = vmatprep.subr.bf16.mxu0 0
        %1417 = vmatpush1.bf16.msra.mxu0 0
        %1418 = vmatprep.subr.bf16.mxu0 0
        %1419 = vmatpush1.bf16.msra.mxu0 0
        %1420 = vmatprep.subr.bf16.mxu0 0
        %1421 = vmatpush1.bf16.msra.mxu0 0
        %1422 = vmatprep.subr.bf16.mxu0 0
        %1423 = vmatpush1.bf16.msra.mxu0 0
        %1424 = vmatprep.subr.bf16.mxu0 0
        %1425 = vmatpush1.bf16.msra.mxu0 0
        %1426 = vmatprep.subr.bf16.mxu0 0
        %1427 = vmatpush1.bf16.msra.mxu0 0
        %1428 = vmatprep.subr.bf16.mxu0 0
        %1429 = vmatpush1.bf16.msra.mxu0 0
        %1430 = vmatprep.subr.bf16.mxu0 0
        %1431 = vmatpush1.bf16.msra.mxu0 0
        %1432 = vmatprep.subr.bf16.mxu0 0
        %1433 = vmatpush1.bf16.msra.mxu0 0
        %1434 = vmatprep.subr.bf16.mxu0 0
        %1435 = vmatpush1.bf16.msra.mxu0 0
        %1436 = vmatprep.subr.bf16.mxu0 0
        %1437 = vmatpush1.bf16.msra.mxu0 0
        %1438 = vmatprep.subr.bf16.mxu0 0
        %1439 = vmatpush1.bf16.msra.mxu0 0
        %1440 = vmatprep.subr.bf16.mxu0 0
        %1441 = vmatpush1.bf16.msra.mxu0 0
        %1442 = vmatprep.mubr.bf16.mxu0 0
        %1443 = vmatmul.mubr.bf16.gmra.mrb[0].mxu0 %v1405
        %v1444 = vpop.f32.mrb[0].mxu0
        %v1445 = vadd.f32 0.0, %v1444
        %v1446 = vpop.f32.mrb[0].mxu0
        %v1447 = vpop.f32.mrb[0].mxu0
        %v1448 = vpop.f32.mrb[0].mxu0
        %1449 = vdwg.mxu0
        %1451 = vrot.lane.b32.xlu0 %v1445, 96
        %v1452 = vpop.permute.xlu0 %1451
        %1454 = vst.msk [vmem:[#allocation2 + $0x2] sm:$0x3] %vm1017, %v1452
        %v1455 = vpack.c.bf16 %v547, %v547
        %v1457 = vsel %vm557, %v1455, 0
        %1459 = vmatprep.subr.bf16.mxu0 0
        %1460 = vmatpush1.bf16.xpose.msra.mxu0 %v1457
        %1461 = vmatprep.subr.bf16.mxu0 0
        %1462 = vmatpush1.bf16.xpose.msra.mxu0 0
        %1463 = vmatprep.subr.bf16.mxu0 0
        %1464 = vmatpush1.bf16.xpose.msra.mxu0 0
        %1465 = vmatprep.subr.bf16.mxu0 0
        %1466 = vmatpush1.bf16.xpose.msra.mxu0 0
        %1467 = vmatprep.subr.bf16.mxu0 0
        %1468 = vmatpush1.bf16.xpose.msra.mxu0 0
        %1469 = vmatprep.subr.bf16.mxu0 0
        %1470 = vmatpush1.bf16.xpose.msra.mxu0 0
        %1471 = vmatprep.subr.bf16.mxu0 0
        %1472 = vmatpush1.bf16.xpose.msra.mxu0 0
        %1473 = vmatprep.subr.bf16.mxu0 0
        %1474 = vmatpush1.bf16.xpose.msra.mxu0 0
        %1475 = vmatprep.subr.bf16.mxu0 0
        %1476 = vmatpush1.bf16.xpose.msra.mxu0 0
        %1477 = vmatprep.subr.bf16.mxu0 0
        %1478 = vmatpush1.bf16.xpose.msra.mxu0 0
        %1479 = vmatprep.subr.bf16.mxu0 0
        %1480 = vmatpush1.bf16.xpose.msra.mxu0 0
        %1481 = vmatprep.subr.bf16.mxu0 0
        %1482 = vmatpush1.bf16.xpose.msra.mxu0 0
        %1483 = vmatprep.subr.bf16.mxu0 0
        %1484 = vmatpush1.bf16.xpose.msra.mxu0 0
        %1485 = vmatprep.subr.bf16.mxu0 0
        %1486 = vmatpush1.bf16.xpose.msra.mxu0 0
        %1487 = vmatprep.subr.bf16.mxu0 0
        %1488 = vmatpush1.bf16.xpose.msra.mxu0 0
        %1489 = vmatprep.subr.bf16.mxu0 0
        %1490 = vmatpush1.bf16.xpose.msra.mxu0 0
        %1491 = vmatprep.mubr.bf16.mxu0 0
        %1492 = vmatmul.mubr.bf16.gmra.mrb[0].mxu0 %v559
        %v1493 = vpop.f32.mrb[0].mxu0
        %v1494 = vadd.f32 0.0, %v1493
        %v1495 = vpop.f32.mrb[0].mxu0
        %v1496 = vpop.f32.mrb[0].mxu0
        %v1497 = vpop.f32.mrb[0].mxu0
        %1498 = vdwg.mxu0
        %v1499 = vsel %vm604, %v1494, -inf
        %1500 = vmax.xlane.f32.xlu0 %v1499
        %v1501 = vpop.xlane.xlu0 %1500
        %v1502 = vsub.f32 %v1494, %v1501
        %v1503 = vmul.f32 %v1502, 1.442695
        %v1504 = vpow.pop %v1503
        %v1505 = vsel %vm604, %v1504, 0.0
        %1506 = vadd.xlane.f32.xlu0 %v1505
        %v1507 = vpop.xlane.xlu0 %1506
        %v1508 = vrcp.pop %v1507
        %v1509 = vmul.f32 %v1504, %v1508
        %v1510 = vpack.c.bf16 %v1509, %v1509
        %v1511 = vpack.c.bf16 %v549, %v549
        %v1513 = vsel %vm618, %v1510, 0
        %v1516 = vsel %vm622, %v1511, 0
        %1518 = vmatprep.subr.bf16.mxu0 0
        %1519 = vmatpush1.bf16.msra.mxu0 %v1516
        %1520 = vmatprep.subr.bf16.mxu0 0
        %1521 = vmatpush1.bf16.msra.mxu0 0
        %1522 = vmatprep.subr.bf16.mxu0 0
        %1523 = vmatpush1.bf16.msra.mxu0 0
        %1524 = vmatprep.subr.bf16.mxu0 0
        %1525 = vmatpush1.bf16.msra.mxu0 0
        %1526 = vmatprep.subr.bf16.mxu0 0
        %1527 = vmatpush1.bf16.msra.mxu0 0
        %1528 = vmatprep.subr.bf16.mxu0 0
        %1529 = vmatpush1.bf16.msra.mxu0 0
        %1530 = vmatprep.subr.bf16.mxu0 0
        %1531 = vmatpush1.bf16.msra.mxu0 0
        %1532 = vmatprep.subr.bf16.mxu0 0
        %1533 = vmatpush1.bf16.msra.mxu0 0
        %1534 = vmatprep.subr.bf16.mxu0 0
        %1535 = vmatpush1.bf16.msra.mxu0 0
        %1536 = vmatprep.subr.bf16.mxu0 0
        %1537 = vmatpush1.bf16.msra.mxu0 0
        %1538 = vmatprep.subr.bf16.mxu0 0
        %1539 = vmatpush1.bf16.msra.mxu0 0
        %1540 = vmatprep.subr.bf16.mxu0 0
        %1541 = vmatpush1.bf16.msra.mxu0 0
        %1542 = vmatprep.subr.bf16.mxu0 0
        %1543 = vmatpush1.bf16.msra.mxu0 0
        %1544 = vmatprep.subr.bf16.mxu0 0
        %1545 = vmatpush1.bf16.msra.mxu0 0
        %1546 = vmatprep.subr.bf16.mxu0 0
        %1547 = vmatpush1.bf16.msra.mxu0 0
        %1548 = vmatprep.subr.bf16.mxu0 0
        %1549 = vmatpush1.bf16.msra.mxu0 0
        %1550 = vmatprep.mubr.bf16.mxu0 0
        %1551 = vmatmul.mubr.bf16.gmra.mrb[0].mxu0 %v1513
        %v1552 = vpop.f32.mrb[0].mxu0
        %v1553 = vadd.f32 0.0, %v1552
        %v1554 = vpop.f32.mrb[0].mxu0
        %v1555 = vpop.f32.mrb[0].mxu0
        %v1556 = vpop.f32.mrb[0].mxu0
        %1557 = vdwg.mxu0
        %1558 = vst.msk [vmem:[#allocation2 + $0x4] sm:$0x3] %vm666, %v1553
        %1560 = vrot.lane.b32.xlu0 %v1455, 96
        %v1561 = vpop.permute.xlu0 %1560
        %v1563 = vsel %vm557, %v1561, 0
        %1565 = vmatprep.subr.bf16.mxu0 0
        %1566 = vmatpush1.bf16.xpose.msra.mxu0 %v1563
        %1567 = vmatprep.subr.bf16.mxu0 0
        %1568 = vmatpush1.bf16.xpose.msra.mxu0 0
        %1569 = vmatprep.subr.bf16.mxu0 0
        %1570 = vmatpush1.bf16.xpose.msra.mxu0 0
        %1571 = vmatprep.subr.bf16.mxu0 0
        %1572 = vmatpush1.bf16.xpose.msra.mxu0 0
        %1573 = vmatprep.subr.bf16.mxu0 0
        %1574 = vmatpush1.bf16.xpose.msra.mxu0 0
        %1575 = vmatprep.subr.bf16.mxu0 0
        %1576 = vmatpush1.bf16.xpose.msra.mxu0 0
        %1577 = vmatprep.subr.bf16.mxu0 0
        %1578 = vmatpush1.bf16.xpose.msra.mxu0 0
        %1579 = vmatprep.subr.bf16.mxu0 0
        %1580 = vmatpush1.bf16.xpose.msra.mxu0 0
        %1581 = vmatprep.subr.bf16.mxu0 0
        %1582 = vmatpush1.bf16.xpose.msra.mxu0 0
        %1583 = vmatprep.subr.bf16.mxu0 0
        %1584 = vmatpush1.bf16.xpose.msra.mxu0 0
        %1585 = vmatprep.subr.bf16.mxu0 0
        %1586 = vmatpush1.bf16.xpose.msra.mxu0 0
        %1587 = vmatprep.subr.bf16.mxu0 0
        %1588 = vmatpush1.bf16.xpose.msra.mxu0 0
        %1589 = vmatprep.subr.bf16.mxu0 0
        %1590 = vmatpush1.bf16.xpose.msra.mxu0 0
        %1591 = vmatprep.subr.bf16.mxu0 0
        %1592 = vmatpush1.bf16.xpose.msra.mxu0 0
        %1593 = vmatprep.subr.bf16.mxu0 0
        %1594 = vmatpush1.bf16.xpose.msra.mxu0 0
        %1595 = vmatprep.subr.bf16.mxu0 0
        %1596 = vmatpush1.bf16.xpose.msra.mxu0 0
        %1597 = vmatprep.mubr.bf16.mxu0 0
        %1598 = vmatmul.mubr.bf16.gmra.mrb[0].mxu0 %v675
        %v1599 = vpop.f32.mrb[0].mxu0
        %v1600 = vadd.f32 0.0, %v1599
        %v1601 = vpop.f32.mrb[0].mxu0
        %v1602 = vpop.f32.mrb[0].mxu0
        %v1603 = vpop.f32.mrb[0].mxu0
        %1604 = vdwg.mxu0
        %v1605 = vsel %vm604, %v1600, -inf
        %1606 = vmax.xlane.f32.xlu0 %v1605
        %v1607 = vpop.xlane.xlu0 %1606
        %v1608 = vsub.f32 %v1600, %v1607
        %v1609 = vmul.f32 %v1608, 1.442695
        %v1610 = vpow.pop %v1609
        %v1611 = vsel %vm604, %v1610, 0.0
        %1612 = vadd.xlane.f32.xlu0 %v1611
        %v1613 = vpop.xlane.xlu0 %1612
        %v1614 = vrcp.pop %v1613
        %v1615 = vmul.f32 %v1610, %v1614
        %v1616 = vpack.c.bf16 %v1615, %v1615
        %1618 = vrot.lane.b32.xlu0 %v1511, 96
        %v1619 = vpop.permute.xlu0 %1618
        %v1621 = vsel %vm618, %v1616, 0
        %v1624 = vsel %vm622, %v1619, 0
        %1626 = vmatprep.subr.bf16.mxu0 0
        %1627 = vmatpush1.bf16.msra.mxu0 %v1624
        %1628 = vmatprep.subr.bf16.mxu0 0
        %1629 = vmatpush1.bf16.msra.mxu0 0
        %1630 = vmatprep.subr.bf16.mxu0 0
        %1631 = vmatpush1.bf16.msra.mxu0 0
        %1632 = vmatprep.subr.bf16.mxu0 0
        %1633 = vmatpush1.bf16.msra.mxu0 0
        %1634 = vmatprep.subr.bf16.mxu0 0
        %1635 = vmatpush1.bf16.msra.mxu0 0
        %1636 = vmatprep.subr.bf16.mxu0 0
        %1637 = vmatpush1.bf16.msra.mxu0 0
        %1638 = vmatprep.subr.bf16.mxu0 0
        %1639 = vmatpush1.bf16.msra.mxu0 0
        %1640 = vmatprep.subr.bf16.mxu0 0
        %1641 = vmatpush1.bf16.msra.mxu0 0
        %1642 = vmatprep.subr.bf16.mxu0 0
        %1643 = vmatpush1.bf16.msra.mxu0 0
        %1644 = vmatprep.subr.bf16.mxu0 0
        %1645 = vmatpush1.bf16.msra.mxu0 0
        %1646 = vmatprep.subr.bf16.mxu0 0
        %1647 = vmatpush1.bf16.msra.mxu0 0
        %1648 = vmatprep.subr.bf16.mxu0 0
        %1649 = vmatpush1.bf16.msra.mxu0 0
        %1650 = vmatprep.subr.bf16.mxu0 0
        %1651 = vmatpush1.bf16.msra.mxu0 0
        %1652 = vmatprep.subr.bf16.mxu0 0
        %1653 = vmatpush1.bf16.msra.mxu0 0
        %1654 = vmatprep.subr.bf16.mxu0 0
        %1655 = vmatpush1.bf16.msra.mxu0 0
        %1656 = vmatprep.subr.bf16.mxu0 0
        %1657 = vmatpush1.bf16.msra.mxu0 0
        %1658 = vmatprep.mubr.bf16.mxu0 0
        %1659 = vmatmul.mubr.bf16.gmra.mrb[0].mxu0 %v1621
        %v1660 = vpop.f32.mrb[0].mxu0
        %v1661 = vadd.f32 0.0, %v1660
        %v1662 = vpop.f32.mrb[0].mxu0
        %v1663 = vpop.f32.mrb[0].mxu0
        %v1664 = vpop.f32.mrb[0].mxu0
        %1665 = vdwg.mxu0
        %1667 = vrot.lane.b32.xlu0 %v1661, 32
        %v1668 = vpop.permute.xlu0 %1667
        %1670 = vst.msk [vmem:[#allocation2 + $0x4] sm:$0x3] %vm785, %v1668
        %1671 = vrot.lane.b32.xlu0 %v1455, 64
        %v1672 = vpop.permute.xlu0 %1671
        %v1674 = vsel %vm557, %v1672, 0
        %1676 = vmatprep.subr.bf16.mxu0 0
        %1677 = vmatpush1.bf16.xpose.msra.mxu0 %v1674
        %1678 = vmatprep.subr.bf16.mxu0 0
        %1679 = vmatpush1.bf16.xpose.msra.mxu0 0
        %1680 = vmatprep.subr.bf16.mxu0 0
        %1681 = vmatpush1.bf16.xpose.msra.mxu0 0
        %1682 = vmatprep.subr.bf16.mxu0 0
        %1683 = vmatpush1.bf16.xpose.msra.mxu0 0
        %1684 = vmatprep.subr.bf16.mxu0 0
        %1685 = vmatpush1.bf16.xpose.msra.mxu0 0
        %1686 = vmatprep.subr.bf16.mxu0 0
        %1687 = vmatpush1.bf16.xpose.msra.mxu0 0
        %1688 = vmatprep.subr.bf16.mxu0 0
        %1689 = vmatpush1.bf16.xpose.msra.mxu0 0
        %1690 = vmatprep.subr.bf16.mxu0 0
        %1691 = vmatpush1.bf16.xpose.msra.mxu0 0
        %1692 = vmatprep.subr.bf16.mxu0 0
        %1693 = vmatpush1.bf16.xpose.msra.mxu0 0
        %1694 = vmatprep.subr.bf16.mxu0 0
        %1695 = vmatpush1.bf16.xpose.msra.mxu0 0
        %1696 = vmatprep.subr.bf16.mxu0 0
        %1697 = vmatpush1.bf16.xpose.msra.mxu0 0
        %1698 = vmatprep.subr.bf16.mxu0 0
        %1699 = vmatpush1.bf16.xpose.msra.mxu0 0
        %1700 = vmatprep.subr.bf16.mxu0 0
        %1701 = vmatpush1.bf16.xpose.msra.mxu0 0
        %1702 = vmatprep.subr.bf16.mxu0 0
        %1703 = vmatpush1.bf16.xpose.msra.mxu0 0
        %1704 = vmatprep.subr.bf16.mxu0 0
        %1705 = vmatpush1.bf16.xpose.msra.mxu0 0
        %1706 = vmatprep.subr.bf16.mxu0 0
        %1707 = vmatpush1.bf16.xpose.msra.mxu0 0
        %1708 = vmatprep.mubr.bf16.mxu0 0
        %1709 = vmatmul.mubr.bf16.gmra.mrb[0].mxu0 %v792
        %v1710 = vpop.f32.mrb[0].mxu0
        %v1711 = vadd.f32 0.0, %v1710
        %v1712 = vpop.f32.mrb[0].mxu0
        %v1713 = vpop.f32.mrb[0].mxu0
        %v1714 = vpop.f32.mrb[0].mxu0
        %1715 = vdwg.mxu0
        %v1716 = vsel %vm604, %v1711, -inf
        %1717 = vmax.xlane.f32.xlu0 %v1716
        %v1718 = vpop.xlane.xlu0 %1717
        %v1719 = vsub.f32 %v1711, %v1718
        %v1720 = vmul.f32 %v1719, 1.442695
        %v1721 = vpow.pop %v1720
        %v1722 = vsel %vm604, %v1721, 0.0
        %1723 = vadd.xlane.f32.xlu0 %v1722
        %v1724 = vpop.xlane.xlu0 %1723
        %v1725 = vrcp.pop %v1724
        %v1726 = vmul.f32 %v1721, %v1725
        %v1727 = vpack.c.bf16 %v1726, %v1726
        %1728 = vrot.lane.b32.xlu0 %v1511, 64
        %v1729 = vpop.permute.xlu0 %1728
        %v1731 = vsel %vm618, %v1727, 0
        %v1734 = vsel %vm622, %v1729, 0
        %1736 = vmatprep.subr.bf16.mxu0 0
        %1737 = vmatpush1.bf16.msra.mxu0 %v1734
        %1738 = vmatprep.subr.bf16.mxu0 0
        %1739 = vmatpush1.bf16.msra.mxu0 0
        %1740 = vmatprep.subr.bf16.mxu0 0
        %1741 = vmatpush1.bf16.msra.mxu0 0
        %1742 = vmatprep.subr.bf16.mxu0 0
        %1743 = vmatpush1.bf16.msra.mxu0 0
        %1744 = vmatprep.subr.bf16.mxu0 0
        %1745 = vmatpush1.bf16.msra.mxu0 0
        %1746 = vmatprep.subr.bf16.mxu0 0
        %1747 = vmatpush1.bf16.msra.mxu0 0
        %1748 = vmatprep.subr.bf16.mxu0 0
        %1749 = vmatpush1.bf16.msra.mxu0 0
        %1750 = vmatprep.subr.bf16.mxu0 0
        %1751 = vmatpush1.bf16.msra.mxu0 0
        %1752 = vmatprep.subr.bf16.mxu0 0
        %1753 = vmatpush1.bf16.msra.mxu0 0
        %1754 = vmatprep.subr.bf16.mxu0 0
        %1755 = vmatpush1.bf16.msra.mxu0 0
        %1756 = vmatprep.subr.bf16.mxu0 0
        %1757 = vmatpush1.bf16.msra.mxu0 0
        %1758 = vmatprep.subr.bf16.mxu0 0
        %1759 = vmatpush1.bf16.msra.mxu0 0
        %1760 = vmatprep.subr.bf16.mxu0 0
        %1761 = vmatpush1.bf16.msra.mxu0 0
        %1762 = vmatprep.subr.bf16.mxu0 0
        %1763 = vmatpush1.bf16.msra.mxu0 0
        %1764 = vmatprep.subr.bf16.mxu0 0
        %1765 = vmatpush1.bf16.msra.mxu0 0
        %1766 = vmatprep.subr.bf16.mxu0 0
        %1767 = vmatpush1.bf16.msra.mxu0 0
        %1768 = vmatprep.mubr.bf16.mxu0 0
        %1769 = vmatmul.mubr.bf16.gmra.mrb[0].mxu0 %v1731
        %v1770 = vpop.f32.mrb[0].mxu0
        %v1771 = vadd.f32 0.0, %v1770
        %v1772 = vpop.f32.mrb[0].mxu0
        %v1773 = vpop.f32.mrb[0].mxu0
        %v1774 = vpop.f32.mrb[0].mxu0
        %1775 = vdwg.mxu0
        %1777 = vrot.lane.b32.xlu0 %v1771, 64
        %v1778 = vpop.permute.xlu0 %1777
        %1780 = vst.msk [vmem:[#allocation2 + $0x4] sm:$0x3] %vm901, %v1778
        %1781 = vrot.lane.b32.xlu0 %v1455, 32
        %v1782 = vpop.permute.xlu0 %1781
        %v1784 = vsel %vm557, %v1782, 0
        %1786 = vmatprep.subr.bf16.mxu0 0
        %1787 = vmatpush1.bf16.xpose.msra.mxu0 %v1784
        %1788 = vmatprep.subr.bf16.mxu0 0
        %1789 = vmatpush1.bf16.xpose.msra.mxu0 0
        %1790 = vmatprep.subr.bf16.mxu0 0
        %1791 = vmatpush1.bf16.xpose.msra.mxu0 0
        %1792 = vmatprep.subr.bf16.mxu0 0
        %1793 = vmatpush1.bf16.xpose.msra.mxu0 0
        %1794 = vmatprep.subr.bf16.mxu0 0
        %1795 = vmatpush1.bf16.xpose.msra.mxu0 0
        %1796 = vmatprep.subr.bf16.mxu0 0
        %1797 = vmatpush1.bf16.xpose.msra.mxu0 0
        %1798 = vmatprep.subr.bf16.mxu0 0
        %1799 = vmatpush1.bf16.xpose.msra.mxu0 0
        %1800 = vmatprep.subr.bf16.mxu0 0
        %1801 = vmatpush1.bf16.xpose.msra.mxu0 0
        %1802 = vmatprep.subr.bf16.mxu0 0
        %1803 = vmatpush1.bf16.xpose.msra.mxu0 0
        %1804 = vmatprep.subr.bf16.mxu0 0
        %1805 = vmatpush1.bf16.xpose.msra.mxu0 0
        %1806 = vmatprep.subr.bf16.mxu0 0
        %1807 = vmatpush1.bf16.xpose.msra.mxu0 0
        %1808 = vmatprep.subr.bf16.mxu0 0
        %1809 = vmatpush1.bf16.xpose.msra.mxu0 0
        %1810 = vmatprep.subr.bf16.mxu0 0
        %1811 = vmatpush1.bf16.xpose.msra.mxu0 0
        %1812 = vmatprep.subr.bf16.mxu0 0
        %1813 = vmatpush1.bf16.xpose.msra.mxu0 0
        %1814 = vmatprep.subr.bf16.mxu0 0
        %1815 = vmatpush1.bf16.xpose.msra.mxu0 0
        %1816 = vmatprep.subr.bf16.mxu0 0
        %1817 = vmatpush1.bf16.xpose.msra.mxu0 0
        %1818 = vmatprep.mubr.bf16.mxu0 0
        %1819 = vmatmul.mubr.bf16.gmra.mrb[0].mxu0 %v908
        %v1820 = vpop.f32.mrb[0].mxu0
        %v1821 = vadd.f32 0.0, %v1820
        %v1822 = vpop.f32.mrb[0].mxu0
        %v1823 = vpop.f32.mrb[0].mxu0
        %v1824 = vpop.f32.mrb[0].mxu0
        %1825 = vdwg.mxu0
        %v1826 = vsel %vm604, %v1821, -inf
        %1827 = vmax.xlane.f32.xlu0 %v1826
        %v1828 = vpop.xlane.xlu0 %1827
        %v1829 = vsub.f32 %v1821, %v1828
        %v1830 = vmul.f32 %v1829, 1.442695
        %v1831 = vpow.pop %v1830
        %v1832 = vsel %vm604, %v1831, 0.0
        %1833 = vadd.xlane.f32.xlu0 %v1832
        %v1834 = vpop.xlane.xlu0 %1833
        %v1835 = vrcp.pop %v1834
        %v1836 = vmul.f32 %v1831, %v1835
        %v1837 = vpack.c.bf16 %v1836, %v1836
        %1838 = vrot.lane.b32.xlu0 %v1511, 32
        %v1839 = vpop.permute.xlu0 %1838
        %v1841 = vsel %vm618, %v1837, 0
        %v1844 = vsel %vm622, %v1839, 0
        %1846 = vmatprep.subr.bf16.mxu0 0
        %1847 = vmatpush1.bf16.msra.mxu0 %v1844
        %1848 = vmatprep.subr.bf16.mxu0 0
        %1849 = vmatpush1.bf16.msra.mxu0 0
        %1850 = vmatprep.subr.bf16.mxu0 0
        %1851 = vmatpush1.bf16.msra.mxu0 0
        %1852 = vmatprep.subr.bf16.mxu0 0
        %1853 = vmatpush1.bf16.msra.mxu0 0
        %1854 = vmatprep.subr.bf16.mxu0 0
        %1855 = vmatpush1.bf16.msra.mxu0 0
        %1856 = vmatprep.subr.bf16.mxu0 0
        %1857 = vmatpush1.bf16.msra.mxu0 0
        %1858 = vmatprep.subr.bf16.mxu0 0
        %1859 = vmatpush1.bf16.msra.mxu0 0
        %1860 = vmatprep.subr.bf16.mxu0 0
        %1861 = vmatpush1.bf16.msra.mxu0 0
        %1862 = vmatprep.subr.bf16.mxu0 0
        %1863 = vmatpush1.bf16.msra.mxu0 0
        %1864 = vmatprep.subr.bf16.mxu0 0
        %1865 = vmatpush1.bf16.msra.mxu0 0
        %1866 = vmatprep.subr.bf16.mxu0 0
        %1867 = vmatpush1.bf16.msra.mxu0 0
        %1868 = vmatprep.subr.bf16.mxu0 0
        %1869 = vmatpush1.bf16.msra.mxu0 0
        %1870 = vmatprep.subr.bf16.mxu0 0
        %1871 = vmatpush1.bf16.msra.mxu0 0
        %1872 = vmatprep.subr.bf16.mxu0 0
        %1873 = vmatpush1.bf16.msra.mxu0 0
        %1874 = vmatprep.subr.bf16.mxu0 0
        %1875 = vmatpush1.bf16.msra.mxu0 0
        %1876 = vmatprep.subr.bf16.mxu0 0
        %1877 = vmatpush1.bf16.msra.mxu0 0
        %1878 = vmatprep.mubr.bf16.mxu0 0
        %1879 = vmatmul.mubr.bf16.gmra.mrb[0].mxu0 %v1841
        %v1880 = vpop.f32.mrb[0].mxu0
        %v1881 = vadd.f32 0.0, %v1880
        %v1882 = vpop.f32.mrb[0].mxu0
        %v1883 = vpop.f32.mrb[0].mxu0
        %v1884 = vpop.f32.mrb[0].mxu0
        %1885 = vdwg.mxu0
        %1887 = vrot.lane.b32.xlu0 %v1881, 96
        %v1888 = vpop.permute.xlu0 %1887
        %1890 = vst.msk [vmem:[#allocation2 + $0x4] sm:$0x3] %vm1017, %v1888
        %v1891 = vpack.c.bf16 %v551, %v551
        %v1893 = vsel %vm557, %v1891, 0
        %1895 = vmatprep.subr.bf16.mxu0 0
        %1896 = vmatpush1.bf16.xpose.msra.mxu0 %v1893
        %1897 = vmatprep.subr.bf16.mxu0 0
        %1898 = vmatpush1.bf16.xpose.msra.mxu0 0
        %1899 = vmatprep.subr.bf16.mxu0 0
        %1900 = vmatpush1.bf16.xpose.msra.mxu0 0
        %1901 = vmatprep.subr.bf16.mxu0 0
        %1902 = vmatpush1.bf16.xpose.msra.mxu0 0
        %1903 = vmatprep.subr.bf16.mxu0 0
        %1904 = vmatpush1.bf16.xpose.msra.mxu0 0
        %1905 = vmatprep.subr.bf16.mxu0 0
        %1906 = vmatpush1.bf16.xpose.msra.mxu0 0
        %1907 = vmatprep.subr.bf16.mxu0 0
        %1908 = vmatpush1.bf16.xpose.msra.mxu0 0
        %1909 = vmatprep.subr.bf16.mxu0 0
        %1910 = vmatpush1.bf16.xpose.msra.mxu0 0
        %1911 = vmatprep.subr.bf16.mxu0 0
        %1912 = vmatpush1.bf16.xpose.msra.mxu0 0
        %1913 = vmatprep.subr.bf16.mxu0 0
        %1914 = vmatpush1.bf16.xpose.msra.mxu0 0
        %1915 = vmatprep.subr.bf16.mxu0 0
        %1916 = vmatpush1.bf16.xpose.msra.mxu0 0
        %1917 = vmatprep.subr.bf16.mxu0 0
        %1918 = vmatpush1.bf16.xpose.msra.mxu0 0
        %1919 = vmatprep.subr.bf16.mxu0 0
        %1920 = vmatpush1.bf16.xpose.msra.mxu0 0
        %1921 = vmatprep.subr.bf16.mxu0 0
        %1922 = vmatpush1.bf16.xpose.msra.mxu0 0
        %1923 = vmatprep.subr.bf16.mxu0 0
        %1924 = vmatpush1.bf16.xpose.msra.mxu0 0
        %1925 = vmatprep.subr.bf16.mxu0 0
        %1926 = vmatpush1.bf16.xpose.msra.mxu0 0
        %1927 = vmatprep.mubr.bf16.mxu0 0
        %1928 = vmatmul.mubr.bf16.gmra.mrb[0].mxu0 %v559
        %v1929 = vpop.f32.mrb[0].mxu0
        %v1930 = vadd.f32 0.0, %v1929
        %v1931 = vpop.f32.mrb[0].mxu0
        %v1932 = vpop.f32.mrb[0].mxu0
        %v1933 = vpop.f32.mrb[0].mxu0
        %1934 = vdwg.mxu0
        %v1935 = vsel %vm604, %v1930, -inf
        %1936 = vmax.xlane.f32.xlu0 %v1935
        %v1937 = vpop.xlane.xlu0 %1936
        %v1938 = vsub.f32 %v1930, %v1937
        %v1939 = vmul.f32 %v1938, 1.442695
        %v1940 = vpow.pop %v1939
        %v1941 = vsel %vm604, %v1940, 0.0
        %1942 = vadd.xlane.f32.xlu0 %v1941
        %v1943 = vpop.xlane.xlu0 %1942
        %v1944 = vrcp.pop %v1943
        %v1945 = vmul.f32 %v1940, %v1944
        %v1946 = vpack.c.bf16 %v1945, %v1945
        %v1947 = vpack.c.bf16 %v553, %v553
        %v1949 = vsel %vm618, %v1946, 0
        %v1952 = vsel %vm622, %v1947, 0
        %1954 = vmatprep.subr.bf16.mxu0 0
        %1955 = vmatpush1.bf16.msra.mxu0 %v1952
        %1956 = vmatprep.subr.bf16.mxu0 0
        %1957 = vmatpush1.bf16.msra.mxu0 0
        %1958 = vmatprep.subr.bf16.mxu0 0
        %1959 = vmatpush1.bf16.msra.mxu0 0
        %1960 = vmatprep.subr.bf16.mxu0 0
        %1961 = vmatpush1.bf16.msra.mxu0 0
        %1962 = vmatprep.subr.bf16.mxu0 0
        %1963 = vmatpush1.bf16.msra.mxu0 0
        %1964 = vmatprep.subr.bf16.mxu0 0
        %1965 = vmatpush1.bf16.msra.mxu0 0
        %1966 = vmatprep.subr.bf16.mxu0 0
        %1967 = vmatpush1.bf16.msra.mxu0 0
        %1968 = vmatprep.subr.bf16.mxu0 0
        %1969 = vmatpush1.bf16.msra.mxu0 0
        %1970 = vmatprep.subr.bf16.mxu0 0
        %1971 = vmatpush1.bf16.msra.mxu0 0
        %1972 = vmatprep.subr.bf16.mxu0 0
        %1973 = vmatpush1.bf16.msra.mxu0 0
        %1974 = vmatprep.subr.bf16.mxu0 0
        %1975 = vmatpush1.bf16.msra.mxu0 0
        %1976 = vmatprep.subr.bf16.mxu0 0
        %1977 = vmatpush1.bf16.msra.mxu0 0
        %1978 = vmatprep.subr.bf16.mxu0 0
        %1979 = vmatpush1.bf16.msra.mxu0 0
        %1980 = vmatprep.subr.bf16.mxu0 0
        %1981 = vmatpush1.bf16.msra.mxu0 0
        %1982 = vmatprep.subr.bf16.mxu0 0
        %1983 = vmatpush1.bf16.msra.mxu0 0
        %1984 = vmatprep.subr.bf16.mxu0 0
        %1985 = vmatpush1.bf16.msra.mxu0 0
        %1986 = vmatprep.mubr.bf16.mxu0 0
        %1987 = vmatmul.mubr.bf16.gmra.mrb[0].mxu0 %v1949
        %v1988 = vpop.f32.mrb[0].mxu0
        %v1989 = vadd.f32 0.0, %v1988
        %v1990 = vpop.f32.mrb[0].mxu0
        %v1991 = vpop.f32.mrb[0].mxu0
        %v1992 = vpop.f32.mrb[0].mxu0
        %1993 = vdwg.mxu0
        %1994 = vst.msk [vmem:[#allocation2 + $0x6] sm:$0x3] %vm666, %v1989
        %1996 = vrot.lane.b32.xlu0 %v1891, 96
        %v1997 = vpop.permute.xlu0 %1996
        %v1999 = vsel %vm557, %v1997, 0
        %2001 = vmatprep.subr.bf16.mxu0 0
        %2002 = vmatpush1.bf16.xpose.msra.mxu0 %v1999
        %2003 = vmatprep.subr.bf16.mxu0 0
        %2004 = vmatpush1.bf16.xpose.msra.mxu0 0
        %2005 = vmatprep.subr.bf16.mxu0 0
        %2006 = vmatpush1.bf16.xpose.msra.mxu0 0
        %2007 = vmatprep.subr.bf16.mxu0 0
        %2008 = vmatpush1.bf16.xpose.msra.mxu0 0
        %2009 = vmatprep.subr.bf16.mxu0 0
        %2010 = vmatpush1.bf16.xpose.msra.mxu0 0
        %2011 = vmatprep.subr.bf16.mxu0 0
        %2012 = vmatpush1.bf16.xpose.msra.mxu0 0
        %2013 = vmatprep.subr.bf16.mxu0 0
        %2014 = vmatpush1.bf16.xpose.msra.mxu0 0
        %2015 = vmatprep.subr.bf16.mxu0 0
        %2016 = vmatpush1.bf16.xpose.msra.mxu0 0
        %2017 = vmatprep.subr.bf16.mxu0 0
        %2018 = vmatpush1.bf16.xpose.msra.mxu0 0
        %2019 = vmatprep.subr.bf16.mxu0 0
        %2020 = vmatpush1.bf16.xpose.msra.mxu0 0
        %2021 = vmatprep.subr.bf16.mxu0 0
        %2022 = vmatpush1.bf16.xpose.msra.mxu0 0
        %2023 = vmatprep.subr.bf16.mxu0 0
        %2024 = vmatpush1.bf16.xpose.msra.mxu0 0
        %2025 = vmatprep.subr.bf16.mxu0 0
        %2026 = vmatpush1.bf16.xpose.msra.mxu0 0
        %2027 = vmatprep.subr.bf16.mxu0 0
        %2028 = vmatpush1.bf16.xpose.msra.mxu0 0
        %2029 = vmatprep.subr.bf16.mxu0 0
        %2030 = vmatpush1.bf16.xpose.msra.mxu0 0
        %2031 = vmatprep.subr.bf16.mxu0 0
        %2032 = vmatpush1.bf16.xpose.msra.mxu0 0
        %2033 = vmatprep.mubr.bf16.mxu0 0
        %2034 = vmatmul.mubr.bf16.gmra.mrb[0].mxu0 %v675
        %v2035 = vpop.f32.mrb[0].mxu0
        %v2036 = vadd.f32 0.0, %v2035
        %v2037 = vpop.f32.mrb[0].mxu0
        %v2038 = vpop.f32.mrb[0].mxu0
        %v2039 = vpop.f32.mrb[0].mxu0
        %2040 = vdwg.mxu0
        %v2041 = vsel %vm604, %v2036, -inf
        %2042 = vmax.xlane.f32.xlu0 %v2041
        %v2043 = vpop.xlane.xlu0 %2042
        %v2044 = vsub.f32 %v2036, %v2043
        %v2045 = vmul.f32 %v2044, 1.442695
        %v2046 = vpow.pop %v2045
        %v2047 = vsel %vm604, %v2046, 0.0
        %2048 = vadd.xlane.f32.xlu0 %v2047
        %v2049 = vpop.xlane.xlu0 %2048
        %v2050 = vrcp.pop %v2049
        %v2051 = vmul.f32 %v2046, %v2050
        %v2052 = vpack.c.bf16 %v2051, %v2051
        %2054 = vrot.lane.b32.xlu0 %v1947, 96
        %v2055 = vpop.permute.xlu0 %2054
        %v2057 = vsel %vm618, %v2052, 0
        %v2060 = vsel %vm622, %v2055, 0
        %2062 = vmatprep.subr.bf16.mxu0 0
        %2063 = vmatpush1.bf16.msra.mxu0 %v2060
        %2064 = vmatprep.subr.bf16.mxu0 0
        %2065 = vmatpush1.bf16.msra.mxu0 0
        %2066 = vmatprep.subr.bf16.mxu0 0
        %2067 = vmatpush1.bf16.msra.mxu0 0
        %2068 = vmatprep.subr.bf16.mxu0 0
        %2069 = vmatpush1.bf16.msra.mxu0 0
        %2070 = vmatprep.subr.bf16.mxu0 0
        %2071 = vmatpush1.bf16.msra.mxu0 0
        %2072 = vmatprep.subr.bf16.mxu0 0
        %2073 = vmatpush1.bf16.msra.mxu0 0
        %2074 = vmatprep.subr.bf16.mxu0 0
        %2075 = vmatpush1.bf16.msra.mxu0 0
        %2076 = vmatprep.subr.bf16.mxu0 0
        %2077 = vmatpush1.bf16.msra.mxu0 0
        %2078 = vmatprep.subr.bf16.mxu0 0
        %2079 = vmatpush1.bf16.msra.mxu0 0
        %2080 = vmatprep.subr.bf16.mxu0 0
        %2081 = vmatpush1.bf16.msra.mxu0 0
        %2082 = vmatprep.subr.bf16.mxu0 0
        %2083 = vmatpush1.bf16.msra.mxu0 0
        %2084 = vmatprep.subr.bf16.mxu0 0
        %2085 = vmatpush1.bf16.msra.mxu0 0
        %2086 = vmatprep.subr.bf16.mxu0 0
        %2087 = vmatpush1.bf16.msra.mxu0 0
        %2088 = vmatprep.subr.bf16.mxu0 0
        %2089 = vmatpush1.bf16.msra.mxu0 0
        %2090 = vmatprep.subr.bf16.mxu0 0
        %2091 = vmatpush1.bf16.msra.mxu0 0
        %2092 = vmatprep.subr.bf16.mxu0 0
        %2093 = vmatpush1.bf16.msra.mxu0 0
        %2094 = vmatprep.mubr.bf16.mxu0 0
        %2095 = vmatmul.mubr.bf16.gmra.mrb[0].mxu0 %v2057
        %v2096 = vpop.f32.mrb[0].mxu0
        %v2097 = vadd.f32 0.0, %v2096
        %v2098 = vpop.f32.mrb[0].mxu0
        %v2099 = vpop.f32.mrb[0].mxu0
        %v2100 = vpop.f32.mrb[0].mxu0
        %2101 = vdwg.mxu0
        %2103 = vrot.lane.b32.xlu0 %v2097, 32
        %v2104 = vpop.permute.xlu0 %2103
        %2106 = vst.msk [vmem:[#allocation2 + $0x6] sm:$0x3] %vm785, %v2104
        %2107 = vrot.lane.b32.xlu0 %v1891, 64
        %v2108 = vpop.permute.xlu0 %2107
        %v2110 = vsel %vm557, %v2108, 0
        %2112 = vmatprep.subr.bf16.mxu0 0
        %2113 = vmatpush1.bf16.xpose.msra.mxu0 %v2110
        %2114 = vmatprep.subr.bf16.mxu0 0
        %2115 = vmatpush1.bf16.xpose.msra.mxu0 0
        %2116 = vmatprep.subr.bf16.mxu0 0
        %2117 = vmatpush1.bf16.xpose.msra.mxu0 0
        %2118 = vmatprep.subr.bf16.mxu0 0
        %2119 = vmatpush1.bf16.xpose.msra.mxu0 0
        %2120 = vmatprep.subr.bf16.mxu0 0
        %2121 = vmatpush1.bf16.xpose.msra.mxu0 0
        %2122 = vmatprep.subr.bf16.mxu0 0
        %2123 = vmatpush1.bf16.xpose.msra.mxu0 0
        %2124 = vmatprep.subr.bf16.mxu0 0
        %2125 = vmatpush1.bf16.xpose.msra.mxu0 0
        %2126 = vmatprep.subr.bf16.mxu0 0
        %2127 = vmatpush1.bf16.xpose.msra.mxu0 0
        %2128 = vmatprep.subr.bf16.mxu0 0
        %2129 = vmatpush1.bf16.xpose.msra.mxu0 0
        %2130 = vmatprep.subr.bf16.mxu0 0
        %2131 = vmatpush1.bf16.xpose.msra.mxu0 0
        %2132 = vmatprep.subr.bf16.mxu0 0
        %2133 = vmatpush1.bf16.xpose.msra.mxu0 0
        %2134 = vmatprep.subr.bf16.mxu0 0
        %2135 = vmatpush1.bf16.xpose.msra.mxu0 0
        %2136 = vmatprep.subr.bf16.mxu0 0
        %2137 = vmatpush1.bf16.xpose.msra.mxu0 0
        %2138 = vmatprep.subr.bf16.mxu0 0
        %2139 = vmatpush1.bf16.xpose.msra.mxu0 0
        %2140 = vmatprep.subr.bf16.mxu0 0
        %2141 = vmatpush1.bf16.xpose.msra.mxu0 0
        %2142 = vmatprep.subr.bf16.mxu0 0
        %2143 = vmatpush1.bf16.xpose.msra.mxu0 0
        %2144 = vmatprep.mubr.bf16.mxu0 0
        %2145 = vmatmul.mubr.bf16.gmra.mrb[0].mxu0 %v792
        %v2146 = vpop.f32.mrb[0].mxu0
        %v2147 = vadd.f32 0.0, %v2146
        %v2148 = vpop.f32.mrb[0].mxu0
        %v2149 = vpop.f32.mrb[0].mxu0
        %v2150 = vpop.f32.mrb[0].mxu0
        %2151 = vdwg.mxu0
        %v2152 = vsel %vm604, %v2147, -inf
        %2153 = vmax.xlane.f32.xlu0 %v2152
        %v2154 = vpop.xlane.xlu0 %2153
        %v2155 = vsub.f32 %v2147, %v2154
        %v2156 = vmul.f32 %v2155, 1.442695
        %v2157 = vpow.pop %v2156
        %v2158 = vsel %vm604, %v2157, 0.0
        %2159 = vadd.xlane.f32.xlu0 %v2158
        %v2160 = vpop.xlane.xlu0 %2159
        %v2161 = vrcp.pop %v2160
        %v2162 = vmul.f32 %v2157, %v2161
        %v2163 = vpack.c.bf16 %v2162, %v2162
        %2164 = vrot.lane.b32.xlu0 %v1947, 64
        %v2165 = vpop.permute.xlu0 %2164
        %v2167 = vsel %vm618, %v2163, 0
        %v2170 = vsel %vm622, %v2165, 0
        %2172 = vmatprep.subr.bf16.mxu0 0
        %2173 = vmatpush1.bf16.msra.mxu0 %v2170
        %2174 = vmatprep.subr.bf16.mxu0 0
        %2175 = vmatpush1.bf16.msra.mxu0 0
        %2176 = vmatprep.subr.bf16.mxu0 0
        %2177 = vmatpush1.bf16.msra.mxu0 0
        %2178 = vmatprep.subr.bf16.mxu0 0
        %2179 = vmatpush1.bf16.msra.mxu0 0
        %2180 = vmatprep.subr.bf16.mxu0 0
        %2181 = vmatpush1.bf16.msra.mxu0 0
        %2182 = vmatprep.subr.bf16.mxu0 0
        %2183 = vmatpush1.bf16.msra.mxu0 0
        %2184 = vmatprep.subr.bf16.mxu0 0
        %2185 = vmatpush1.bf16.msra.mxu0 0
        %2186 = vmatprep.subr.bf16.mxu0 0
        %2187 = vmatpush1.bf16.msra.mxu0 0
        %2188 = vmatprep.subr.bf16.mxu0 0
        %2189 = vmatpush1.bf16.msra.mxu0 0
        %2190 = vmatprep.subr.bf16.mxu0 0
        %2191 = vmatpush1.bf16.msra.mxu0 0
        %2192 = vmatprep.subr.bf16.mxu0 0
        %2193 = vmatpush1.bf16.msra.mxu0 0
        %2194 = vmatprep.subr.bf16.mxu0 0
        %2195 = vmatpush1.bf16.msra.mxu0 0
        %2196 = vmatprep.subr.bf16.mxu0 0
        %2197 = vmatpush1.bf16.msra.mxu0 0
        %2198 = vmatprep.subr.bf16.mxu0 0
        %2199 = vmatpush1.bf16.msra.mxu0 0
        %2200 = vmatprep.subr.bf16.mxu0 0
        %2201 = vmatpush1.bf16.msra.mxu0 0
        %2202 = vmatprep.subr.bf16.mxu0 0
        %2203 = vmatpush1.bf16.msra.mxu0 0
        %2204 = vmatprep.mubr.bf16.mxu0 0
        %2205 = vmatmul.mubr.bf16.gmra.mrb[0].mxu0 %v2167
        %v2206 = vpop.f32.mrb[0].mxu0
        %v2207 = vadd.f32 0.0, %v2206
        %v2208 = vpop.f32.mrb[0].mxu0
        %v2209 = vpop.f32.mrb[0].mxu0
        %v2210 = vpop.f32.mrb[0].mxu0
        %2211 = vdwg.mxu0
        %2213 = vrot.lane.b32.xlu0 %v2207, 64
        %v2214 = vpop.permute.xlu0 %2213
        %2216 = vst.msk [vmem:[#allocation2 + $0x6] sm:$0x3] %vm901, %v2214
        %2217 = vrot.lane.b32.xlu0 %v1891, 32
        %v2218 = vpop.permute.xlu0 %2217
        %v2220 = vsel %vm557, %v2218, 0
        %2222 = vmatprep.subr.bf16.mxu0 0
        %2223 = vmatpush1.bf16.xpose.msra.mxu0 %v2220
        %2224 = vmatprep.subr.bf16.mxu0 0
        %2225 = vmatpush1.bf16.xpose.msra.mxu0 0
        %2226 = vmatprep.subr.bf16.mxu0 0
        %2227 = vmatpush1.bf16.xpose.msra.mxu0 0
        %2228 = vmatprep.subr.bf16.mxu0 0
        %2229 = vmatpush1.bf16.xpose.msra.mxu0 0
        %2230 = vmatprep.subr.bf16.mxu0 0
        %2231 = vmatpush1.bf16.xpose.msra.mxu0 0
        %2232 = vmatprep.subr.bf16.mxu0 0
        %2233 = vmatpush1.bf16.xpose.msra.mxu0 0
        %2234 = vmatprep.subr.bf16.mxu0 0
        %2235 = vmatpush1.bf16.xpose.msra.mxu0 0
        %2236 = vmatprep.subr.bf16.mxu0 0
        %2237 = vmatpush1.bf16.xpose.msra.mxu0 0
        %2238 = vmatprep.subr.bf16.mxu0 0
        %2239 = vmatpush1.bf16.xpose.msra.mxu0 0
        %2240 = vmatprep.subr.bf16.mxu0 0
        %2241 = vmatpush1.bf16.xpose.msra.mxu0 0
        %2242 = vmatprep.subr.bf16.mxu0 0
        %2243 = vmatpush1.bf16.xpose.msra.mxu0 0
        %2244 = vmatprep.subr.bf16.mxu0 0
        %2245 = vmatpush1.bf16.xpose.msra.mxu0 0
        %2246 = vmatprep.subr.bf16.mxu0 0
        %2247 = vmatpush1.bf16.xpose.msra.mxu0 0
        %2248 = vmatprep.subr.bf16.mxu0 0
        %2249 = vmatpush1.bf16.xpose.msra.mxu0 0
        %2250 = vmatprep.subr.bf16.mxu0 0
        %2251 = vmatpush1.bf16.xpose.msra.mxu0 0
        %2252 = vmatprep.subr.bf16.mxu0 0
        %2253 = vmatpush1.bf16.xpose.msra.mxu0 0
        %2254 = vmatprep.mubr.bf16.mxu0 0
        %2255 = vmatmul.mubr.bf16.gmra.mrb[0].mxu0 %v908
        %v2256 = vpop.f32.mrb[0].mxu0
        %v2257 = vadd.f32 0.0, %v2256
        %v2258 = vpop.f32.mrb[0].mxu0
        %v2259 = vpop.f32.mrb[0].mxu0
        %v2260 = vpop.f32.mrb[0].mxu0
        %2261 = vdwg.mxu0
        %v2262 = vsel %vm604, %v2257, -inf
        %2263 = vmax.xlane.f32.xlu0 %v2262
        %v2264 = vpop.xlane.xlu0 %2263
        %v2265 = vsub.f32 %v2257, %v2264
        %v2266 = vmul.f32 %v2265, 1.442695
        %v2267 = vpow.pop %v2266
        %v2268 = vsel %vm604, %v2267, 0.0
        %2269 = vadd.xlane.f32.xlu0 %v2268
        %v2270 = vpop.xlane.xlu0 %2269
        %v2271 = vrcp.pop %v2270
        %v2272 = vmul.f32 %v2267, %v2271
        %v2273 = vpack.c.bf16 %v2272, %v2272
        %2274 = vrot.lane.b32.xlu0 %v1947, 32
        %v2275 = vpop.permute.xlu0 %2274
        %v2277 = vsel %vm618, %v2273, 0
        %v2280 = vsel %vm622, %v2275, 0
        %2282 = vmatprep.subr.bf16.mxu0 0
        %2283 = vmatpush1.bf16.msra.mxu0 %v2280
        %2284 = vmatprep.subr.bf16.mxu0 0
        %2285 = vmatpush1.bf16.msra.mxu0 0
        %2286 = vmatprep.subr.bf16.mxu0 0
        %2287 = vmatpush1.bf16.msra.mxu0 0
        %2288 = vmatprep.subr.bf16.mxu0 0
        %2289 = vmatpush1.bf16.msra.mxu0 0
        %2290 = vmatprep.subr.bf16.mxu0 0
        %2291 = vmatpush1.bf16.msra.mxu0 0
        %2292 = vmatprep.subr.bf16.mxu0 0
        %2293 = vmatpush1.bf16.msra.mxu0 0
        %2294 = vmatprep.subr.bf16.mxu0 0
        %2295 = vmatpush1.bf16.msra.mxu0 0
        %2296 = vmatprep.subr.bf16.mxu0 0
        %2297 = vmatpush1.bf16.msra.mxu0 0
        %2298 = vmatprep.subr.bf16.mxu0 0
        %2299 = vmatpush1.bf16.msra.mxu0 0
        %2300 = vmatprep.subr.bf16.mxu0 0
        %2301 = vmatpush1.bf16.msra.mxu0 0
        %2302 = vmatprep.subr.bf16.mxu0 0
        %2303 = vmatpush1.bf16.msra.mxu0 0
        %2304 = vmatprep.subr.bf16.mxu0 0
        %2305 = vmatpush1.bf16.msra.mxu0 0
        %2306 = vmatprep.subr.bf16.mxu0 0
        %2307 = vmatpush1.bf16.msra.mxu0 0
        %2308 = vmatprep.subr.bf16.mxu0 0
        %2309 = vmatpush1.bf16.msra.mxu0 0
        %2310 = vmatprep.subr.bf16.mxu0 0
        %2311 = vmatpush1.bf16.msra.mxu0 0
        %2312 = vmatprep.subr.bf16.mxu0 0
        %2313 = vmatpush1.bf16.msra.mxu0 0
        %2314 = vmatprep.mubr.bf16.mxu0 0
        %2315 = vmatmul.mubr.bf16.gmra.mrb[0].mxu0 %v2277
        %v2316 = vpop.f32.mrb[0].mxu0
        %v2317 = vadd.f32 0.0, %v2316
        %v2318 = vpop.f32.mrb[0].mxu0
        %v2319 = vpop.f32.mrb[0].mxu0
        %v2320 = vpop.f32.mrb[0].mxu0
        %2321 = vdwg.mxu0
        %2323 = vrot.lane.b32.xlu0 %v2317, 96
        %v2324 = vpop.permute.xlu0 %2323
        %2326 = vst.msk [vmem:[#allocation2 + $0x6] sm:$0x3] %vm1017, %v2324
        %v2327 = vld [vmem:[#allocation2] sm:$0xff]
        %v2328 = vld [vmem:[#allocation3 + $0x8] sm:$0xf]
        %v2329 = vld [vmem:[#allocation3 + $0x24] sm:$0xf]
        %v2330 = vld [vmem:[#allocation3 + $0x40] sm:$0xf]
        %v2331 = vld [vmem:[#allocation3 + $0x5c] sm:$0xf]
        %v2332 = vld [vmem:[#allocation3 + $0x78] sm:$0xf]
        %v2333 = vld [vmem:[#allocation3 + $0x94] sm:$0xf]
        %v2334 = vld [vmem:[#allocation3 + $0xb0] sm:$0xf]
        %v2335 = vld [vmem:[#allocation3 + $0xcc] sm:$0xf]
        %v2336 = vld [vmem:[#allocation3 + $0xe8] sm:$0xf]
        %v2337 = vld [vmem:[#allocation3 + $0x104] sm:$0xf]
        %v2338 = vld [vmem:[#allocation3 + $0x120] sm:$0xf]
        %v2339 = vld [vmem:[#allocation3 + $0x13c] sm:$0xf]
        %v2340 = vld [vmem:[#allocation3 + $0x158] sm:$0xf]
        %v2341 = vld [vmem:[#allocation3 + $0x174] sm:$0xf]
        %v2342 = vld [vmem:[#allocation3 + $0x190] sm:$0xf]
        %v2343 = vld [vmem:[#allocation3 + $0x1ac] sm:$0xf]
        %v2344 = vpack.c.bf16 %v2327, %v2327
        %v2361 = vunpack.c.l.b16 %v2328
        %v2362 = vunpack.c.l.b16 %v2329
        %v2363 = vunpack.c.l.b16 %v2330
        %v2364 = vunpack.c.l.b16 %v2331
        %v2365 = vunpack.c.l.b16 %v2332
        %v2366 = vunpack.c.l.b16 %v2333
        %v2367 = vunpack.c.l.b16 %v2334
        %v2368 = vunpack.c.l.b16 %v2335
        %v2369 = vunpack.c.l.b16 %v2336
        %v2370 = vunpack.c.l.b16 %v2337
        %v2371 = vunpack.c.l.b16 %v2338
        %v2372 = vunpack.c.l.b16 %v2339
        %v2373 = vunpack.c.l.b16 %v2340
        %v2374 = vunpack.c.l.b16 %v2341
        %v2375 = vunpack.c.l.b16 %v2342
        %v2376 = vunpack.c.l.b16 %v2343
        %v2377 = vpack.c.b16 %v2362, %v2361
        %v2378 = vpack.c.b16 %v2364, %v2363
        %v2379 = vpack.c.b16 %v2366, %v2365
        %v2380 = vpack.c.b16 %v2368, %v2367
        %v2381 = vpack.c.b16 %v2370, %v2369
        %v2382 = vpack.c.b16 %v2372, %v2371
        %v2383 = vpack.c.b16 %v2374, %v2373
        %v2384 = vpack.c.b16 %v2376, %v2375
        %2393 = vmatprep.subr.bf16.mxu0 0
        %2394 = vmatpush1.bf16.msra.mxu0 %v2377
        %2395 = vmatprep.subr.bf16.mxu0 0
        %2396 = vmatpush1.bf16.msra.mxu0 %v2378
        %2397 = vmatprep.subr.bf16.mxu0 0
        %2398 = vmatpush1.bf16.msra.mxu0 %v2379
        %2399 = vmatprep.subr.bf16.mxu0 0
        %2400 = vmatpush1.bf16.msra.mxu0 %v2380
        %2401 = vmatprep.subr.bf16.mxu0 0
        %2402 = vmatpush1.bf16.msra.mxu0 %v2381
        %2403 = vmatprep.subr.bf16.mxu0 0
        %2404 = vmatpush1.bf16.msra.mxu0 %v2382
        %2405 = vmatprep.subr.bf16.mxu0 0
        %2406 = vmatpush1.bf16.msra.mxu0 %v2383
        %2407 = vmatprep.subr.bf16.mxu0 0
        %2408 = vmatpush1.bf16.msra.mxu0 %v2384
        %2409 = vmatprep.subr.bf16.mxu0 0
        %2410 = vmatpush1.bf16.msra.mxu0 0
        %2411 = vmatprep.subr.bf16.mxu0 0
        %2412 = vmatpush1.bf16.msra.mxu0 0
        %2413 = vmatprep.subr.bf16.mxu0 0
        %2414 = vmatpush1.bf16.msra.mxu0 0
        %2415 = vmatprep.subr.bf16.mxu0 0
        %2416 = vmatpush1.bf16.msra.mxu0 0
        %2417 = vmatprep.subr.bf16.mxu0 0
        %2418 = vmatpush1.bf16.msra.mxu0 0
        %2419 = vmatprep.subr.bf16.mxu0 0
        %2420 = vmatpush1.bf16.msra.mxu0 0
        %2421 = vmatprep.subr.bf16.mxu0 0
        %2422 = vmatpush1.bf16.msra.mxu0 0
        %2423 = vmatprep.subr.bf16.mxu0 0
        %2424 = vmatpush1.bf16.msra.mxu0 0
        %2425 = vmatprep.mubr.bf16.mxu0 0
        %2426 = vmatmul.mubr.bf16.gmra.mrb[0].mxu0 %v2344
        %v2427 = vpop.f32.mrb[0].mxu0
        %v2428 = vadd.f32 0.0, %v2427
        %v2429 = vpop.f32.mrb[0].mxu0
        %v2430 = vpop.f32.mrb[0].mxu0
        %v2431 = vpop.f32.mrb[0].mxu0
        %2432 = vdwg.mxu0
        %v2433 = vadd.f32 %v317, %v2428
        %v2434 = vlaneseq
        %v2435 = vshrl.u32 %v2434, 7
        %v2436 = vsub.s32 0, %v2435
        %v2437 = vrot.slane %v313, %v2436
        %v2438 = vadd.f32 %v2433, %v2437
        %2439 = vadd.xlane.f32.xlu0 %v2438
        %v2440 = vpop.xlane.xlu0 %2439
        %v2441 = vrcp.pop 128.0
        %v2442 = vmul.f32 %v2440, %v2441
        %v2443 = vsub.f32 %v2438, %v2442
        %v2444 = vmul.f32 %v2443, %v2443
        %2445 = vadd.xlane.f32.xlu0 %v2444
        %v2446 = vpop.xlane.xlu0 %2445
        %v2447 = vmul.f32 %v2446, %v2441
        %v2448 = vadd.f32 %v2447, 1e-05
        %v2449 = vrsqrt.pop %v2448
        %v2450 = vmul.f32 %v2443, %v2449
        %v2451 = vlaneseq
        %v2452 = vshrl.u32 %v2451, 7
        %v2453 = vsub.s32 0, %v2452
        %v2454 = vrot.slane %v311, %v2453
        %v2455 = vmul.f32 %v2450, %v2454
        %v2456 = vlaneseq
        %v2457 = vshrl.u32 %v2456, 7
        %v2458 = vsub.s32 0, %v2457
        %v2459 = vrot.slane %v312, %v2458
        %v2460 = vadd.f32 %v2455, %v2459
        %v2461 = vld [vmem:[#allocation3 + $0xc] sm:$0xff]
        %v2462 = vld [vmem:[#allocation3 + $0x14] sm:$0xff]
        %v2463 = vld [vmem:[#allocation3 + $0x28] sm:$0xff]
        %v2464 = vld [vmem:[#allocation3 + $0x30] sm:$0xff]
        %v2465 = vld [vmem:[#allocation3 + $0x44] sm:$0xff]
        %v2466 = vld [vmem:[#allocation3 + $0x4c] sm:$0xff]
        %v2467 = vld [vmem:[#allocation3 + $0x60] sm:$0xff]
        %v2468 = vld [vmem:[#allocation3 + $0x68] sm:$0xff]
        %v2469 = vld [vmem:[#allocation3 + $0x7c] sm:$0xff]
        %v2470 = vld [vmem:[#allocation3 + $0x84] sm:$0xff]
        %v2471 = vld [vmem:[#allocation3 + $0x98] sm:$0xff]
        %v2472 = vld [vmem:[#allocation3 + $0xa0] sm:$0xff]
        %v2473 = vld [vmem:[#allocation3 + $0xb4] sm:$0xff]
        %v2474 = vld [vmem:[#allocation3 + $0xbc] sm:$0xff]
        %v2475 = vld [vmem:[#allocation3 + $0xd0] sm:$0xff]
        %v2476 = vld [vmem:[#allocation3 + $0xd8] sm:$0xff]
        %v2477 = vld [vmem:[#allocation3 + $0xec] sm:$0xff]
        %v2478 = vld [vmem:[#allocation3 + $0xf4] sm:$0xff]
        %v2479 = vld [vmem:[#allocation3 + $0x108] sm:$0xff]
        %v2480 = vld [vmem:[#allocation3 + $0x110] sm:$0xff]
        %v2481 = vld [vmem:[#allocation3 + $0x124] sm:$0xff]
        %v2482 = vld [vmem:[#allocation3 + $0x12c] sm:$0xff]
        %v2483 = vld [vmem:[#allocation3 + $0x140] sm:$0xff]
        %v2484 = vld [vmem:[#allocation3 + $0x148] sm:$0xff]
        %v2485 = vld [vmem:[#allocation3 + $0x15c] sm:$0xff]
        %v2486 = vld [vmem:[#allocation3 + $0x164] sm:$0xff]
        %v2487 = vld [vmem:[#allocation3 + $0x178] sm:$0xff]
        %v2488 = vld [vmem:[#allocation3 + $0x180] sm:$0xff]
        %v2489 = vld [vmem:[#allocation3 + $0x194] sm:$0xff]
        %v2490 = vld [vmem:[#allocation3 + $0x19c] sm:$0xff]
        %v2491 = vld [vmem:[#allocation3 + $0x1b0] sm:$0xff]
        %v2492 = vld [vmem:[#allocation3 + $0x1b8] sm:$0xff]
        %v2493 = vpack.c.bf16 %v2460, %v2460
        %v2495 = vlaneseq
        %v2496 = vshrl.u32 %v2495, 7
        %v2497 = vsub.s32 0, %v2496
        %v2498 = vrot.slane %v316, %v2497
        %v2499 = vlaneseq
        %v2500 = vshrl.u32 %v2499, 7
        %v2501 = vsub.s32 1, %v2500
        %v2502 = vrot.slane %v316, %v2501
        %v2503 = vlaneseq
        %v2504 = vshrl.u32 %v2503, 7
        %v2505 = vsub.s32 2, %v2504
        %v2506 = vrot.slane %v316, %v2505
        %v2507 = vlaneseq
        %v2508 = vshrl.u32 %v2507, 7
        %v2509 = vsub.s32 3, %v2508
        %v2510 = vrot.slane %v316, %v2509
        %v2547 = vunpack.c.l.b16 %v2461
        %v2548 = vunpack.c.h.b16 %v2461
        %v2549 = vunpack.c.l.b16 %v2462
        %v2550 = vunpack.c.h.b16 %v2462
        %v2551 = vunpack.c.l.b16 %v2463
        %v2552 = vunpack.c.h.b16 %v2463
        %v2553 = vunpack.c.l.b16 %v2464
        %v2554 = vunpack.c.h.b16 %v2464
        %v2555 = vunpack.c.l.b16 %v2465
        %v2556 = vunpack.c.h.b16 %v2465
        %v2557 = vunpack.c.l.b16 %v2466
        %v2558 = vunpack.c.h.b16 %v2466
        %v2559 = vunpack.c.l.b16 %v2467
        %v2560 = vunpack.c.h.b16 %v2467
        %v2561 = vunpack.c.l.b16 %v2468
        %v2562 = vunpack.c.h.b16 %v2468
        %v2563 = vunpack.c.l.b16 %v2469
        %v2564 = vunpack.c.h.b16 %v2469
        %v2565 = vunpack.c.l.b16 %v2470
        %v2566 = vunpack.c.h.b16 %v2470
        %v2567 = vunpack.c.l.b16 %v2471
        %v2568 = vunpack.c.h.b16 %v2471
        %v2569 = vunpack.c.l.b16 %v2472
        %v2570 = vunpack.c.h.b16 %v2472
        %v2571 = vunpack.c.l.b16 %v2473
        %v2572 = vunpack.c.h.b16 %v2473
        %v2573 = vunpack.c.l.b16 %v2474
        %v2574 = vunpack.c.h.b16 %v2474
        %v2575 = vunpack.c.l.b16 %v2475
        %v2576 = vunpack.c.h.b16 %v2475
        %v2577 = vunpack.c.l.b16 %v2476
        %v2578 = vunpack.c.h.b16 %v2476
        %v2579 = vunpack.c.l.b16 %v2477
        %v2580 = vunpack.c.h.b16 %v2477
        %v2581 = vunpack.c.l.b16 %v2478
        %v2582 = vunpack.c.h.b16 %v2478
        %v2583 = vunpack.c.l.b16 %v2479
        %v2584 = vunpack.c.h.b16 %v2479
        %v2585 = vunpack.c.l.b16 %v2480
        %v2586 = vunpack.c.h.b16 %v2480
        %v2587 = vunpack.c.l.b16 %v2481
        %v2588 = vunpack.c.h.b16 %v2481
        %v2589 = vunpack.c.l.b16 %v2482
        %v2590 = vunpack.c.h.b16 %v2482
        %v2591 = vunpack.c.l.b16 %v2483
        %v2592 = vunpack.c.h.b16 %v2483
        %v2593 = vunpack.c.l.b16 %v2484
        %v2594 = vunpack.c.h.b16 %v2484
        %v2595 = vunpack.c.l.b16 %v2485
        %v2596 = vunpack.c.h.b16 %v2485
        %v2597 = vunpack.c.l.b16 %v2486
        %v2598 = vunpack.c.h.b16 %v2486
        %v2599 = vunpack.c.l.b16 %v2487
        %v2600 = vunpack.c.h.b16 %v2487
        %v2601 = vunpack.c.l.b16 %v2488
        %v2602 = vunpack.c.h.b16 %v2488
        %v2603 = vunpack.c.l.b16 %v2489
        %v2604 = vunpack.c.h.b16 %v2489
        %v2605 = vunpack.c.l.b16 %v2490
        %v2606 = vunpack.c.h.b16 %v2490
        %v2607 = vunpack.c.l.b16 %v2491
        %v2608 = vunpack.c.h.b16 %v2491
        %v2609 = vunpack.c.l.b16 %v2492
        %v2610 = vunpack.c.h.b16 %v2492
        %v2611 = vpack.c.b16 %v2551, %v2547
        %v2612 = vpack.c.b16 %v2552, %v2548
        %v2613 = vpack.c.b16 %v2553, %v2549
        %v2614 = vpack.c.b16 %v2554, %v2550
        %v2615 = vpack.c.b16 %v2559, %v2555
        %v2616 = vpack.c.b16 %v2560, %v2556
        %v2617 = vpack.c.b16 %v2561, %v2557
        %v2618 = vpack.c.b16 %v2562, %v2558
        %v2619 = vpack.c.b16 %v2567, %v2563
        %v2620 = vpack.c.b16 %v2568, %v2564
        %v2621 = vpack.c.b16 %v2569, %v2565
        %v2622 = vpack.c.b16 %v2570, %v2566
        %v2623 = vpack.c.b16 %v2575, %v2571
        %v2624 = vpack.c.b16 %v2576, %v2572
        %v2625 = vpack.c.b16 %v2577, %v2573
        %v2626 = vpack.c.b16 %v2578, %v2574
        %v2627 = vpack.c.b16 %v2583, %v2579
        %v2628 = vpack.c.b16 %v2584, %v2580
        %v2629 = vpack.c.b16 %v2585, %v2581
        %v2630 = vpack.c.b16 %v2586, %v2582
        %v2631 = vpack.c.b16 %v2591, %v2587
        %v2632 = vpack.c.b16 %v2592, %v2588
        %v2633 = vpack.c.b16 %v2593, %v2589
        %v2634 = vpack.c.b16 %v2594, %v2590
        %v2635 = vpack.c.b16 %v2599, %v2595
        %v2636 = vpack.c.b16 %v2600, %v2596
        %v2637 = vpack.c.b16 %v2601, %v2597
        %v2638 = vpack.c.b16 %v2602, %v2598
        %v2639 = vpack.c.b16 %v2607, %v2603
        %v2640 = vpack.c.b16 %v2608, %v2604
        %v2641 = vpack.c.b16 %v2609, %v2605
        %v2642 = vpack.c.b16 %v2610, %v2606
        %2675 = vmatprep.subr.bf16.mxu0 %v2612
        %2676 = vmatpush1.bf16.msra.mxu0 %v2611
        %2677 = vmatprep.subr.bf16.mxu0 %v2616
        %2678 = vmatpush1.bf16.msra.mxu0 %v2615
        %2679 = vmatprep.subr.bf16.mxu0 %v2620
        %2680 = vmatpush1.bf16.msra.mxu0 %v2619
        %2681 = vmatprep.subr.bf16.mxu0 %v2624
        %2682 = vmatpush1.bf16.msra.mxu0 %v2623
        %2683 = vmatprep.subr.bf16.mxu0 %v2628
        %2684 = vmatpush1.bf16.msra.mxu0 %v2627
        %2685 = vmatprep.subr.bf16.mxu0 %v2632
        %2686 = vmatpush1.bf16.msra.mxu0 %v2631
        %2687 = vmatprep.subr.bf16.mxu0 %v2636
        %2688 = vmatpush1.bf16.msra.mxu0 %v2635
        %2689 = vmatprep.subr.bf16.mxu0 %v2640
        %2690 = vmatpush1.bf16.msra.mxu0 %v2639
        %2691 = vmatprep.subr.bf16.mxu0 0
        %2692 = vmatpush1.bf16.msra.mxu0 0
        %2693 = vmatprep.subr.bf16.mxu0 0
        %2694 = vmatpush1.bf16.msra.mxu0 0
        %2695 = vmatprep.subr.bf16.mxu0 0
        %2696 = vmatpush1.bf16.msra.mxu0 0
        %2697 = vmatprep.subr.bf16.mxu0 0
        %2698 = vmatpush1.bf16.msra.mxu0 0
        %2699 = vmatprep.subr.bf16.mxu0 0
        %2700 = vmatpush1.bf16.msra.mxu0 0
        %2701 = vmatprep.subr.bf16.mxu0 0
        %2702 = vmatpush1.bf16.msra.mxu0 0
        %2703 = vmatprep.subr.bf16.mxu0 0
        %2704 = vmatpush1.bf16.msra.mxu0 0
        %2705 = vmatprep.subr.bf16.mxu0 0
        %2706 = vmatpush1.bf16.msra.mxu0 0
        %2707 = vmatprep.mubr.bf16.mxu0 0
        %2708 = vmatmul.mubr.bf16.gmra.mrb[0].mxu0 %v2493
        %v2709 = vpop.f32.mrb[0].mxu0
        %v2710 = vadd.f32 %v2498, %v2709
        %v2711 = vpop.f32.mrb[0].mxu0
        %v2712 = vadd.f32 %v2502, %v2711
        %v2713 = vpop.f32.mrb[0].mxu0
        %v2714 = vpop.f32.mrb[0].mxu0
        %2715 = vdwg.mxu0
        %2716 = vmatprep.subr.bf16.mxu0 %v2614
        %2717 = vmatpush1.bf16.msra.mxu0 %v2613
        %2718 = vmatprep.subr.bf16.mxu0 %v2618
        %2719 = vmatpush1.bf16.msra.mxu0 %v2617
        %2720 = vmatprep.subr.bf16.mxu0 %v2622
        %2721 = vmatpush1.bf16.msra.mxu0 %v2621
        %2722 = vmatprep.subr.bf16.mxu0 %v2626
        %2723 = vmatpush1.bf16.msra.mxu0 %v2625
        %2724 = vmatprep.subr.bf16.mxu0 %v2630
        %2725 = vmatpush1.bf16.msra.mxu0 %v2629
        %2726 = vmatprep.subr.bf16.mxu0 %v2634
        %2727 = vmatpush1.bf16.msra.mxu0 %v2633
        %2728 = vmatprep.subr.bf16.mxu0 %v2638
        %2729 = vmatpush1.bf16.msra.mxu0 %v2637
        %2730 = vmatprep.subr.bf16.mxu0 %v2642
        %2731 = vmatpush1.bf16.msra.mxu0 %v2641
        %2732 = vmatprep.subr.bf16.mxu0 0
        %2733 = vmatpush1.bf16.msra.mxu0 0
        %2734 = vmatprep.subr.bf16.mxu0 0
        %2735 = vmatpush1.bf16.msra.mxu0 0
        %2736 = vmatprep.subr.bf16.mxu0 0
        %2737 = vmatpush1.bf16.msra.mxu0 0
        %2738 = vmatprep.subr.bf16.mxu0 0
        %2739 = vmatpush1.bf16.msra.mxu0 0
        %2740 = vmatprep.subr.bf16.mxu0 0
        %2741 = vmatpush1.bf16.msra.mxu0 0
        %2742 = vmatprep.subr.bf16.mxu0 0
        %2743 = vmatpush1.bf16.msra.mxu0 0
        %2744 = vmatprep.subr.bf16.mxu0 0
        %2745 = vmatpush1.bf16.msra.mxu0 0
        %2746 = vmatprep.subr.bf16.mxu0 0
        %2747 = vmatpush1.bf16.msra.mxu0 0
        %2748 = vmatprep.mubr.bf16.mxu0 0
        %2749 = vmatmul.mubr.bf16.gmra.mrb[0].mxu0 %v2493
        %v2750 = vpop.f32.mrb[0].mxu0
        %v2751 = vadd.f32 %v2506, %v2750
        %v2752 = vpop.f32.mrb[0].mxu0
        %v2753 = vadd.f32 %v2510, %v2752
        %v2754 = vpop.f32.mrb[0].mxu0
        %v2755 = vpop.f32.mrb[0].mxu0
        %2756 = vdwg.mxu0
        %v2757 = vmul.f32 %v2710, 0.5
        %v2758 = vmul.f32 %v2712, 0.5
        %v2759 = vmul.f32 %v2751, 0.5
        %v2760 = vmul.f32 %v2753, 0.5
        %v2761 = vmul.f32 %v2710, %v2710
        %v2762 = vmul.f32 %v2712, %v2712
        %v2763 = vmul.f32 %v2751, %v2751
        %v2764 = vmul.f32 %v2753, %v2753
        %v2765 = vmul.f32 %v2710, %v2761
        %v2766 = vmul.f32 %v2712, %v2762
        %v2767 = vmul.f32 %v2751, %v2763
        %v2768 = vmul.f32 %v2753, %v2764
        %v2769 = vmul.f32 %v2765, 0.044715
        %v2770 = vmul.f32 %v2766, 0.044715
        %v2771 = vmul.f32 %v2767, 0.044715
        %v2772 = vmul.f32 %v2768, 0.044715
        %v2773 = vadd.f32 %v2710, %v2769
        %v2774 = vadd.f32 %v2712, %v2770
        %v2775 = vadd.f32 %v2751, %v2771
        %v2776 = vadd.f32 %v2753, %v2772
        %v2777 = vmul.f32 %v2773, 0.7978846
        %v2778 = vmul.f32 %v2774, 0.7978846
        %v2779 = vmul.f32 %v2775, 0.7978846
        %v2780 = vmul.f32 %v2776, 0.7978846
        %v2781 = vtanh.pop %v2777
        %v2782 = vtanh.pop %v2778
        %v2783 = vtanh.pop %v2779
        %v2784 = vtanh.pop %v2780
        %v2785 = vadd.f32 %v2781, 1.0
        %v2786 = vadd.f32 %v2782, 1.0
        %v2787 = vadd.f32 %v2783, 1.0
        %v2788 = vadd.f32 %v2784, 1.0
        %v2789 = vmul.f32 %v2757, %v2785
        %v2790 = vmul.f32 %v2758, %v2786
        %v2791 = vmul.f32 %v2759, %v2787
        %v2792 = vmul.f32 %v2760, %v2788
        %v2793 = vld [vmem:[#allocation6] sm:$0xf]
        %v2794 = vld [vmem:[#allocation6 + $0x4] sm:$0xf]
        %v2795 = vld [vmem:[#allocation6 + $0x8] sm:$0xf]
        %v2796 = vld [vmem:[#allocation6 + $0xc] sm:$0xf]
        %v2797 = vld [vmem:[#allocation6 + $0x10] sm:$0xf]
        %v2798 = vld [vmem:[#allocation6 + $0x14] sm:$0xf]
        %v2799 = vld [vmem:[#allocation6 + $0x18] sm:$0xf]
        %v2800 = vld [vmem:[#allocation6 + $0x1c] sm:$0xf]
        %v2801 = vld [vmem:[#allocation6 + $0x20] sm:$0xf]
        %v2802 = vld [vmem:[#allocation6 + $0x24] sm:$0xf]
        %v2803 = vld [vmem:[#allocation6 + $0x28] sm:$0xf]
        %v2804 = vld [vmem:[#allocation6 + $0x2c] sm:$0xf]
        %v2805 = vld [vmem:[#allocation6 + $0x30] sm:$0xf]
        %v2806 = vld [vmem:[#allocation6 + $0x34] sm:$0xf]
        %v2807 = vld [vmem:[#allocation6 + $0x38] sm:$0xf]
        %v2808 = vld [vmem:[#allocation6 + $0x3c] sm:$0xf]
        %v2809 = vld [vmem:[#allocation6 + $0x40] sm:$0xf]
        %v2810 = vld [vmem:[#allocation6 + $0x44] sm:$0xf]
        %v2811 = vld [vmem:[#allocation6 + $0x48] sm:$0xf]
        %v2812 = vld [vmem:[#allocation6 + $0x4c] sm:$0xf]
        %v2813 = vld [vmem:[#allocation6 + $0x50] sm:$0xf]
        %v2814 = vld [vmem:[#allocation6 + $0x54] sm:$0xf]
        %v2815 = vld [vmem:[#allocation6 + $0x58] sm:$0xf]
        %v2816 = vld [vmem:[#allocation6 + $0x5c] sm:$0xf]
        %v2817 = vld [vmem:[#allocation6 + $0x60] sm:$0xf]
        %v2818 = vld [vmem:[#allocation6 + $0x64] sm:$0xf]
        %v2819 = vld [vmem:[#allocation6 + $0x68] sm:$0xf]
        %v2820 = vld [vmem:[#allocation6 + $0x6c] sm:$0xf]
        %v2821 = vld [vmem:[#allocation6 + $0x70] sm:$0xf]
        %v2822 = vld [vmem:[#allocation6 + $0x74] sm:$0xf]
        %v2823 = vld [vmem:[#allocation6 + $0x78] sm:$0xf]
        %v2824 = vld [vmem:[#allocation6 + $0x7c] sm:$0xf]
        %v2825 = vld [vmem:[#allocation6 + $0x80] sm:$0xf]
        %v2826 = vld [vmem:[#allocation6 + $0x84] sm:$0xf]
        %v2827 = vld [vmem:[#allocation6 + $0x88] sm:$0xf]
        %v2828 = vld [vmem:[#allocation6 + $0x8c] sm:$0xf]
        %v2829 = vld [vmem:[#allocation6 + $0x90] sm:$0xf]
        %v2830 = vld [vmem:[#allocation6 + $0x94] sm:$0xf]
        %v2831 = vld [vmem:[#allocation6 + $0x98] sm:$0xf]
        %v2832 = vld [vmem:[#allocation6 + $0x9c] sm:$0xf]
        %v2833 = vld [vmem:[#allocation6 + $0xa0] sm:$0xf]
        %v2834 = vld [vmem:[#allocation6 + $0xa4] sm:$0xf]
        %v2835 = vld [vmem:[#allocation6 + $0xa8] sm:$0xf]
        %v2836 = vld [vmem:[#allocation6 + $0xac] sm:$0xf]
        %v2837 = vld [vmem:[#allocation6 + $0xb0] sm:$0xf]
        %v2838 = vld [vmem:[#allocation6 + $0xb4] sm:$0xf]
        %v2839 = vld [vmem:[#allocation6 + $0xb8] sm:$0xf]
        %v2840 = vld [vmem:[#allocation6 + $0xbc] sm:$0xf]
        %v2841 = vld [vmem:[#allocation6 + $0xc0] sm:$0xf]
        %v2842 = vld [vmem:[#allocation6 + $0xc4] sm:$0xf]
        %v2843 = vld [vmem:[#allocation6 + $0xc8] sm:$0xf]
        %v2844 = vld [vmem:[#allocation6 + $0xcc] sm:$0xf]
        %v2845 = vld [vmem:[#allocation6 + $0xd0] sm:$0xf]
        %v2846 = vld [vmem:[#allocation6 + $0xd4] sm:$0xf]
        %v2847 = vld [vmem:[#allocation6 + $0xd8] sm:$0xf]
        %v2848 = vld [vmem:[#allocation6 + $0xdc] sm:$0xf]
        %v2849 = vld [vmem:[#allocation6 + $0xe0] sm:$0xf]
        %v2850 = vld [vmem:[#allocation6 + $0xe4] sm:$0xf]
        %v2851 = vld [vmem:[#allocation6 + $0xe8] sm:$0xf]
        %v2852 = vld [vmem:[#allocation6 + $0xec] sm:$0xf]
        %v2853 = vld [vmem:[#allocation6 + $0xf0] sm:$0xf]
        %v2854 = vld [vmem:[#allocation6 + $0xf4] sm:$0xf]
        %v2855 = vld [vmem:[#allocation6 + $0xf8] sm:$0xf]
        %v2856 = vld [vmem:[#allocation6 + $0xfc] sm:$0xf]
        %v2857 = vpack.c.bf16 %v2789, %v2789
        %v2858 = vpack.c.bf16 %v2790, %v2790
        %v2859 = vpack.c.bf16 %v2791, %v2791
        %v2860 = vpack.c.bf16 %v2792, %v2792
        %v2925 = vunpack.c.l.b16 %v2793
        %v2926 = vunpack.c.l.b16 %v2794
        %v2927 = vunpack.c.l.b16 %v2795
        %v2928 = vunpack.c.l.b16 %v2796
        %v2929 = vunpack.c.l.b16 %v2797
        %v2930 = vunpack.c.l.b16 %v2798
        %v2931 = vunpack.c.l.b16 %v2799
        %v2932 = vunpack.c.l.b16 %v2800
        %v2933 = vunpack.c.l.b16 %v2801
        %v2934 = vunpack.c.l.b16 %v2802
        %v2935 = vunpack.c.l.b16 %v2803
        %v2936 = vunpack.c.l.b16 %v2804
        %v2937 = vunpack.c.l.b16 %v2805
        %v2938 = vunpack.c.l.b16 %v2806
        %v2939 = vunpack.c.l.b16 %v2807
        %v2940 = vunpack.c.l.b16 %v2808
        %v2941 = vunpack.c.l.b16 %v2809
        %v2942 = vunpack.c.l.b16 %v2810
        %v2943 = vunpack.c.l.b16 %v2811
        %v2944 = vunpack.c.l.b16 %v2812
        %v2945 = vunpack.c.l.b16 %v2813
        %v2946 = vunpack.c.l.b16 %v2814
        %v2947 = vunpack.c.l.b16 %v2815
        %v2948 = vunpack.c.l.b16 %v2816
        %v2949 = vunpack.c.l.b16 %v2817
        %v2950 = vunpack.c.l.b16 %v2818
        %v2951 = vunpack.c.l.b16 %v2819
        %v2952 = vunpack.c.l.b16 %v2820
        %v2953 = vunpack.c.l.b16 %v2821
        %v2954 = vunpack.c.l.b16 %v2822
        %v2955 = vunpack.c.l.b16 %v2823
        %v2956 = vunpack.c.l.b16 %v2824
        %v2957 = vunpack.c.l.b16 %v2825
        %v2958 = vunpack.c.l.b16 %v2826
        %v2959 = vunpack.c.l.b16 %v2827
        %v2960 = vunpack.c.l.b16 %v2828
        %v2961 = vunpack.c.l.b16 %v2829
        %v2962 = vunpack.c.l.b16 %v2830
        %v2963 = vunpack.c.l.b16 %v2831
        %v2964 = vunpack.c.l.b16 %v2832
        %v2965 = vunpack.c.l.b16 %v2833
        %v2966 = vunpack.c.l.b16 %v2834
        %v2967 = vunpack.c.l.b16 %v2835
        %v2968 = vunpack.c.l.b16 %v2836
        %v2969 = vunpack.c.l.b16 %v2837
        %v2970 = vunpack.c.l.b16 %v2838
        %v2971 = vunpack.c.l.b16 %v2839
        %v2972 = vunpack.c.l.b16 %v2840
        %v2973 = vunpack.c.l.b16 %v2841
        %v2974 = vunpack.c.l.b16 %v2842
        %v2975 = vunpack.c.l.b16 %v2843
        %v2976 = vunpack.c.l.b16 %v2844
        %v2977 = vunpack.c.l.b16 %v2845
        %v2978 = vunpack.c.l.b16 %v2846
        %v2979 = vunpack.c.l.b16 %v2847
        %v2980 = vunpack.c.l.b16 %v2848
        %v2981 = vunpack.c.l.b16 %v2849
        %v2982 = vunpack.c.l.b16 %v2850
        %v2983 = vunpack.c.l.b16 %v2851
        %v2984 = vunpack.c.l.b16 %v2852
        %v2985 = vunpack.c.l.b16 %v2853
        %v2986 = vunpack.c.l.b16 %v2854
        %v2987 = vunpack.c.l.b16 %v2855
        %v2988 = vunpack.c.l.b16 %v2856
        %v2989 = vpack.c.b16 %v2926, %v2925
        %v2990 = vpack.c.b16 %v2928, %v2927
        %v2991 = vpack.c.b16 %v2930, %v2929
        %v2992 = vpack.c.b16 %v2932, %v2931
        %v2993 = vpack.c.b16 %v2934, %v2933
        %v2994 = vpack.c.b16 %v2936, %v2935
        %v2995 = vpack.c.b16 %v2938, %v2937
        %v2996 = vpack.c.b16 %v2940, %v2939
        %v2997 = vpack.c.b16 %v2942, %v2941
        %v2998 = vpack.c.b16 %v2944, %v2943
        %v2999 = vpack.c.b16 %v2946, %v2945
        %v3000 = vpack.c.b16 %v2948, %v2947
        %v3001 = vpack.c.b16 %v2950, %v2949
        %v3002 = vpack.c.b16 %v2952, %v2951
        %v3003 = vpack.c.b16 %v2954, %v2953
        %v3004 = vpack.c.b16 %v2956, %v2955
        %v3005 = vpack.c.b16 %v2958, %v2957
        %v3006 = vpack.c.b16 %v2960, %v2959
        %v3007 = vpack.c.b16 %v2962, %v2961
        %v3008 = vpack.c.b16 %v2964, %v2963
        %v3009 = vpack.c.b16 %v2966, %v2965
        %v3010 = vpack.c.b16 %v2968, %v2967
        %v3011 = vpack.c.b16 %v2970, %v2969
        %v3012 = vpack.c.b16 %v2972, %v2971
        %v3013 = vpack.c.b16 %v2974, %v2973
        %v3014 = vpack.c.b16 %v2976, %v2975
        %v3015 = vpack.c.b16 %v2978, %v2977
        %v3016 = vpack.c.b16 %v2980, %v2979
        %v3017 = vpack.c.b16 %v2982, %v2981
        %v3018 = vpack.c.b16 %v2984, %v2983
        %v3019 = vpack.c.b16 %v2986, %v2985
        %v3020 = vpack.c.b16 %v2988, %v2987
        %3053 = vmatprep.subr.bf16.mxu0 0
        %3054 = vmatpush1.bf16.msra.mxu0 %v2989
        %3055 = vmatprep.subr.bf16.mxu0 0
        %3056 = vmatpush1.bf16.msra.mxu0 %v2990
        %3057 = vmatprep.subr.bf16.mxu0 0
        %3058 = vmatpush1.bf16.msra.mxu0 %v2991
        %3059 = vmatprep.subr.bf16.mxu0 0
        %3060 = vmatpush1.bf16.msra.mxu0 %v2992
        %3061 = vmatprep.subr.bf16.mxu0 0
        %3062 = vmatpush1.bf16.msra.mxu0 %v2993
        %3063 = vmatprep.subr.bf16.mxu0 0
        %3064 = vmatpush1.bf16.msra.mxu0 %v2994
        %3065 = vmatprep.subr.bf16.mxu0 0
        %3066 = vmatpush1.bf16.msra.mxu0 %v2995
        %3067 = vmatprep.subr.bf16.mxu0 0
        %3068 = vmatpush1.bf16.msra.mxu0 %v2996
        %3069 = vmatprep.subr.bf16.mxu0 0
        %3070 = vmatpush1.bf16.msra.mxu0 %v2997
        %3071 = vmatprep.subr.bf16.mxu0 0
        %3072 = vmatpush1.bf16.msra.mxu0 %v2998
        %3073 = vmatprep.subr.bf16.mxu0 0
        %3074 = vmatpush1.bf16.msra.mxu0 %v2999
        %3075 = vmatprep.subr.bf16.mxu0 0
        %3076 = vmatpush1.bf16.msra.mxu0 %v3000
        %3077 = vmatprep.subr.bf16.mxu0 0
        %3078 = vmatpush1.bf16.msra.mxu0 %v3001
        %3079 = vmatprep.subr.bf16.mxu0 0
        %3080 = vmatpush1.bf16.msra.mxu0 %v3002
        %3081 = vmatprep.subr.bf16.mxu0 0
        %3082 = vmatpush1.bf16.msra.mxu0 %v3003
        %3083 = vmatprep.subr.bf16.mxu0 0
        %3084 = vmatpush1.bf16.msra.mxu0 %v3004
        %3085 = vmatprep.mubr.bf16.mxu0 %v2858
        %3086 = vmatmul.mubr.bf16.gmra.mrb[0].mxu0 %v2857
        %v3087 = vpop.f32.mrb[0].mxu0
        %v3088 = vadd.f32 0.0, %v3087
        %v3089 = vpop.f32.mrb[0].mxu0
        %v3090 = vpop.f32.mrb[0].mxu0
        %v3091 = vpop.f32.mrb[0].mxu0
        %3092 = vdwg.mxu0
        %3093 = vmatprep.subr.bf16.mxu0 0
        %3094 = vmatpush1.bf16.msra.mxu0 %v3005
        %3095 = vmatprep.subr.bf16.mxu0 0
        %3096 = vmatpush1.bf16.msra.mxu0 %v3006
        %3097 = vmatprep.subr.bf16.mxu0 0
        %3098 = vmatpush1.bf16.msra.mxu0 %v3007
        %3099 = vmatprep.subr.bf16.mxu0 0
        %3100 = vmatpush1.bf16.msra.mxu0 %v3008
        %3101 = vmatprep.subr.bf16.mxu0 0
        %3102 = vmatpush1.bf16.msra.mxu0 %v3009
        %3103 = vmatprep.subr.bf16.mxu0 0
        %3104 = vmatpush1.bf16.msra.mxu0 %v3010
        %3105 = vmatprep.subr.bf16.mxu0 0
        %3106 = vmatpush1.bf16.msra.mxu0 %v3011
        %3107 = vmatprep.subr.bf16.mxu0 0
        %3108 = vmatpush1.bf16.msra.mxu0 %v3012
        %3109 = vmatprep.subr.bf16.mxu0 0
        %3110 = vmatpush1.bf16.msra.mxu0 %v3013
        %3111 = vmatprep.subr.bf16.mxu0 0
        %3112 = vmatpush1.bf16.msra.mxu0 %v3014
        %3113 = vmatprep.subr.bf16.mxu0 0
        %3114 = vmatpush1.bf16.msra.mxu0 %v3015
        %3115 = vmatprep.subr.bf16.mxu0 0
        %3116 = vmatpush1.bf16.msra.mxu0 %v3016
        %3117 = vmatprep.subr.bf16.mxu0 0
        %3118 = vmatpush1.bf16.msra.mxu0 %v3017
        %3119 = vmatprep.subr.bf16.mxu0 0
        %3120 = vmatpush1.bf16.msra.mxu0 %v3018
        %3121 = vmatprep.subr.bf16.mxu0 0
        %3122 = vmatpush1.bf16.msra.mxu0 %v3019
        %3123 = vmatprep.subr.bf16.mxu0 0
        %3124 = vmatpush1.bf16.msra.mxu0 %v3020
        %3125 = vmatprep.mubr.bf16.mxu0 %v2860
        %3126 = vmatmul.mubr.bf16.gmra.mrb[0].mxu0 %v2859
        %v3127 = vpop.f32.mrb[0].mxu0
        %v3128 = vadd.f32 %v3088, %v3127
        %v3129 = vpop.f32.mrb[0].mxu0
        %v3130 = vpop.f32.mrb[0].mxu0
        %v3131 = vpop.f32.mrb[0].mxu0
        %3132 = vdwg.mxu0
        %v3133 = vadd.f32 %v2438, %v3128
        %v3134 = vlaneseq
        %v3135 = vshrl.u32 %v3134, 7
        %v3136 = vsub.s32 0, %v3135
        %v3137 = vrot.slane %v314, %v3136
        %v3138 = vadd.f32 %v3133, %v3137
        %3139 = vst [vmem:[%s302] sm:$0xff] %v3138
        %s3140 = sand.u32 %s183, 1
        %s3141 = scalar_lea.sflag [#allocation5], %s3140
        %s3142 = sand.u32 %s183, 1
        %s3143 = smul.addr %s3142, 8
        %s3144 = scalar_lea.vmem [#allocation8], %s3143
        // Predicated region
        $region57: #{tpu_custom_call.1} parent=47 // pred_check
          %p3145 = pneg %p193
        $region58: #{tpu_custom_call.1} parent=47 // pred_check_branch
          %3147 = sbr.rel (%p3145) target = $region60
        $region59: #{tpu_custom_call.1} parent=47 // pred_region
          %s3149 = ssub.s32 128, 128
          %3150 = vsyncadd %s3141, %s3149
          %s3151 = smul.addr %s23, 128
          %s3152 = scalar_lea.hbm %s7, %s3151
          %s3154 = sshll.u32 %s3144, 4
          %s3155 = int_to_ptr.vmem [resolvable:$true] %s3154
          %3157 = dma.vmem_to_hbm [thread:$0]  %s3155, 128, %s3152, %s3141
        $region60: #{tpu_custom_call.1} parent=47 // pred_fallthru
          _
      $region48: #{tpu_custom_call.1} parent=5 // pred_fallthru
        _
      %p3158 = scmp.le.s32.totalorder 2, %s18
      // Predicated region
      $region61: #{tpu_custom_call.1} parent=5 // pred_check
        %p3159 = pneg %p3158
      $region62: #{tpu_custom_call.1} parent=5 // pred_check_branch
        %3161 = sbr.rel (%p3159) target = $region64
      $region63: #{tpu_custom_call.1} parent=5 // pred_region
        %s3162 = ssub.s32 %s18, 2
        // Predicated region
        $region65: #{tpu_custom_call.1} parent=63 // pred_check
          %p3163 = pneg %p199
        $region66: #{tpu_custom_call.1} parent=63 // pred_check_branch
          %3165 = sbr.rel (%p3163) target = $region68
        $region67: #{tpu_custom_call.1} parent=63 // pred_region
          %s3166 = sand.u32 %s184, 1
          %s3167 = scalar_lea.sflag [#allocation5], %s3166
          %s3168 = sand.u32 %s184, 1
          %s3169 = smul.addr %s3168, 8
          %s3170 = scalar_lea.vmem [#allocation8], %s3169
          %3171 = dma.done %s3167, 128
        $region68: #{tpu_custom_call.1} parent=63 // pred_fallthru
          _
      $region64: #{tpu_custom_call.1} parent=5 // pred_fallthru
        _
    $region6: #{tpu_custom_call.1} parent=1 // loop_footer
      %s22 = sadd.s32 1, %s18
    $region7: #{tpu_custom_call.1} parent=1 // loop_footer_branch
      %17 = sbr.rel target = $region3
    $region8: #{tpu_custom_call.1} parent=1 // loop_exit
      _
    %3172 = vsyncpa [#allocation4], 1
    %s3173 = scalar_lea.sflag [#allocation4], 1
    %3174 = vsyncpa %s3173, 1
    %3175 = vsyncpa [#allocation7], 1
    %3176 = vsyncpa [#allocation5], 1
    %s3177 = scalar_lea.sflag [#allocation5], 1
    %3178 = vsyncpa %s3177, 1

</llo_original>
